<compile_context>
chip_gen: v6e
topology: v6e:2x2x1
jax: 0.10.0
libtpu: 0.0.40
codegen_flags: <defaults>
</compile_context>

<pallas_src>
import functools

import jax
import jax.numpy as jnp
import numpy as np
from jax.experimental import pallas as pl
from jax.experimental.pallas import tpu as pltpu

LN_EPS = 1e-5
COMPUTE_DTYPE = jnp.bfloat16          # MXU-native matmul operand dtype
LANE = 128
C1, C2 = 32, 64                       # conv1 / conv2 output channels (module-fixed)


# ----------------------------------------------------------------------------
# Static geometry helpers
# ----------------------------------------------------------------------------
def _round_up(x, m):
    return (x + m - 1) // m * m


def _pick_batch_tile(batch, cap=32):
    """Largest divisor of `batch` <= cap that still leaves a grid of >= 2 steps
    (so the 'parallel' grid axis can be split across v7x's two TensorCores)."""
    best = 1
    for t in range(1, min(cap, batch) + 1):
        if batch % t == 0 and batch // t >= 2:
            best = t
    return best


def _layer_dims(h, w):
    """Static geometry of one stride-2 4x4 'same' conv layer on an (h, w) image."""
    ho, wo = h // 2, w // 2
    hb, wb = ho + 1, wo + 1           # 2x2-block grid of the zero-padded input
    L = hb * wb                       # blocks per image
    S = L + 1                         # per-image slab rows (one extra zero row)
    mp = ho * wb                      # output rows per image (real + junk column)
    return dict(ho=ho, wo=wo, wb=wb, L=L, S=S, mp=mp)


# ----------------------------------------------------------------------------
# Fused encoder kernel
# ----------------------------------------------------------------------------
def _encoder_kernel(x_ref,
                    w1_ref, b1_ref, g1_ref, be1_ref,
                    w2_ref, b2_ref, g2_ref, be2_ref,
                    w3_ref, b3_ref, g3_ref, be3_ref,
                    fc1w_ref, fc1b_ref, fc2w_ref, fc2b_ref,
                    o_ref,
                    ybuf1_ref, slab2_ref, ybuf2_ref, slab3_ref,
                    *, bn, d1, d2, d3, z_dim, z_pad):

    def conv_ln_silu(lhs, w_ref, b_ref, g_ref, be_ref, wb, m_rows):
        """Stride-2 4x4 conv (4 shifted matmuls, M spans the whole batch tile)
        + bias + LayerNorm(channels) + SiLU, all accumulated in f32."""
        kq = w_ref.shape[0] // 4
        w = w_ref[...]
        y = None
        # Keep the 4 dots in one accumulation chain with no other ops between
        # them (MRB in-place accumulate on v7x, fewer MRF drains on v5e/v6e).
        for idx, off in enumerate((0, 1, wb, wb + 1)):
            part = jnp.dot(lhs(off, m_rows), w[idx * kq:(idx + 1) * kq, :],
                           preferred_element_type=jnp.float32)
            y = part if y is None else y + part
        y = y + b_ref[...]                                  # bias read once
        mean = jnp.mean(y, axis=-1, keepdims=True)
        var = jnp.mean(jnp.square(y - mean), axis=-1, keepdims=True)
        yn = (y - mean) * jax.lax.rsqrt(var + LN_EPS)
        yn = yn * g_ref[...] + be_ref[...]                  # gamma/beta read once
        return yn * jax.nn.sigmoid(yn)                      # SiLU (f32)

    def repack(src_ref, dst_ref, src_d, dst_d, cp):
        """In-VMEM 2x2 space-to-depth re-pack of a conv output (row-per-pixel in
        src_ref) into the padded, lane-dense (4*Cout) slab the next conv reads.
        Junk-column / inter-image rows of src_ref are simply never copied."""
        hh, ww, wb_s, s_s = src_d['ho'], src_d['wo'], src_d['wb'], src_d['S']
        wb_d, s_d = dst_d['wb'], dst_d['S']
        h2, w2 = hh // 2, ww // 2
        # Zero-fill = the conv's zero padding for border blocks / tail row.
        dst_ref[...] = jnp.zeros(dst_ref.shape, dst_ref.dtype)
        # TODO(synk): switch the static loops to lax.fori_loop(..., unroll=True)
        # for training-scale spatial sizes to bound instruction footprint.
        for qi, (ph, pw) in enumerate(((0, 0), (0, 1), (1, 0), (1, 1))):
            u0, v0 = 1 - ph, 1 - pw      # first valid dest block row / col
            r0, c0 = 1 - ph, 1 - pw      # first source pixel row / col
            for b in range(bn):
                for du in range(h2):
                    src = b * s_s + (r0 + 2 * du) * wb_s + c0
                    dst = b * s_d + (u0 + du) * wb_d + v0
                    # Stride-2 sublane read grabs one full row of same-parity
                    # pixels at once (no per-pixel copies, no HBM traffic).
                    rows = src_ref[pl.ds(src, w2, 2), :]
                    dst_ref[pl.ds(dst, w2), qi * cp:(qi + 1) * cp] = (
                        rows.astype(dst_ref.dtype))

    m1 = (bn - 1) * d1['S'] + d1['mp']
    m2 = (bn - 1) * d2['S'] + d2['mp']
    m3 = (bn - 1) * d3['S'] + d3['mp']

    # ---- conv1 + LN + SiLU (batch tile merged into the matmul M dimension) ----
    act1 = conv_ln_silu(lambda off, m: x_ref[0, off:off + m, :],
                        w1_ref, b1_ref, g1_ref, be1_ref, d1['wb'], m1)
    ybuf1_ref[...] = act1
    repack(ybuf1_ref, slab2_ref, d1, d2, C1)        # -> (bn*S2, 128) bf16 slab

    # ---- conv2 ----
    act2 = conv_ln_silu(lambda off, m: slab2_ref[off:off + m, :],
                        w2_ref, b2_ref, g2_ref, be2_ref, d2['wb'], m2)
    ybuf2_ref[...] = act2
    repack(ybuf2_ref, slab3_ref, d2, d3, C2)        # -> (bn*S3, 256) bf16 slab

    # ---- conv3 ----
    act3 = conv_ln_silu(lambda off, m: slab3_ref[off:off + m, :],
                        w3_ref, b3_ref, g3_ref, be3_ref, d3['wb'], m3)

    # ---- flatten (pixel-major, channel-minor; fc1 rows pre-permuted) + MLP ----
    ho3, wo3, wb3, s3 = d3['ho'], d3['wo'], d3['wb'], d3['S']
    rows = []
    for b in range(bn):
        pieces = [act3[b * s3 + i * wb3 + j:b * s3 + i * wb3 + j + 1, :]
                  for i in range(ho3) for j in range(wo3)]
        rows.append(jnp.concatenate(pieces, axis=1))
    flat = rows[0] if bn == 1 else jnp.concatenate(rows, axis=0)   # (bn, Dflat) f32

    h = jnp.dot(flat.astype(COMPUTE_DTYPE), fc1w_ref[...],
                preferred_element_type=jnp.float32) + fc1b_ref[...]
    h = h * jax.nn.sigmoid(h)                                      # SiLU
    z = jnp.dot(h.astype(COMPUTE_DTYPE), fc2w_ref[...],
                preferred_element_type=jnp.float32) + fc2b_ref[...]
    if z_pad > z_dim:                              # lane-dense (128-wide) HBM store
        z = jnp.concatenate(
            [z, jnp.zeros((bn, z_pad - z_dim), jnp.float32)], axis=1)
    o_ref[0, :, :] = z


# ----------------------------------------------------------------------------
# JAX-side glue: 1x-traffic space-to-depth of the raw input, one pallas_call
# ----------------------------------------------------------------------------
def _build_slab1(x_nhwc, bn, d1):
    """(N,H,W,C) -> (N/bn, bn*S1, 4C): per-image padded 2x2 space-to-depth slab
    with a trailing zero row per image, batch-major within each batch tile."""
    n, h, w, c = x_nhwc.shape
    hb, wb, L, S = d1['ho'] + 1, d1['wb'], d1['L'], d1['S']
    xp = jnp.pad(x_nhwc, ((0, 0), (1, 1), (1, 1), (0, 0)))
    xp = xp.reshape(n, hb, 2, wb, 2, c)
    xp = jnp.transpose(xp, (0, 1, 3, 2, 4, 5))       # (n, hb, wb, 2, 2, c)
    xp = xp.reshape(n, L, 4 * c)
    xp = jnp.pad(xp, ((0, 0), (0, S - L), (0, 0)))   # per-image zero tail row
    return xp.reshape(n // bn, bn * S, 4 * c)


def _vmem_limit_bytes():
    """Generation-aware scoped-VMEM budget: ~half of physical, 32 MiB fallback
    (v7x: 32 of 64 MiB; v5e/v6e: 64 of 128 MiB)."""
    try:
        cap = pltpu.get_tpu_info().vmem_capacity_bytes
        return int(min(max(cap // 2, 32 * 1024 * 1024), 96 * 1024 * 1024))
    except Exception:
        return 32 * 1024 * 1024


def encoder_forward(x_nchw, prep):
    n, c, h, w = x_nchw.shape
    assert h % 8 == 0 and w % 8 == 0, "H and W must be divisible by 8"
    z_dim = prep["fc2_w"].shape[1]
    z_pad = _round_up(z_dim, LANE)
    bn = _pick_batch_tile(n)                  # >= 2 grid steps whenever n >= 2
    assert n % bn == 0
    t = n // bn

    d1 = _layer_dims(h, w)
    d2 = _layer_dims(d1['ho'], d1['wo'])
    d3 = _layer_dims(d2['ho'], d2['wo'])
    m1 = (bn - 1) * d1['S'] + d1['mp']
    m2 = (bn - 1) * d2['S'] + d2['mp']

    x = jnp.transpose(x_nchw, (0, 2, 3, 1)).astype(COMPUTE_DTYPE)   # NHWC bf16
    slab1 = _build_slab1(x, bn, d1)                                 # (t, bn*S1, 4c)

    def res(shape):
        return pl.BlockSpec(shape, lambda i, _r=len(shape): (0,) * _r)

    kernel = functools.partial(
        _encoder_kernel, bn=bn, d1=d1, d2=d2, d3=d3, z_dim=z_dim, z_pad=z_pad)

    out = pl.pallas_call(
        kernel,
        out_shape=jax.ShapeDtypeStruct((t, bn, z_pad), jnp.float32),
        grid=(t,),
        in_specs=[
            pl.BlockSpec((1, bn * d1['S'], 4 * c), lambda i: (i, 0, 0)),
            res(prep["conv1_w"].shape), res((1, C1)), res((1, C1)), res((1, C1)),
            res(prep["conv2_w"].shape), res((1, C2)), res((1, C2)), res((1, C2)),
            res(prep["conv3_w"].shape), res((1, z_dim)), res((1, z_dim)), res((1, z_dim)),
            res(prep["fc1_w"].shape), res((1, 256)),
            res(prep["fc2_w"].shape), res((1, z_dim)),
        ],
        out_specs=pl.BlockSpec((1, bn, z_pad), lambda i: (i, 0, 0)),
        scratch_shapes=[
            pltpu.VMEM((m1, C1), jnp.float32),                     # conv1 act
            pltpu.VMEM((bn * d2['S'], 4 * C1), COMPUTE_DTYPE),     # conv2 slab (128)
            pltpu.VMEM((m2, C2), jnp.float32),                     # conv2 act
            pltpu.VMEM((bn * d3['S'], 4 * C2), COMPUTE_DTYPE),     # conv3 slab (256)
        ],
        compiler_params=pltpu.CompilerParams(
            dimension_semantics=("parallel",),
            vmem_limit_bytes=_vmem_limit_bytes()),
    )(slab1,
      prep["conv1_w"], prep["conv1_b"], prep["ln1_g"], prep["ln1_b"],
      prep["conv2_w"], prep["conv2_b"], prep["ln2_g"], prep["ln2_b"],
      prep["conv3_w"], prep["conv3_b"], prep["ln3_g"], prep["ln3_b"],
      prep["fc1_w"], prep["fc1_b"], prep["fc2_w"], prep["fc2_b"])
    return out.reshape(n, z_pad)[:, :z_dim]


# ----------------------------------------------------------------------------
# One-time parameter re-layout (hoisted out of the forward pass)
# ----------------------------------------------------------------------------
def _conv_weight_to_matmul(w_oihw):
    """(Cout, Cin, 4, 4) -> (16*Cin, Cout), rows ordered (dh, dw, ph, pw, cin)."""
    cout, cin, kh, kw = w_oihw.shape
    assert kh == 4 and kw == 4
    wt = jnp.transpose(w_oihw, (2, 3, 1, 0))         # (kh, kw, cin, cout)
    wt = wt.reshape(2, 2, 2, 2, cin, cout)           # (dh, ph, dw, pw, cin, cout)
    wt = jnp.transpose(wt, (0, 2, 1, 3, 4, 5))       # (dh, dw, ph, pw, cin, cout)
    return wt.reshape(16 * cin, cout)


def prepare_params(params, z_dim, height, width):
    ho3, wo3 = height // 8, width // 8
    d_flat = z_dim * ho3 * wo3
    prep = {}
    for i in (1, 2, 3):
        prep[f"conv{i}_w"] = _conv_weight_to_matmul(
            params[f"conv{i}_w"]).astype(COMPUTE_DTYPE)
        prep[f"conv{i}_b"] = params[f"conv{i}_b"].reshape(1, -1).astype(jnp.float32)
        prep[f"ln{i}_g"] = params[f"ln{i}_g"].reshape(1, -1).astype(jnp.float32)
        prep[f"ln{i}_b"] = params[f"ln{i}_b"].reshape(1, -1).astype(jnp.float32)
    # PyTorch flattens NCHW; the kernel flattens pixel-major / channel-minor,
    # so permute fc1 rows once here (no activation transpose in the forward).
    fc1 = params["fc1_w"].reshape(z_dim, ho3, wo3, -1)
    fc1 = jnp.transpose(fc1, (1, 2, 0, 3)).reshape(d_flat, -1)
    prep["fc1_w"] = fc1.astype(COMPUTE_DTYPE)
    prep["fc1_b"] = params["fc1_b"].reshape(1, -1).astype(jnp.float32)
    prep["fc2_w"] = params["fc2_w"].astype(COMPUTE_DTYPE)
    prep["fc2_b"] = params["fc2_b"].reshape(1, -1).astype(jnp.float32)
    return prep


# ----------------------------------------------------------------------------
# Deterministic parameter init (synthetic, PyTorch layout)
# ----------------------------------------------------------------------------
def init_params(key, input_dim, z_dim, height, width):
    ks = jax.random.split(key, 16)
    d_flat = z_dim * (height // 8) * (width // 8)

    def rnd(k, shape, scale=0.05):
        return (scale * jax.random.normal(k, shape)).astype(jnp.float32)

    return {
        "conv1_w": rnd(ks[0], (32, input_dim, 4, 4)),
        "conv1_b": rnd(ks[1], (32,)),
        "conv2_w": rnd(ks[2], (64, 32, 4, 4)),
        "conv2_b": rnd(ks[3], (64,)),
        "conv3_w": rnd(ks[4], (z_dim, 64, 4, 4)),
        "conv3_b": rnd(ks[5], (z_dim,)),
        "ln1_g": 1.0 + rnd(ks[6], (32,), 0.1),
        "ln1_b": rnd(ks[7], (32,), 0.1),
        "ln2_g": 1.0 + rnd(ks[8], (64,), 0.1),
        "ln2_b": rnd(ks[9], (64,), 0.1),
        "ln3_g": 1.0 + rnd(ks[10], (z_dim,), 0.1),
        "ln3_b": rnd(ks[11], (z_dim,), 0.1),
        "fc1_w": rnd(ks[12], (d_flat, 256)),   # stored (in, out)
        "fc1_b": rnd(ks[13], (256,)),
        "fc2_w": rnd(ks[14], (256, z_dim)),    # stored (in, out)
        "fc2_b": rnd(ks[15], (z_dim,)),
    }


# ----------------------------------------------------------------------------
# Pure-JAX f32 reference (PyTorch semantics) for the sanity check
# ----------------------------------------------------------------------------
def encoder_reference(x_nchw, params):
    hi = jax.lax.Precision.HIGHEST

    def conv(x, w, b):
        y = jax.lax.conv_general_dilated(
            x, w, (2, 2), ((1, 1), (1, 1)),
            dimension_numbers=("NCHW", "OIHW", "NCHW"), precision=hi)
        return y + b[None, :, None, None]

    def ln_silu(x, g, bt):
        xh = jnp.transpose(x, (0, 2, 3, 1))
        mu = xh.mean(-1, keepdims=True)
        var = ((xh - mu) ** 2).mean(-1, keepdims=True)
        xn = (xh - mu) / jnp.sqrt(var + LN_EPS) * g + bt
        xn = xn * jax.nn.sigmoid(xn)
        return jnp.transpose(xn, (0, 3, 1, 2))

    x = ln_silu(conv(x_nchw, params["conv1_w"], params["conv1_b"]),
                params["ln1_g"], params["ln1_b"])
    x = ln_silu(conv(x, params["conv2_w"], params["conv2_b"]),
                params["ln2_g"], params["ln2_b"])
    x = ln_silu(conv(x, params["conv3_w"], params["conv3_b"]),
                params["ln3_g"], params["ln3_b"])
    flat = x.reshape(x.shape[0], -1)
    h = jnp.dot(flat, params["fc1_w"], precision=hi) + params["fc1_b"]
    h = h * jax.nn.sigmoid(h)
    return jnp.dot(h, params["fc2_w"], precision=hi) + params["fc2_b"]


if __name__ == "__main__":
    # Small shapes: batch=2, input_dim=4, H=W=16, z_dim=16 (2x2 spatial after 3 convs)
    B, C_IN, H, W, Z = 2, 4, 16, 16, 16

    key = jax.random.PRNGKey(0)
    k_x, k_p = jax.random.split(key)
    x = jax.random.normal(k_x, (B, C_IN, H, W), dtype=jnp.float32)
    params = init_params(k_p, C_IN, Z, H, W)
    prep = prepare_params(params, Z, H, W)           # one-time weight re-layout

    fwd = jax.jit(encoder_forward)
    z = jax.block_until_ready(fwd(x, prep))
    assert z.shape == (B, Z), z.shape

    z_ref = jax.block_until_ready(encoder_reference(x, params))
    # bf16 matmul operands -> slightly looser tolerance than pure f32.
    np.testing.assert_allclose(np.asarray(z), np.asarray(z_ref),
                               atol=2e-2, rtol=2e-2)

    print("KERNEL_OK")
</pallas_src>

<mosaic_0001>
module attributes {stable_mosaic.version = 11 : i64} {
  func.func @_encoder_kernel(%arg0: i32, %arg1: memref<1x82x16xbf16, #tpu.memory_space<vmem>>, %arg2: memref<64x32xbf16, #tpu.memory_space<vmem>>, %arg3: memref<1x32xf32, #tpu.memory_space<vmem>>, %arg4: memref<1x32xf32, #tpu.memory_space<vmem>>, %arg5: memref<1x32xf32, #tpu.memory_space<vmem>>, %arg6: memref<512x64xbf16, #tpu.memory_space<vmem>>, %arg7: memref<1x64xf32, #tpu.memory_space<vmem>>, %arg8: memref<1x64xf32, #tpu.memory_space<vmem>>, %arg9: memref<1x64xf32, #tpu.memory_space<vmem>>, %arg10: memref<1024x16xbf16, #tpu.memory_space<vmem>>, %arg11: memref<1x16xf32, #tpu.memory_space<vmem>>, %arg12: memref<1x16xf32, #tpu.memory_space<vmem>>, %arg13: memref<1x16xf32, #tpu.memory_space<vmem>>, %arg14: memref<64x256xbf16, #tpu.memory_space<vmem>>, %arg15: memref<1x256xf32, #tpu.memory_space<vmem>>, %arg16: memref<256x16xbf16, #tpu.memory_space<vmem>>, %arg17: memref<1x16xf32, #tpu.memory_space<vmem>>, %arg18: memref<1x1x128xf32, #tpu.memory_space<vmem>>, %arg19: memref<72x32xf32, #tpu.memory_space<vmem>>, %arg20: memref<26x128xbf16, #tpu.memory_space<vmem>>, %arg21: memref<20x64xf32, #tpu.memory_space<vmem>>, %arg22: memref<10x256xbf16, #tpu.memory_space<vmem>>) attributes {dimension_semantics = [#tpu.dimension_semantics<parallel>], iteration_bounds = array<i64: 2>, scalar_prefetch = 0 : i64, scratch_operands = 4 : i64, tpu.core_type = #tpu.core_type<tc>, window_params = [{transform_indices = @transform_0, window_bounds = array<i64: 1, 82, 16>}, {pipeline_mode = #tpu.pipeline_mode<synchronous>, transform_indices = @transform_1, window_bounds = array<i64: 64, 32>}, {pipeline_mode = #tpu.pipeline_mode<synchronous>, transform_indices = @transform_2, window_bounds = array<i64: 1, 32>}, {pipeline_mode = #tpu.pipeline_mode<synchronous>, transform_indices = @transform_3, window_bounds = array<i64: 1, 32>}, {pipeline_mode = #tpu.pipeline_mode<synchronous>, transform_indices = @transform_4, window_bounds = array<i64: 1, 32>}, {pipeline_mode = #tpu.pipeline_mode<synchronous>, transform_indices = @transform_5, window_bounds = array<i64: 512, 64>}, {pipeline_mode = #tpu.pipeline_mode<synchronous>, transform_indices = @transform_6, window_bounds = array<i64: 1, 64>}, {pipeline_mode = #tpu.pipeline_mode<synchronous>, transform_indices = @transform_7, window_bounds = array<i64: 1, 64>}, {pipeline_mode = #tpu.pipeline_mode<synchronous>, transform_indices = @transform_8, window_bounds = array<i64: 1, 64>}, {pipeline_mode = #tpu.pipeline_mode<synchronous>, transform_indices = @transform_9, window_bounds = array<i64: 1024, 16>}, {pipeline_mode = #tpu.pipeline_mode<synchronous>, transform_indices = @transform_10, window_bounds = array<i64: 1, 16>}, {pipeline_mode = #tpu.pipeline_mode<synchronous>, transform_indices = @transform_11, window_bounds = array<i64: 1, 16>}, {pipeline_mode = #tpu.pipeline_mode<synchronous>, transform_indices = @transform_12, window_bounds = array<i64: 1, 16>}, {pipeline_mode = #tpu.pipeline_mode<synchronous>, transform_indices = @transform_13, window_bounds = array<i64: 64, 256>}, {pipeline_mode = #tpu.pipeline_mode<synchronous>, transform_indices = @transform_14, window_bounds = array<i64: 1, 256>}, {pipeline_mode = #tpu.pipeline_mode<synchronous>, transform_indices = @transform_15, window_bounds = array<i64: 256, 16>}, {pipeline_mode = #tpu.pipeline_mode<synchronous>, transform_indices = @transform_16, window_bounds = array<i64: 1, 16>}, {transform_indices = @transform_17, window_bounds = array<i64: 1, 1, 128>}]} {
    %c0 = arith.constant 0 : index
    %c0_0 = arith.constant 0 : index
    %0 = vector.load %arg2[%c0, %c0_0] : memref<64x32xbf16, #tpu.memory_space<vmem>>, vector<64x32xbf16>
    %c0_1 = arith.constant 0 : index
    %c0_2 = arith.constant 0 : index
    %c0_3 = arith.constant 0 : index
    %1 = vector.load %arg1[%c0_1, %c0_2, %c0_3] : memref<1x82x16xbf16, #tpu.memory_space<vmem>>, vector<1x72x16xbf16>
    %2 = vector.shape_cast %1 : vector<1x72x16xbf16> to vector<72x16xbf16>
    %3 = vector.extract_strided_slice %0 {offsets = [0, 0], sizes = [16, 32], strides = [1, 1]} : vector<64x32xbf16> to vector<16x32xbf16>
    %cst = arith.constant dense<0.000000e+00> : vector<72x32xf32>
    %4 = tpu.matmul %2, %3, %cst {dimension_numbers = #tpu.dot_dimension_numbers<[1], [0], [0], [1], [0, 0, 1, 1], [], []>} : vector<72x16xbf16>, vector<16x32xbf16>, vector<72x32xf32> -> vector<72x32xf32>
    %c0_4 = arith.constant 0 : index
    %c1 = arith.constant 1 : index
    %c0_5 = arith.constant 0 : index
    %5 = vector.load %arg1[%c0_4, %c1, %c0_5] : memref<1x82x16xbf16, #tpu.memory_space<vmem>>, vector<1x72x16xbf16>
    %6 = vector.shape_cast %5 : vector<1x72x16xbf16> to vector<72x16xbf16>
    %7 = vector.extract_strided_slice %0 {offsets = [16, 0], sizes = [16, 32], strides = [1, 1]} : vector<64x32xbf16> to vector<16x32xbf16>
    %cst_6 = arith.constant dense<0.000000e+00> : vector<72x32xf32>
    %8 = tpu.matmul %6, %7, %cst_6 {dimension_numbers = #tpu.dot_dimension_numbers<[1], [0], [0], [1], [0, 0, 1, 1], [], []>} : vector<72x16xbf16>, vector<16x32xbf16>, vector<72x32xf32> -> vector<72x32xf32>
    %9 = arith.addf %4, %8 : vector<72x32xf32>
    %c0_7 = arith.constant 0 : index
    %c9 = arith.constant 9 : index
    %c0_8 = arith.constant 0 : index
    %10 = vector.load %arg1[%c0_7, %c9, %c0_8] : memref<1x82x16xbf16, #tpu.memory_space<vmem>>, vector<1x72x16xbf16>
    %11 = vector.shape_cast %10 : vector<1x72x16xbf16> to vector<72x16xbf16>
    %12 = vector.extract_strided_slice %0 {offsets = [32, 0], sizes = [16, 32], strides = [1, 1]} : vector<64x32xbf16> to vector<16x32xbf16>
    %cst_9 = arith.constant dense<0.000000e+00> : vector<72x32xf32>
    %13 = tpu.matmul %11, %12, %cst_9 {dimension_numbers = #tpu.dot_dimension_numbers<[1], [0], [0], [1], [0, 0, 1, 1], [], []>} : vector<72x16xbf16>, vector<16x32xbf16>, vector<72x32xf32> -> vector<72x32xf32>
    %14 = arith.addf %9, %13 : vector<72x32xf32>
    %c0_10 = arith.constant 0 : index
    %c10 = arith.constant 10 : index
    %c0_11 = arith.constant 0 : index
    %15 = vector.load %arg1[%c0_10, %c10, %c0_11] : memref<1x82x16xbf16, #tpu.memory_space<vmem>>, vector<1x72x16xbf16>
    %16 = vector.shape_cast %15 : vector<1x72x16xbf16> to vector<72x16xbf16>
    %17 = vector.extract_strided_slice %0 {offsets = [48, 0], sizes = [16, 32], strides = [1, 1]} : vector<64x32xbf16> to vector<16x32xbf16>
    %cst_12 = arith.constant dense<0.000000e+00> : vector<72x32xf32>
    %18 = tpu.matmul %16, %17, %cst_12 {dimension_numbers = #tpu.dot_dimension_numbers<[1], [0], [0], [1], [0, 0, 1, 1], [], []>} : vector<72x16xbf16>, vector<16x32xbf16>, vector<72x32xf32> -> vector<72x32xf32>
    %19 = arith.addf %14, %18 : vector<72x32xf32>
    %c0_13 = arith.constant 0 : index
    %c0_14 = arith.constant 0 : index
    %20 = vector.load %arg3[%c0_13, %c0_14] : memref<1x32xf32, #tpu.memory_space<vmem>>, vector<1x32xf32>
    %21 = vector.broadcast %20 : vector<1x32xf32> to vector<72x32xf32>
    %22 = arith.addf %19, %21 : vector<72x32xf32>
    %cst_15 = arith.constant dense<0.000000e+00> : vector<72xf32>
    %23 = vector.multi_reduction <add>, %22, %cst_15 [1] : vector<72x32xf32> to vector<72xf32>
    %24 = vector.shape_cast %23 : vector<72xf32> to vector<72x1xf32>
    %cst_16 = arith.constant 3.200000e+01 : f32
    %25 = vector.broadcast %cst_16 : f32 to vector<72x1xf32>
    %26 = arith.divf %24, %25 : vector<72x1xf32>
    %27 = vector.broadcast %26 : vector<72x1xf32> to vector<72x32xf32>
    %28 = arith.subf %22, %27 : vector<72x32xf32>
    %29 = arith.mulf %28, %28 : vector<72x32xf32>
    %cst_17 = arith.constant dense<0.000000e+00> : vector<72xf32>
    %30 = vector.multi_reduction <add>, %29, %cst_17 [1] : vector<72x32xf32> to vector<72xf32>
    %31 = vector.shape_cast %30 : vector<72xf32> to vector<72x1xf32>
    %cst_18 = arith.constant 3.200000e+01 : f32
    %32 = vector.broadcast %cst_18 : f32 to vector<72x1xf32>
    %33 = arith.divf %31, %32 : vector<72x1xf32>
    %34 = vector.broadcast %26 : vector<72x1xf32> to vector<72x32xf32>
    %35 = arith.subf %22, %34 : vector<72x32xf32>
    %cst_19 = arith.constant 9.99999974E-6 : f32
    %36 = vector.broadcast %cst_19 : f32 to vector<72x1xf32>
    %37 = arith.addf %33, %36 : vector<72x1xf32>
    %38 = math.rsqrt %37 : vector<72x1xf32>
    %39 = vector.broadcast %38 : vector<72x1xf32> to vector<72x32xf32>
    %40 = arith.mulf %35, %39 : vector<72x32xf32>
    %c0_20 = arith.constant 0 : index
    %c0_21 = arith.constant 0 : index
    %41 = vector.load %arg4[%c0_20, %c0_21] : memref<1x32xf32, #tpu.memory_space<vmem>>, vector<1x32xf32>
    %42 = vector.broadcast %41 : vector<1x32xf32> to vector<72x32xf32>
    %43 = arith.mulf %40, %42 : vector<72x32xf32>
    %c0_22 = arith.constant 0 : index
    %c0_23 = arith.constant 0 : index
    %44 = vector.load %arg5[%c0_22, %c0_23] : memref<1x32xf32, #tpu.memory_space<vmem>>, vector<1x32xf32>
    %45 = vector.broadcast %44 : vector<1x32xf32> to vector<72x32xf32>
    %46 = arith.addf %43, %45 : vector<72x32xf32>
    %47 = arith.negf %46 : vector<72x32xf32>
    %48 = math.exp %47 : vector<72x32xf32>
    %cst_24 = arith.constant 1.000000e+00 : f32
    %49 = vector.broadcast %cst_24 : f32 to vector<72x32xf32>
    %50 = arith.addf %49, %48 : vector<72x32xf32>
    %51 = arith.divf %49, %50 : vector<72x32xf32>
    %52 = arith.mulf %46, %51 : vector<72x32xf32>
    %c0_25 = arith.constant 0 : index
    %c0_26 = arith.constant 0 : index
    %53 = vector.load %arg19[%c0_25, %c0_26] : memref<72x32xf32, #tpu.memory_space<vmem>>, vector<72x32xf32>
    tpu.vector_store %arg19[%c0_25, %c0_26], %52 {strides = array<i32>} : memref<72x32xf32, #tpu.memory_space<vmem>>, vector<72x32xf32>,
    %cst_27 = arith.constant 0.000000e+00 : bf16
    %54 = vector.broadcast %cst_27 : bf16 to vector<26x128xbf16>
    %c0_28 = arith.constant 0 : index
    %c0_29 = arith.constant 0 : index
    %55 = vector.load %arg20[%c0_28, %c0_29] : memref<26x128xbf16, #tpu.memory_space<vmem>>, vector<26x128xbf16>
    tpu.vector_store %arg20[%c0_28, %c0_29], %54 {strides = array<i32>} : memref<26x128xbf16, #tpu.memory_space<vmem>>, vector<26x128xbf16>,
    %c10_30 = arith.constant 10 : index
    %c0_31 = arith.constant 0 : index
    %56 = tpu.strided_load %arg19[%c10_30, %c0_31] {strides = array<i32: 2, 1>} : memref<72x32xf32, #tpu.memory_space<vmem>>, vector<4x32xf32>
    %57 = arith.truncf %56 : vector<4x32xf32> to vector<4x32xbf16>
    %c6 = arith.constant 6 : index
    %c0_32 = arith.constant 0 : index
    %58 = vector.load %arg20[%c6, %c0_32] : memref<26x128xbf16, #tpu.memory_space<vmem>>, vector<4x32xbf16>
    tpu.vector_store %arg20[%c6, %c0_32], %57 {strides = array<i32>} : memref<26x128xbf16, #tpu.memory_space<vmem>>, vector<4x32xbf16>,
    %c28 = arith.constant 28 : index
    %c0_33 = arith.constant 0 : index
    %59 = tpu.strided_load %arg19[%c28, %c0_33] {strides = array<i32: 2, 1>} : memref<72x32xf32, #tpu.memory_space<vmem>>, vector<4x32xf32>
    %60 = arith.truncf %59 : vector<4x32xf32> to vector<4x32xbf16>
    %c11 = arith.constant 11 : index
    %c0_34 = arith.constant 0 : index
    %61 = vector.load %arg20[%c11, %c0_34] : memref<26x128xbf16, #tpu.memory_space<vmem>>, vector<4x32xbf16>
    tpu.vector_store %arg20[%c11, %c0_34], %60 {strides = array<i32>} : memref<26x128xbf16, #tpu.memory_space<vmem>>, vector<4x32xbf16>,
    %c46 = arith.constant 46 : index
    %c0_35 = arith.constant 0 : index
    %62 = tpu.strided_load %arg19[%c46, %c0_35] {strides = array<i32: 2, 1>} : memref<72x32xf32, #tpu.memory_space<vmem>>, vector<4x32xf32>
    %63 = arith.truncf %62 : vector<4x32xf32> to vector<4x32xbf16>
    %c16 = arith.constant 16 : index
    %c0_36 = arith.constant 0 : index
    %64 = vector.load %arg20[%c16, %c0_36] : memref<26x128xbf16, #tpu.memory_space<vmem>>, vector<4x32xbf16>
    tpu.vector_store %arg20[%c16, %c0_36], %63 {strides = array<i32>} : memref<26x128xbf16, #tpu.memory_space<vmem>>, vector<4x32xbf16>,
    %c64 = arith.constant 64 : index
    %c0_37 = arith.constant 0 : index
    %65 = tpu.strided_load %arg19[%c64, %c0_37] {strides = array<i32: 2, 1>} : memref<72x32xf32, #tpu.memory_space<vmem>>, vector<4x32xf32>
    %66 = arith.truncf %65 : vector<4x32xf32> to vector<4x32xbf16>
    %c21 = arith.constant 21 : index
    %c0_38 = arith.constant 0 : index
    %67 = vector.load %arg20[%c21, %c0_38] : memref<26x128xbf16, #tpu.memory_space<vmem>>, vector<4x32xbf16>
    tpu.vector_store %arg20[%c21, %c0_38], %66 {strides = array<i32>} : memref<26x128xbf16, #tpu.memory_space<vmem>>, vector<4x32xbf16>,
    %c9_39 = arith.constant 9 : index
    %c0_40 = arith.constant 0 : index
    %68 = tpu.strided_load %arg19[%c9_39, %c0_40] {strides = array<i32: 2, 1>} : memref<72x32xf32, #tpu.memory_space<vmem>>, vector<4x32xf32>
    %69 = arith.truncf %68 : vector<4x32xf32> to vector<4x32xbf16>
    %c5 = arith.constant 5 : index
    %c32 = arith.constant 32 : index
    %70 = vector.load %arg20[%c5, %c32] : memref<26x128xbf16, #tpu.memory_space<vmem>>, vector<4x32xbf16>
    tpu.vector_store %arg20[%c5, %c32], %69 {strides = array<i32>} : memref<26x128xbf16, #tpu.memory_space<vmem>>, vector<4x32xbf16>,
    %c27 = arith.constant 27 : index
    %c0_41 = arith.constant 0 : index
    %71 = tpu.strided_load %arg19[%c27, %c0_41] {strides = array<i32: 2, 1>} : memref<72x32xf32, #tpu.memory_space<vmem>>, vector<4x32xf32>
    %72 = arith.truncf %71 : vector<4x32xf32> to vector<4x32xbf16>
    %c10_42 = arith.constant 10 : index
    %c32_43 = arith.constant 32 : index
    %73 = vector.load %arg20[%c10_42, %c32_43] : memref<26x128xbf16, #tpu.memory_space<vmem>>, vector<4x32xbf16>
    tpu.vector_store %arg20[%c10_42, %c32_43], %72 {strides = array<i32>} : memref<26x128xbf16, #tpu.memory_space<vmem>>, vector<4x32xbf16>,
    %c45 = arith.constant 45 : index
    %c0_44 = arith.constant 0 : index
    %74 = tpu.strided_load %arg19[%c45, %c0_44] {strides = array<i32: 2, 1>} : memref<72x32xf32, #tpu.memory_space<vmem>>, vector<4x32xf32>
    %75 = arith.truncf %74 : vector<4x32xf32> to vector<4x32xbf16>
    %c15 = arith.constant 15 : index
    %c32_45 = arith.constant 32 : index
    %76 = vector.load %arg20[%c15, %c32_45] : memref<26x128xbf16, #tpu.memory_space<vmem>>, vector<4x32xbf16>
    tpu.vector_store %arg20[%c15, %c32_45], %75 {strides = array<i32>} : memref<26x128xbf16, #tpu.memory_space<vmem>>, vector<4x32xbf16>,
    %c63 = arith.constant 63 : index
    %c0_46 = arith.constant 0 : index
    %77 = tpu.strided_load %arg19[%c63, %c0_46] {strides = array<i32: 2, 1>} : memref<72x32xf32, #tpu.memory_space<vmem>>, vector<4x32xf32>
    %78 = arith.truncf %77 : vector<4x32xf32> to vector<4x32xbf16>
    %c20 = arith.constant 20 : index
    %c32_47 = arith.constant 32 : index
    %79 = vector.load %arg20[%c20, %c32_47] : memref<26x128xbf16, #tpu.memory_space<vmem>>, vector<4x32xbf16>
    tpu.vector_store %arg20[%c20, %c32_47], %78 {strides = array<i32>} : memref<26x128xbf16, #tpu.memory_space<vmem>>, vector<4x32xbf16>,
    %c1_48 = arith.constant 1 : index
    %c0_49 = arith.constant 0 : index
    %80 = tpu.strided_load %arg19[%c1_48, %c0_49] {strides = array<i32: 2, 1>} : memref<72x32xf32, #tpu.memory_space<vmem>>, vector<4x32xf32>
    %81 = arith.truncf %80 : vector<4x32xf32> to vector<4x32xbf16>
    %c1_50 = arith.constant 1 : index
    %c64_51 = arith.constant 64 : index
    %82 = vector.load %arg20[%c1_50, %c64_51] : memref<26x128xbf16, #tpu.memory_space<vmem>>, vector<4x32xbf16>
    tpu.vector_store %arg20[%c1_50, %c64_51], %81 {strides = array<i32>} : memref<26x128xbf16, #tpu.memory_space<vmem>>, vector<4x32xbf16>,
    %c19 = arith.constant 19 : index
    %c0_52 = arith.constant 0 : index
    %83 = tpu.strided_load %arg19[%c19, %c0_52] {strides = array<i32: 2, 1>} : memref<72x32xf32, #tpu.memory_space<vmem>>, vector<4x32xf32>
    %84 = arith.truncf %83 : vector<4x32xf32> to vector<4x32xbf16>
    %c6_53 = arith.constant 6 : index
    %c64_54 = arith.constant 64 : index
    %85 = vector.load %arg20[%c6_53, %c64_54] : memref<26x128xbf16, #tpu.memory_space<vmem>>, vector<4x32xbf16>
    tpu.vector_store %arg20[%c6_53, %c64_54], %84 {strides = array<i32>} : memref<26x128xbf16, #tpu.memory_space<vmem>>, vector<4x32xbf16>,
    %c37 = arith.constant 37 : index
    %c0_55 = arith.constant 0 : index
    %86 = tpu.strided_load %arg19[%c37, %c0_55] {strides = array<i32: 2, 1>} : memref<72x32xf32, #tpu.memory_space<vmem>>, vector<4x32xf32>
    %87 = arith.truncf %86 : vector<4x32xf32> to vector<4x32xbf16>
    %c11_56 = arith.constant 11 : index
    %c64_57 = arith.constant 64 : index
    %88 = vector.load %arg20[%c11_56, %c64_57] : memref<26x128xbf16, #tpu.memory_space<vmem>>, vector<4x32xbf16>
    tpu.vector_store %arg20[%c11_56, %c64_57], %87 {strides = array<i32>} : memref<26x128xbf16, #tpu.memory_space<vmem>>, vector<4x32xbf16>,
    %c55 = arith.constant 55 : index
    %c0_58 = arith.constant 0 : index
    %89 = tpu.strided_load %arg19[%c55, %c0_58] {strides = array<i32: 2, 1>} : memref<72x32xf32, #tpu.memory_space<vmem>>, vector<4x32xf32>
    %90 = arith.truncf %89 : vector<4x32xf32> to vector<4x32xbf16>
    %c16_59 = arith.constant 16 : index
    %c64_60 = arith.constant 64 : index
    %91 = vector.load %arg20[%c16_59, %c64_60] : memref<26x128xbf16, #tpu.memory_space<vmem>>, vector<4x32xbf16>
    tpu.vector_store %arg20[%c16_59, %c64_60], %90 {strides = array<i32>} : memref<26x128xbf16, #tpu.memory_space<vmem>>, vector<4x32xbf16>,
    %c0_61 = arith.constant 0 : index
    %c0_62 = arith.constant 0 : index
    %92 = tpu.strided_load %arg19[%c0_61, %c0_62] {strides = array<i32: 2, 1>} : memref<72x32xf32, #tpu.memory_space<vmem>>, vector<4x32xf32>
    %93 = arith.truncf %92 : vector<4x32xf32> to vector<4x32xbf16>
    %c0_63 = arith.constant 0 : index
    %c96 = arith.constant 96 : index
    %94 = vector.load %arg20[%c0_63, %c96] : memref<26x128xbf16, #tpu.memory_space<vmem>>, vector<4x32xbf16>
    tpu.vector_store %arg20[%c0_63, %c96], %93 {strides = array<i32>} : memref<26x128xbf16, #tpu.memory_space<vmem>>, vector<4x32xbf16>,
    %c18 = arith.constant 18 : index
    %c0_64 = arith.constant 0 : index
    %95 = tpu.strided_load %arg19[%c18, %c0_64] {strides = array<i32: 2, 1>} : memref<72x32xf32, #tpu.memory_space<vmem>>, vector<4x32xf32>
    %96 = arith.truncf %95 : vector<4x32xf32> to vector<4x32xbf16>
    %c5_65 = arith.constant 5 : index
    %c96_66 = arith.constant 96 : index
    %97 = vector.load %arg20[%c5_65, %c96_66] : memref<26x128xbf16, #tpu.memory_space<vmem>>, vector<4x32xbf16>
    tpu.vector_store %arg20[%c5_65, %c96_66], %96 {strides = array<i32>} : memref<26x128xbf16, #tpu.memory_space<vmem>>, vector<4x32xbf16>,
    %c36 = arith.constant 36 : index
    %c0_67 = arith.constant 0 : index
    %98 = tpu.strided_load %arg19[%c36, %c0_67] {strides = array<i32: 2, 1>} : memref<72x32xf32, #tpu.memory_space<vmem>>, vector<4x32xf32>
    %99 = arith.truncf %98 : vector<4x32xf32> to vector<4x32xbf16>
    %c10_68 = arith.constant 10 : index
    %c96_69 = arith.constant 96 : index
    %100 = vector.load %arg20[%c10_68, %c96_69] : memref<26x128xbf16, #tpu.memory_space<vmem>>, vector<4x32xbf16>
    tpu.vector_store %arg20[%c10_68, %c96_69], %99 {strides = array<i32>} : memref<26x128xbf16, #tpu.memory_space<vmem>>, vector<4x32xbf16>,
    %c54 = arith.constant 54 : index
    %c0_70 = arith.constant 0 : index
    %101 = tpu.strided_load %arg19[%c54, %c0_70] {strides = array<i32: 2, 1>} : memref<72x32xf32, #tpu.memory_space<vmem>>, vector<4x32xf32>
    %102 = arith.truncf %101 : vector<4x32xf32> to vector<4x32xbf16>
    %c15_71 = arith.constant 15 : index
    %c96_72 = arith.constant 96 : index
    %103 = vector.load %arg20[%c15_71, %c96_72] : memref<26x128xbf16, #tpu.memory_space<vmem>>, vector<4x32xbf16>
    tpu.vector_store %arg20[%c15_71, %c96_72], %102 {strides = array<i32>} : memref<26x128xbf16, #tpu.memory_space<vmem>>, vector<4x32xbf16>,
    %c0_73 = arith.constant 0 : index
    %c0_74 = arith.constant 0 : index
    %104 = vector.load %arg6[%c0_73, %c0_74] : memref<512x64xbf16, #tpu.memory_space<vmem>>, vector<512x64xbf16>
    %c0_75 = arith.constant 0 : index
    %c0_76 = arith.constant 0 : index
    %105 = vector.load %arg20[%c0_75, %c0_76] : memref<26x128xbf16, #tpu.memory_space<vmem>>, vector<20x128xbf16>
    %106 = vector.extract_strided_slice %104 {offsets = [0, 0], sizes = [128, 64], strides = [1, 1]} : vector<512x64xbf16> to vector<128x64xbf16>
    %cst_77 = arith.constant dense<0.000000e+00> : vector<20x64xf32>
    %107 = tpu.matmul %105, %106, %cst_77 {dimension_numbers = #tpu.dot_dimension_numbers<[1], [0], [0], [1], [0, 0, 1, 1], [], []>} : vector<20x128xbf16>, vector<128x64xbf16>, vector<20x64xf32> -> vector<20x64xf32>
    %c1_78 = arith.constant 1 : index
    %c0_79 = arith.constant 0 : index
    %108 = vector.load %arg20[%c1_78, %c0_79] : memref<26x128xbf16, #tpu.memory_space<vmem>>, vector<20x128xbf16>
    %109 = vector.extract_strided_slice %104 {offsets = [128, 0], sizes = [128, 64], strides = [1, 1]} : vector<512x64xbf16> to vector<128x64xbf16>
    %cst_80 = arith.constant dense<0.000000e+00> : vector<20x64xf32>
    %110 = tpu.matmul %108, %109, %cst_80 {dimension_numbers = #tpu.dot_dimension_numbers<[1], [0], [0], [1], [0, 0, 1, 1], [], []>} : vector<20x128xbf16>, vector<128x64xbf16>, vector<20x64xf32> -> vector<20x64xf32>
    %111 = arith.addf %107, %110 : vector<20x64xf32>
    %c5_81 = arith.constant 5 : index
    %c0_82 = arith.constant 0 : index
    %112 = vector.load %arg20[%c5_81, %c0_82] : memref<26x128xbf16, #tpu.memory_space<vmem>>, vector<20x128xbf16>
    %113 = vector.extract_strided_slice %104 {offsets = [256, 0], sizes = [128, 64], strides = [1, 1]} : vector<512x64xbf16> to vector<128x64xbf16>
    %cst_83 = arith.constant dense<0.000000e+00> : vector<20x64xf32>
    %114 = tpu.matmul %112, %113, %cst_83 {dimension_numbers = #tpu.dot_dimension_numbers<[1], [0], [0], [1], [0, 0, 1, 1], [], []>} : vector<20x128xbf16>, vector<128x64xbf16>, vector<20x64xf32> -> vector<20x64xf32>
    %115 = arith.addf %111, %114 : vector<20x64xf32>
    %c6_84 = arith.constant 6 : index
    %c0_85 = arith.constant 0 : index
    %116 = vector.load %arg20[%c6_84, %c0_85] : memref<26x128xbf16, #tpu.memory_space<vmem>>, vector<20x128xbf16>
    %117 = vector.extract_strided_slice %104 {offsets = [384, 0], sizes = [128, 64], strides = [1, 1]} : vector<512x64xbf16> to vector<128x64xbf16>
    %cst_86 = arith.constant dense<0.000000e+00> : vector<20x64xf32>
    %118 = tpu.matmul %116, %117, %cst_86 {dimension_numbers = #tpu.dot_dimension_numbers<[1], [0], [0], [1], [0, 0, 1, 1], [], []>} : vector<20x128xbf16>, vector<128x64xbf16>, vector<20x64xf32> -> vector<20x64xf32>
    %119 = arith.addf %115, %118 : vector<20x64xf32>
    %c0_87 = arith.constant 0 : index
    %c0_88 = arith.constant 0 : index
    %120 = vector.load %arg7[%c0_87, %c0_88] : memref<1x64xf32, #tpu.memory_space<vmem>>, vector<1x64xf32>
    %121 = vector.broadcast %120 : vector<1x64xf32> to vector<20x64xf32>
    %122 = arith.addf %119, %121 : vector<20x64xf32>
    %cst_89 = arith.constant dense<0.000000e+00> : vector<20xf32>
    %123 = vector.multi_reduction <add>, %122, %cst_89 [1] : vector<20x64xf32> to vector<20xf32>
    %124 = vector.shape_cast %123 : vector<20xf32> to vector<20x1xf32>
    %cst_90 = arith.constant 6.400000e+01 : f32
    %125 = vector.broadcast %cst_90 : f32 to vector<20x1xf32>
    %126 = arith.divf %124, %125 : vector<20x1xf32>
    %127 = vector.broadcast %126 : vector<20x1xf32> to vector<20x64xf32>
    %128 = arith.subf %122, %127 : vector<20x64xf32>
    %129 = arith.mulf %128, %128 : vector<20x64xf32>
    %cst_91 = arith.constant dense<0.000000e+00> : vector<20xf32>
    %130 = vector.multi_reduction <add>, %129, %cst_91 [1] : vector<20x64xf32> to vector<20xf32>
    %131 = vector.shape_cast %130 : vector<20xf32> to vector<20x1xf32>
    %cst_92 = arith.constant 6.400000e+01 : f32
    %132 = vector.broadcast %cst_92 : f32 to vector<20x1xf32>
    %133 = arith.divf %131, %132 : vector<20x1xf32>
    %134 = vector.broadcast %126 : vector<20x1xf32> to vector<20x64xf32>
    %135 = arith.subf %122, %134 : vector<20x64xf32>
    %cst_93 = arith.constant 9.99999974E-6 : f32
    %136 = vector.broadcast %cst_93 : f32 to vector<20x1xf32>
    %137 = arith.addf %133, %136 : vector<20x1xf32>
    %138 = math.rsqrt %137 : vector<20x1xf32>
    %139 = vector.broadcast %138 : vector<20x1xf32> to vector<20x64xf32>
    %140 = arith.mulf %135, %139 : vector<20x64xf32>
    %c0_94 = arith.constant 0 : index
    %c0_95 = arith.constant 0 : index
    %141 = vector.load %arg8[%c0_94, %c0_95] : memref<1x64xf32, #tpu.memory_space<vmem>>, vector<1x64xf32>
    %142 = vector.broadcast %141 : vector<1x64xf32> to vector<20x64xf32>
    %143 = arith.mulf %140, %142 : vector<20x64xf32>
    %c0_96 = arith.constant 0 : index
    %c0_97 = arith.constant 0 : index
    %144 = vector.load %arg9[%c0_96, %c0_97] : memref<1x64xf32, #tpu.memory_space<vmem>>, vector<1x64xf32>
    %145 = vector.broadcast %144 : vector<1x64xf32> to vector<20x64xf32>
    %146 = arith.addf %143, %145 : vector<20x64xf32>
    %147 = arith.negf %146 : vector<20x64xf32>
    %148 = math.exp %147 : vector<20x64xf32>
    %cst_98 = arith.constant 1.000000e+00 : f32
    %149 = vector.broadcast %cst_98 : f32 to vector<20x64xf32>
    %150 = arith.addf %149, %148 : vector<20x64xf32>
    %151 = arith.divf %149, %150 : vector<20x64xf32>
    %152 = arith.mulf %146, %151 : vector<20x64xf32>
    %c0_99 = arith.constant 0 : index
    %c0_100 = arith.constant 0 : index
    %153 = vector.load %arg21[%c0_99, %c0_100] : memref<20x64xf32, #tpu.memory_space<vmem>>, vector<20x64xf32>
    tpu.vector_store %arg21[%c0_99, %c0_100], %152 {strides = array<i32>} : memref<20x64xf32, #tpu.memory_space<vmem>>, vector<20x64xf32>,
    %cst_101 = arith.constant 0.000000e+00 : bf16
    %154 = vector.broadcast %cst_101 : bf16 to vector<10x256xbf16>
    %c0_102 = arith.constant 0 : index
    %c0_103 = arith.constant 0 : index
    %155 = vector.load %arg22[%c0_102, %c0_103] : memref<10x256xbf16, #tpu.memory_space<vmem>>, vector<10x256xbf16>
    tpu.vector_store %arg22[%c0_102, %c0_103], %154 {strides = array<i32>} : memref<10x256xbf16, #tpu.memory_space<vmem>>, vector<10x256xbf16>,
    %c6_104 = arith.constant 6 : index
    %c0_105 = arith.constant 0 : index
    %156 = tpu.strided_load %arg21[%c6_104, %c0_105] {strides = array<i32: 2, 1>} : memref<20x64xf32, #tpu.memory_space<vmem>>, vector<2x64xf32>
    %157 = arith.truncf %156 : vector<2x64xf32> to vector<2x64xbf16>
    %c4 = arith.constant 4 : index
    %c0_106 = arith.constant 0 : index
    %158 = vector.load %arg22[%c4, %c0_106] : memref<10x256xbf16, #tpu.memory_space<vmem>>, vector<2x64xbf16>
    tpu.vector_store %arg22[%c4, %c0_106], %157 {strides = array<i32>} : memref<10x256xbf16, #tpu.memory_space<vmem>>, vector<2x64xbf16>,
    %c16_107 = arith.constant 16 : index
    %c0_108 = arith.constant 0 : index
    %159 = tpu.strided_load %arg21[%c16_107, %c0_108] {strides = array<i32: 2, 1>} : memref<20x64xf32, #tpu.memory_space<vmem>>, vector<2x64xf32>
    %160 = arith.truncf %159 : vector<2x64xf32> to vector<2x64xbf16>
    %c7 = arith.constant 7 : index
    %c0_109 = arith.constant 0 : index
    %161 = vector.load %arg22[%c7, %c0_109] : memref<10x256xbf16, #tpu.memory_space<vmem>>, vector<2x64xbf16>
    tpu.vector_store %arg22[%c7, %c0_109], %160 {strides = array<i32>} : memref<10x256xbf16, #tpu.memory_space<vmem>>, vector<2x64xbf16>,
    %c5_110 = arith.constant 5 : index
    %c0_111 = arith.constant 0 : index
    %162 = tpu.strided_load %arg21[%c5_110, %c0_111] {strides = array<i32: 2, 1>} : memref<20x64xf32, #tpu.memory_space<vmem>>, vector<2x64xf32>
    %163 = arith.truncf %162 : vector<2x64xf32> to vector<2x64xbf16>
    %c3 = arith.constant 3 : index
    %c64_112 = arith.constant 64 : index
    %164 = vector.load %arg22[%c3, %c64_112] : memref<10x256xbf16, #tpu.memory_space<vmem>>, vector<2x64xbf16>
    tpu.vector_store %arg22[%c3, %c64_112], %163 {strides = array<i32>} : memref<10x256xbf16, #tpu.memory_space<vmem>>, vector<2x64xbf16>,
    %c15_113 = arith.constant 15 : index
    %c0_114 = arith.constant 0 : index
    %165 = tpu.strided_load %arg21[%c15_113, %c0_114] {strides = array<i32: 2, 1>} : memref<20x64xf32, #tpu.memory_space<vmem>>, vector<2x64xf32>
    %166 = arith.truncf %165 : vector<2x64xf32> to vector<2x64xbf16>
    %c6_115 = arith.constant 6 : index
    %c64_116 = arith.constant 64 : index
    %167 = vector.load %arg22[%c6_115, %c64_116] : memref<10x256xbf16, #tpu.memory_space<vmem>>, vector<2x64xbf16>
    tpu.vector_store %arg22[%c6_115, %c64_116], %166 {strides = array<i32>} : memref<10x256xbf16, #tpu.memory_space<vmem>>, vector<2x64xbf16>,
    %c1_117 = arith.constant 1 : index
    %c0_118 = arith.constant 0 : index
    %168 = tpu.strided_load %arg21[%c1_117, %c0_118] {strides = array<i32: 2, 1>} : memref<20x64xf32, #tpu.memory_space<vmem>>, vector<2x64xf32>
    %169 = arith.truncf %168 : vector<2x64xf32> to vector<2x64xbf16>
    %c1_119 = arith.constant 1 : index
    %c128 = arith.constant 128 : index
    %170 = vector.load %arg22[%c1_119, %c128] : memref<10x256xbf16, #tpu.memory_space<vmem>>, vector<2x64xbf16>
    tpu.vector_store %arg22[%c1_119, %c128], %169 {strides = array<i32>} : memref<10x256xbf16, #tpu.memory_space<vmem>>, vector<2x64xbf16>,
    %c11_120 = arith.constant 11 : index
    %c0_121 = arith.constant 0 : index
    %171 = tpu.strided_load %arg21[%c11_120, %c0_121] {strides = array<i32: 2, 1>} : memref<20x64xf32, #tpu.memory_space<vmem>>, vector<2x64xf32>
    %172 = arith.truncf %171 : vector<2x64xf32> to vector<2x64xbf16>
    %c4_122 = arith.constant 4 : index
    %c128_123 = arith.constant 128 : index
    %173 = vector.load %arg22[%c4_122, %c128_123] : memref<10x256xbf16, #tpu.memory_space<vmem>>, vector<2x64xbf16>
    tpu.vector_store %arg22[%c4_122, %c128_123], %172 {strides = array<i32>} : memref<10x256xbf16, #tpu.memory_space<vmem>>, vector<2x64xbf16>,
    %c0_124 = arith.constant 0 : index
    %c0_125 = arith.constant 0 : index
    %174 = tpu.strided_load %arg21[%c0_124, %c0_125] {strides = array<i32: 2, 1>} : memref<20x64xf32, #tpu.memory_space<vmem>>, vector<2x64xf32>
    %175 = arith.truncf %174 : vector<2x64xf32> to vector<2x64xbf16>
    %c0_126 = arith.constant 0 : index
    %c192 = arith.constant 192 : index
    %176 = vector.load %arg22[%c0_126, %c192] : memref<10x256xbf16, #tpu.memory_space<vmem>>, vector<2x64xbf16>
    tpu.vector_store %arg22[%c0_126, %c192], %175 {strides = array<i32>} : memref<10x256xbf16, #tpu.memory_space<vmem>>, vector<2x64xbf16>,
    %c10_127 = arith.constant 10 : index
    %c0_128 = arith.constant 0 : index
    %177 = tpu.strided_load %arg21[%c10_127, %c0_128] {strides = array<i32: 2, 1>} : memref<20x64xf32, #tpu.memory_space<vmem>>, vector<2x64xf32>
    %178 = arith.truncf %177 : vector<2x64xf32> to vector<2x64xbf16>
    %c3_129 = arith.constant 3 : index
    %c192_130 = arith.constant 192 : index
    %179 = vector.load %arg22[%c3_129, %c192_130] : memref<10x256xbf16, #tpu.memory_space<vmem>>, vector<2x64xbf16>
    tpu.vector_store %arg22[%c3_129, %c192_130], %178 {strides = array<i32>} : memref<10x256xbf16, #tpu.memory_space<vmem>>, vector<2x64xbf16>,
    %c0_131 = arith.constant 0 : index
    %c0_132 = arith.constant 0 : index
    %180 = vector.load %arg10[%c0_131, %c0_132] : memref<1024x16xbf16, #tpu.memory_space<vmem>>, vector<1024x16xbf16>
    %c0_133 = arith.constant 0 : index
    %c0_134 = arith.constant 0 : index
    %181 = vector.load %arg22[%c0_133, %c0_134] : memref<10x256xbf16, #tpu.memory_space<vmem>>, vector<6x256xbf16>
    %182 = vector.extract_strided_slice %180 {offsets = [0, 0], sizes = [256, 16], strides = [1, 1]} : vector<1024x16xbf16> to vector<256x16xbf16>
    %cst_135 = arith.constant dense<0.000000e+00> : vector<6x16xf32>
    %183 = tpu.matmul %181, %182, %cst_135 {dimension_numbers = #tpu.dot_dimension_numbers<[1], [0], [0], [1], [0, 0, 1, 1], [], []>} : vector<6x256xbf16>, vector<256x16xbf16>, vector<6x16xf32> -> vector<6x16xf32>
    %c1_136 = arith.constant 1 : index
    %c0_137 = arith.constant 0 : index
    %184 = vector.load %arg22[%c1_136, %c0_137] : memref<10x256xbf16, #tpu.memory_space<vmem>>, vector<6x256xbf16>
    %185 = vector.extract_strided_slice %180 {offsets = [256, 0], sizes = [256, 16], strides = [1, 1]} : vector<1024x16xbf16> to vector<256x16xbf16>
    %cst_138 = arith.constant dense<0.000000e+00> : vector<6x16xf32>
    %186 = tpu.matmul %184, %185, %cst_138 {dimension_numbers = #tpu.dot_dimension_numbers<[1], [0], [0], [1], [0, 0, 1, 1], [], []>} : vector<6x256xbf16>, vector<256x16xbf16>, vector<6x16xf32> -> vector<6x16xf32>
    %187 = arith.addf %183, %186 : vector<6x16xf32>
    %c3_139 = arith.constant 3 : index
    %c0_140 = arith.constant 0 : index
    %188 = vector.load %arg22[%c3_139, %c0_140] : memref<10x256xbf16, #tpu.memory_space<vmem>>, vector<6x256xbf16>
    %189 = vector.extract_strided_slice %180 {offsets = [512, 0], sizes = [256, 16], strides = [1, 1]} : vector<1024x16xbf16> to vector<256x16xbf16>
    %cst_141 = arith.constant dense<0.000000e+00> : vector<6x16xf32>
    %190 = tpu.matmul %188, %189, %cst_141 {dimension_numbers = #tpu.dot_dimension_numbers<[1], [0], [0], [1], [0, 0, 1, 1], [], []>} : vector<6x256xbf16>, vector<256x16xbf16>, vector<6x16xf32> -> vector<6x16xf32>
    %191 = arith.addf %187, %190 : vector<6x16xf32>
    %c4_142 = arith.constant 4 : index
    %c0_143 = arith.constant 0 : index
    %192 = vector.load %arg22[%c4_142, %c0_143] : memref<10x256xbf16, #tpu.memory_space<vmem>>, vector<6x256xbf16>
    %193 = vector.extract_strided_slice %180 {offsets = [768, 0], sizes = [256, 16], strides = [1, 1]} : vector<1024x16xbf16> to vector<256x16xbf16>
    %cst_144 = arith.constant dense<0.000000e+00> : vector<6x16xf32>
    %194 = tpu.matmul %192, %193, %cst_144 {dimension_numbers = #tpu.dot_dimension_numbers<[1], [0], [0], [1], [0, 0, 1, 1], [], []>} : vector<6x256xbf16>, vector<256x16xbf16>, vector<6x16xf32> -> vector<6x16xf32>
    %195 = arith.addf %191, %194 : vector<6x16xf32>
    %c0_145 = arith.constant 0 : index
    %c0_146 = arith.constant 0 : index
    %196 = vector.load %arg11[%c0_145, %c0_146] : memref<1x16xf32, #tpu.memory_space<vmem>>, vector<1x16xf32>
    %197 = vector.broadcast %196 : vector<1x16xf32> to vector<6x16xf32>
    %198 = arith.addf %195, %197 : vector<6x16xf32>
    %cst_147 = arith.constant dense<0.000000e+00> : vector<6xf32>
    %199 = vector.multi_reduction <add>, %198, %cst_147 [1] : vector<6x16xf32> to vector<6xf32>
    %200 = vector.shape_cast %199 : vector<6xf32> to vector<6x1xf32>
    %cst_148 = arith.constant 1.600000e+01 : f32
    %201 = vector.broadcast %cst_148 : f32 to vector<6x1xf32>
    %202 = arith.divf %200, %201 : vector<6x1xf32>
    %203 = vector.broadcast %202 : vector<6x1xf32> to vector<6x16xf32>
    %204 = arith.subf %198, %203 : vector<6x16xf32>
    %205 = arith.mulf %204, %204 : vector<6x16xf32>
    %cst_149 = arith.constant dense<0.000000e+00> : vector<6xf32>
    %206 = vector.multi_reduction <add>, %205, %cst_149 [1] : vector<6x16xf32> to vector<6xf32>
    %207 = vector.shape_cast %206 : vector<6xf32> to vector<6x1xf32>
    %cst_150 = arith.constant 1.600000e+01 : f32
    %208 = vector.broadcast %cst_150 : f32 to vector<6x1xf32>
    %209 = arith.divf %207, %208 : vector<6x1xf32>
    %210 = vector.broadcast %202 : vector<6x1xf32> to vector<6x16xf32>
    %211 = arith.subf %198, %210 : vector<6x16xf32>
    %cst_151 = arith.constant 9.99999974E-6 : f32
    %212 = vector.broadcast %cst_151 : f32 to vector<6x1xf32>
    %213 = arith.addf %209, %212 : vector<6x1xf32>
    %214 = math.rsqrt %213 : vector<6x1xf32>
    %215 = vector.broadcast %214 : vector<6x1xf32> to vector<6x16xf32>
    %216 = arith.mulf %211, %215 : vector<6x16xf32>
    %c0_152 = arith.constant 0 : index
    %c0_153 = arith.constant 0 : index
    %217 = vector.load %arg12[%c0_152, %c0_153] : memref<1x16xf32, #tpu.memory_space<vmem>>, vector<1x16xf32>
    %218 = vector.broadcast %217 : vector<1x16xf32> to vector<6x16xf32>
    %219 = arith.mulf %216, %218 : vector<6x16xf32>
    %c0_154 = arith.constant 0 : index
    %c0_155 = arith.constant 0 : index
    %220 = vector.load %arg13[%c0_154, %c0_155] : memref<1x16xf32, #tpu.memory_space<vmem>>, vector<1x16xf32>
    %221 = vector.broadcast %220 : vector<1x16xf32> to vector<6x16xf32>
    %222 = arith.addf %219, %221 : vector<6x16xf32>
    %223 = arith.negf %222 : vector<6x16xf32>
    %224 = math.exp %223 : vector<6x16xf32>
    %cst_156 = arith.constant 1.000000e+00 : f32
    %225 = vector.broadcast %cst_156 : f32 to vector<6x16xf32>
    %226 = arith.addf %225, %224 : vector<6x16xf32>
    %227 = arith.divf %225, %226 : vector<6x16xf32>
    %228 = arith.mulf %222, %227 : vector<6x16xf32>
    %229 = vector.extract_strided_slice %228 {offsets = [0, 0], sizes = [1, 16], strides = [1, 1]} : vector<6x16xf32> to vector<1x16xf32>
    %230 = vector.extract_strided_slice %228 {offsets = [1, 0], sizes = [1, 16], strides = [1, 1]} : vector<6x16xf32> to vector<1x16xf32>
    %231 = vector.extract_strided_slice %228 {offsets = [3, 0], sizes = [1, 16], strides = [1, 1]} : vector<6x16xf32> to vector<1x16xf32>
    %232 = vector.extract_strided_slice %228 {offsets = [4, 0], sizes = [1, 16], strides = [1, 1]} : vector<6x16xf32> to vector<1x16xf32>
    %233 = tpu.concatenate %229, %230, %231, %232 in 1 : vector<1x16xf32>, vector<1x16xf32>, vector<1x16xf32>, vector<1x16xf32> -> vector<1x64xf32>
    %234 = arith.truncf %233 : vector<1x64xf32> to vector<1x64xbf16>
    %c0_157 = arith.constant 0 : index
    %c0_158 = arith.constant 0 : index
    %235 = vector.load %arg14[%c0_157, %c0_158] : memref<64x256xbf16, #tpu.memory_space<vmem>>, vector<64x256xbf16>
    %cst_159 = arith.constant dense<0.000000e+00> : vector<1x256xf32>
    %236 = tpu.matmul %234, %235, %cst_159 {dimension_numbers = #tpu.dot_dimension_numbers<[1], [0], [0], [1], [0, 0, 1, 1], [], []>} : vector<1x64xbf16>, vector<64x256xbf16>, vector<1x256xf32> -> vector<1x256xf32>
    %c0_160 = arith.constant 0 : index
    %c0_161 = arith.constant 0 : index
    %237 = vector.load %arg15[%c0_160, %c0_161] : memref<1x256xf32, #tpu.memory_space<vmem>>, vector<1x256xf32>
    %238 = arith.addf %236, %237 : vector<1x256xf32>
    %239 = arith.negf %238 : vector<1x256xf32>
    %240 = math.exp %239 : vector<1x256xf32>
    %cst_162 = arith.constant 1.000000e+00 : f32
    %241 = vector.broadcast %cst_162 : f32 to vector<1x256xf32>
    %242 = arith.addf %241, %240 : vector<1x256xf32>
    %243 = arith.divf %241, %242 : vector<1x256xf32>
    %244 = arith.mulf %238, %243 : vector<1x256xf32>
    %245 = arith.truncf %244 : vector<1x256xf32> to vector<1x256xbf16>
    %c0_163 = arith.constant 0 : index
    %c0_164 = arith.constant 0 : index
    %246 = vector.load %arg16[%c0_163, %c0_164] : memref<256x16xbf16, #tpu.memory_space<vmem>>, vector<256x16xbf16>
    %cst_165 = arith.constant dense<0.000000e+00> : vector<1x16xf32>
    %247 = tpu.matmul %245, %246, %cst_165 {dimension_numbers = #tpu.dot_dimension_numbers<[1], [0], [0], [1], [0, 0, 1, 1], [], []>} : vector<1x256xbf16>, vector<256x16xbf16>, vector<1x16xf32> -> vector<1x16xf32>
    %c0_166 = arith.constant 0 : index
    %c0_167 = arith.constant 0 : index
    %248 = vector.load %arg17[%c0_166, %c0_167] : memref<1x16xf32, #tpu.memory_space<vmem>>, vector<1x16xf32>
    %249 = arith.addf %247, %248 : vector<1x16xf32>
    %cst_168 = arith.constant 0.000000e+00 : f32
    %250 = vector.broadcast %cst_168 : f32 to vector<1x112xf32>
    %251 = tpu.concatenate %249, %250 in 1 : vector<1x16xf32>, vector<1x112xf32> -> vector<1x128xf32>
    %c0_169 = arith.constant 0 : index
    %c0_170 = arith.constant 0 : index
    %c0_171 = arith.constant 0 : index
    %252 = vector.load %arg18[%c0_169, %c0_170, %c0_171] : memref<1x1x128xf32, #tpu.memory_space<vmem>>, vector<1x1x128xf32>
    %253 = vector.shape_cast %252 : vector<1x1x128xf32> to vector<1x128xf32>
    %254 = vector.shape_cast %251 : vector<1x128xf32> to vector<1x1x128xf32>
    tpu.vector_store %arg18[%c0_169, %c0_170, %c0_171], %254 {strides = array<i32>} : memref<1x1x128xf32, #tpu.memory_space<vmem>>, vector<1x1x128xf32>,
    return
  }
  func.func @transform_0(%arg0: i32) -> (i32, i32, i32) {
    %c0_i32 = arith.constant 0 : i32
    %c0_i32_0 = arith.constant 0 : i32
    %c0_i32_1 = arith.constant 0 : i32
    return %arg0, %c0_i32, %c0_i32_0 : i32, i32, i32
  }
  func.func @transform_1(%arg0: i32) -> (i32, i32) {
    %c0_i32 = arith.constant 0 : i32
    %c0_i32_0 = arith.constant 0 : i32
    %c0_i32_1 = arith.constant 0 : i32
    return %c0_i32, %c0_i32_0 : i32, i32
  }
  func.func @transform_2(%arg0: i32) -> (i32, i32) {
    %c0_i32 = arith.constant 0 : i32
    %c0_i32_0 = arith.constant 0 : i32
    %c0_i32_1 = arith.constant 0 : i32
    return %c0_i32, %c0_i32_0 : i32, i32
  }
  func.func @transform_3(%arg0: i32) -> (i32, i32) {
    %c0_i32 = arith.constant 0 : i32
    %c0_i32_0 = arith.constant 0 : i32
    %c0_i32_1 = arith.constant 0 : i32
    return %c0_i32, %c0_i32_0 : i32, i32
  }
  func.func @transform_4(%arg0: i32) -> (i32, i32) {
    %c0_i32 = arith.constant 0 : i32
    %c0_i32_0 = arith.constant 0 : i32
    %c0_i32_1 = arith.constant 0 : i32
    return %c0_i32, %c0_i32_0 : i32, i32
  }
  func.func @transform_5(%arg0: i32) -> (i32, i32) {
    %c0_i32 = arith.constant 0 : i32
    %c0_i32_0 = arith.constant 0 : i32
    %c0_i32_1 = arith.constant 0 : i32
    return %c0_i32, %c0_i32_0 : i32, i32
  }
  func.func @transform_6(%arg0: i32) -> (i32, i32) {
    %c0_i32 = arith.constant 0 : i32
    %c0_i32_0 = arith.constant 0 : i32
    %c0_i32_1 = arith.constant 0 : i32
    return %c0_i32, %c0_i32_0 : i32, i32
  }
  func.func @transform_7(%arg0: i32) -> (i32, i32) {
    %c0_i32 = arith.constant 0 : i32
    %c0_i32_0 = arith.constant 0 : i32
    %c0_i32_1 = arith.constant 0 : i32
    return %c0_i32, %c0_i32_0 : i32, i32
  }
  func.func @transform_8(%arg0: i32) -> (i32, i32) {
    %c0_i32 = arith.constant 0 : i32
    %c0_i32_0 = arith.constant 0 : i32
    %c0_i32_1 = arith.constant 0 : i32
    return %c0_i32, %c0_i32_0 : i32, i32
  }
  func.func @transform_9(%arg0: i32) -> (i32, i32) {
    %c0_i32 = arith.constant 0 : i32
    %c0_i32_0 = arith.constant 0 : i32
    %c0_i32_1 = arith.constant 0 : i32
    return %c0_i32, %c0_i32_0 : i32, i32
  }
  func.func @transform_10(%arg0: i32) -> (i32, i32) {
    %c0_i32 = arith.constant 0 : i32
    %c0_i32_0 = arith.constant 0 : i32
    %c0_i32_1 = arith.constant 0 : i32
    return %c0_i32, %c0_i32_0 : i32, i32
  }
  func.func @transform_11(%arg0: i32) -> (i32, i32) {
    %c0_i32 = arith.constant 0 : i32
    %c0_i32_0 = arith.constant 0 : i32
    %c0_i32_1 = arith.constant 0 : i32
    return %c0_i32, %c0_i32_0 : i32, i32
  }
  func.func @transform_12(%arg0: i32) -> (i32, i32) {
    %c0_i32 = arith.constant 0 : i32
    %c0_i32_0 = arith.constant 0 : i32
    %c0_i32_1 = arith.constant 0 : i32
    return %c0_i32, %c0_i32_0 : i32, i32
  }
  func.func @transform_13(%arg0: i32) -> (i32, i32) {
    %c0_i32 = arith.constant 0 : i32
    %c0_i32_0 = arith.constant 0 : i32
    %c0_i32_1 = arith.constant 0 : i32
    return %c0_i32, %c0_i32_0 : i32, i32
  }
  func.func @transform_14(%arg0: i32) -> (i32, i32) {
    %c0_i32 = arith.constant 0 : i32
    %c0_i32_0 = arith.constant 0 : i32
    %c0_i32_1 = arith.constant 0 : i32
    return %c0_i32, %c0_i32_0 : i32, i32
  }
  func.func @transform_15(%arg0: i32) -> (i32, i32) {
    %c0_i32 = arith.constant 0 : i32
    %c0_i32_0 = arith.constant 0 : i32
    %c0_i32_1 = arith.constant 0 : i32
    return %c0_i32, %c0_i32_0 : i32, i32
  }
  func.func @transform_16(%arg0: i32) -> (i32, i32) {
    %c0_i32 = arith.constant 0 : i32
    %c0_i32_0 = arith.constant 0 : i32
    %c0_i32_1 = arith.constant 0 : i32
    return %c0_i32, %c0_i32_0 : i32, i32
  }
  func.func @transform_17(%arg0: i32) -> (i32, i32, i32) {
    %c0_i32 = arith.constant 0 : i32
    %c0_i32_0 = arith.constant 0 : i32
    %c0_i32_1 = arith.constant 0 : i32
    return %arg0, %c0_i32, %c0_i32_0 : i32, i32, i32
  }
}

</mosaic_0001>

<llo_original>
// kernel: encoder_forward.1
$region0: #{encoder_forward.1}
  #allocation0 [shape = 'u32[]', space=smem, size = 0x4, offset = 0x4, fixed_abs, tag = 'smem constant byte address 0x4 - core index']
  #allocation1 [shape = 'u32[144,128]{1,0:T(1,128)}', space=vmem, size = 0x12000, scoped, tag = 'internal scratch']
  #allocation2 [shape = 'f32[72,32]{1,0:T(8,128)}', space=vmem, size = 0x9000, scoped, tag = 'scratch operand']
  #allocation3 [shape = 'bf16[26,128]{1,0:T(8,128)(2,1)}', space=vmem, size = 0x2000, scoped, tag = 'scratch operand']
  #allocation4 [shape = 'f32[20,64]{1,0:T(8,128)}', space=vmem, size = 0x3000, scoped, tag = 'scratch operand']
  #allocation5 [shape = 'bf16[10,256]{1,0:T(8,128)(2,1)}', space=vmem, size = 0x2000, scoped, tag = 'scratch operand']
  %s0 = inlined_call_operand.vmem [shape: bf16[2,82,16], index: 0, kind: input, shape index: {}]
  %s1 = inlined_call_operand.vmem [shape: bf16[64,32], index: 1, kind: input, shape index: {}]
  %s2 = inlined_call_operand.vmem [shape: f32[1,32], index: 2, kind: input, shape index: {}]
  %s3 = inlined_call_operand.vmem [shape: f32[1,32], index: 3, kind: input, shape index: {}]
  %s4 = inlined_call_operand.vmem [shape: f32[1,32], index: 4, kind: input, shape index: {}]
  %s5 = inlined_call_operand.vmem [shape: bf16[512,64], index: 5, kind: input, shape index: {}]
  %s6 = inlined_call_operand.vmem [shape: f32[1,64], index: 6, kind: input, shape index: {}]
  %s7 = inlined_call_operand.vmem [shape: f32[1,64], index: 7, kind: input, shape index: {}]
  %s8 = inlined_call_operand.vmem [shape: f32[1,64], index: 8, kind: input, shape index: {}]
  %s9 = inlined_call_operand.vmem [shape: bf16[1024,16], index: 9, kind: input, shape index: {}]
  %s10 = inlined_call_operand.vmem [shape: f32[1,16], index: 10, kind: input, shape index: {}]
  %s11 = inlined_call_operand.vmem [shape: f32[1,16], index: 11, kind: input, shape index: {}]
  %s12 = inlined_call_operand.vmem [shape: f32[1,16], index: 12, kind: input, shape index: {}]
  %s13 = inlined_call_operand.vmem [shape: bf16[64,256], index: 13, kind: input, shape index: {}]
  %s14 = inlined_call_operand.vmem [shape: f32[1,256], index: 14, kind: input, shape index: {}]
  %s15 = inlined_call_operand.vmem [shape: bf16[256,16], index: 15, kind: input, shape index: {}]
  %s16 = inlined_call_operand.vmem [shape: f32[1,16], index: 16, kind: input, shape index: {}]
  %s17 = inlined_call_operand.hbm [shape: f32[2,1,128], index: 17, kind: output, shape index: {}]
  %s18 = sld [smem:[#allocation0]]
  $region101: #{encoder_forward.1} parent=0
    _
  %s20 = ssub.s32 1, %s18
  %s21 = scalar_select 0, %s20, %s18
  $region1: #{encoder_forward.1} parent=0
    #allocation6 [shape = 'u8[1024]{0}', space=vmem, size = 0x400, scoped, tag = 'output window, operand 0']
    #allocation7 [shape = 's32[2]{0}', space=sflag, size = 0x8, scoped, tag = 'scoped memory for encoder_forward.1']
    %22 = vsyncpa [#allocation7], 0
    %s23 = scalar_lea.sflag [#allocation7], 1
    %24 = vsyncpa %s23, 0
    loop: start=0, step=1, limit=4
    $region2: #{encoder_forward.1} parent=1 // loop_pre_header
      _
    $region3: #{encoder_forward.1} parent=1 // loop_header
      %s26 = sphi 0, %s30
      %p27 = scmp.ge.s32.totalorder %s26, 4
      %s36 = sphi 0, %s38
      %s39 = sphi 0, %s36
      %s40 = sphi 0, %s39
      %s56 = sphi 0, %s40
      %s60 = sphi 0, %s60
      %s62 = sphi 0, %s60
      %s63 = sphi 0, %s62
      %s77 = sphi 0, %s63
      %s81 = sphi 0, %s81
      %s83 = sphi 0, %s81
      %s84 = sphi 0, %s83
      %s98 = sphi 0, %s84
      %s102 = sphi 0, %s102
      %s104 = sphi 0, %s102
      %s105 = sphi 0, %s104
      %s119 = sphi 0, %s105
      %s123 = sphi 0, %s123
      %s125 = sphi 0, %s123
      %s126 = sphi 0, %s125
      %s140 = sphi 0, %s126
      %s144 = sphi 0, %s144
      %s146 = sphi 0, %s144
      %s147 = sphi 0, %s146
      %s161 = sphi 0, %s147
      %s165 = sphi 0, %s165
      %s167 = sphi 0, %s165
      %s168 = sphi 0, %s167
      %s182 = sphi 0, %s168
      %s186 = sphi 0, %s186
      %s188 = sphi 0, %s186
      %s189 = sphi 0, %s188
      %s203 = sphi 0, %s189
      %s207 = sphi 0, %s207
      %s209 = sphi 0, %s207
      %s210 = sphi 0, %s209
      %s224 = sphi 0, %s210
      %s228 = sphi 0, %s228
      %s230 = sphi 0, %s228
      %s231 = sphi 0, %s230
      %s245 = sphi 0, %s231
      %s249 = sphi 0, %s249
      %s251 = sphi 0, %s249
      %s252 = sphi 0, %s251
      %s266 = sphi 0, %s252
      %s270 = sphi 0, %s270
      %s272 = sphi 0, %s270
      %s273 = sphi 0, %s272
      %s287 = sphi 0, %s273
      %s291 = sphi 0, %s291
      %s293 = sphi 0, %s291
      %s294 = sphi 0, %s293
      %s308 = sphi 0, %s294
      %s312 = sphi 0, %s312
      %s314 = sphi 0, %s312
      %s315 = sphi 0, %s314
      %s329 = sphi 0, %s315
      %s333 = sphi 0, %s333
      %s335 = sphi 0, %s333
      %s336 = sphi 0, %s335
      %s350 = sphi 0, %s336
      %s354 = sphi 0, %s354
      %s356 = sphi 0, %s354
      %s357 = sphi 0, %s356
      %s371 = sphi 0, %s357
      %s375 = sphi 0, %s375
      %s377 = sphi 0, %s375
      %s378 = sphi 0, %s377
      %s392 = sphi 0, %s378
      %s398 = sphi 0, %s400
      %s401 = sphi 0, %s398
      %s402 = sphi 0, %s401
      %s418 = sphi 0, %s402
    $region4: #{encoder_forward.1} parent=1 // loop_header_branch
      %29 = sbr.rel (%p27) target = $region8
    $region5: #{encoder_forward.1} parent=1 // loop_body
      %s31 = ssub.s32 %s26, 1
      %s32 = ssub.s32 %s26, 2
      %s33 = sadd.s32 %s26, 1
      %s34 = ssub.s32 %s26, %s33
      %p35 = scmp.eq.s32.totalorder %s34, 0
      %s37 = sadd.s32 %s36, 1
      %s38 = scalar_select %p35, %s36, %s37
      %p41 = pneg %p35
      %p42 = scmp.eq.s32.totalorder %s26, 1
      %p43 = por %p41, %p42
      %p44 = scmp.ne.s32.totalorder %s36, %s39
      %p45 = scmp.eq.s32.totalorder %s26, 0
      %p46 = por %p44, %p45
      %p47 = scmp.ne.s32.totalorder %s36, %s39
      %p48 = scmp.eq.s32.totalorder %s31, 1
      %p49 = por %p47, %p48
      %p50 = scmp.ne.s32.totalorder %s39, %s40
      %p51 = scmp.eq.s32.totalorder %s31, 0
      %p52 = por %p50, %p51
      %p53 = scmp.ne.s32.totalorder %s39, %s40
      %p54 = scmp.eq.s32.totalorder %s32, 1
      %p55 = por %p53, %p54
      %p57 = scmp.ne.s32.totalorder %s40, %s56
      %p58 = scmp.eq.s32.totalorder %s32, 0
      %p59 = por %p57, %p58
      %s61 = sadd.s32 %s60, 1
      %p64 = scmp.eq.s32.totalorder %s26, 1
      %p65 = scmp.ne.s32.totalorder %s60, %s62
      %p66 = scmp.eq.s32.totalorder %s26, 0
      %p67 = por %p65, %p66
      %p68 = scmp.ne.s32.totalorder %s60, %s62
      %p69 = scmp.eq.s32.totalorder %s31, 1
      %p70 = por %p68, %p69
      %p71 = scmp.ne.s32.totalorder %s62, %s63
      %p72 = scmp.eq.s32.totalorder %s31, 0
      %p73 = por %p71, %p72
      %p74 = scmp.ne.s32.totalorder %s62, %s63
      %p75 = scmp.eq.s32.totalorder %s32, 1
      %p76 = por %p74, %p75
      %p78 = scmp.ne.s32.totalorder %s63, %s77
      %p79 = scmp.eq.s32.totalorder %s32, 0
      %p80 = por %p78, %p79
      %s82 = sadd.s32 %s81, 1
      %p85 = scmp.eq.s32.totalorder %s26, 1
      %p86 = scmp.ne.s32.totalorder %s81, %s83
      %p87 = scmp.eq.s32.totalorder %s26, 0
      %p88 = por %p86, %p87
      %p89 = scmp.ne.s32.totalorder %s81, %s83
      %p90 = scmp.eq.s32.totalorder %s31, 1
      %p91 = por %p89, %p90
      %p92 = scmp.ne.s32.totalorder %s83, %s84
      %p93 = scmp.eq.s32.totalorder %s31, 0
      %p94 = por %p92, %p93
      %p95 = scmp.ne.s32.totalorder %s83, %s84
      %p96 = scmp.eq.s32.totalorder %s32, 1
      %p97 = por %p95, %p96
      %p99 = scmp.ne.s32.totalorder %s84, %s98
      %p100 = scmp.eq.s32.totalorder %s32, 0
      %p101 = por %p99, %p100
      %s103 = sadd.s32 %s102, 1
      %p106 = scmp.eq.s32.totalorder %s26, 1
      %p107 = scmp.ne.s32.totalorder %s102, %s104
      %p108 = scmp.eq.s32.totalorder %s26, 0
      %p109 = por %p107, %p108
      %p110 = scmp.ne.s32.totalorder %s102, %s104
      %p111 = scmp.eq.s32.totalorder %s31, 1
      %p112 = por %p110, %p111
      %p113 = scmp.ne.s32.totalorder %s104, %s105
      %p114 = scmp.eq.s32.totalorder %s31, 0
      %p115 = por %p113, %p114
      %p116 = scmp.ne.s32.totalorder %s104, %s105
      %p117 = scmp.eq.s32.totalorder %s32, 1
      %p118 = por %p116, %p117
      %p120 = scmp.ne.s32.totalorder %s105, %s119
      %p121 = scmp.eq.s32.totalorder %s32, 0
      %p122 = por %p120, %p121
      %s124 = sadd.s32 %s123, 1
      %p127 = scmp.eq.s32.totalorder %s26, 1
      %p128 = scmp.ne.s32.totalorder %s123, %s125
      %p129 = scmp.eq.s32.totalorder %s26, 0
      %p130 = por %p128, %p129
      %p131 = scmp.ne.s32.totalorder %s123, %s125
      %p132 = scmp.eq.s32.totalorder %s31, 1
      %p133 = por %p131, %p132
      %p134 = scmp.ne.s32.totalorder %s125, %s126
      %p135 = scmp.eq.s32.totalorder %s31, 0
      %p136 = por %p134, %p135
      %p137 = scmp.ne.s32.totalorder %s125, %s126
      %p138 = scmp.eq.s32.totalorder %s32, 1
      %p139 = por %p137, %p138
      %p141 = scmp.ne.s32.totalorder %s126, %s140
      %p142 = scmp.eq.s32.totalorder %s32, 0
      %p143 = por %p141, %p142
      %s145 = sadd.s32 %s144, 1
      %p148 = scmp.eq.s32.totalorder %s26, 1
      %p149 = scmp.ne.s32.totalorder %s144, %s146
      %p150 = scmp.eq.s32.totalorder %s26, 0
      %p151 = por %p149, %p150
      %p152 = scmp.ne.s32.totalorder %s144, %s146
      %p153 = scmp.eq.s32.totalorder %s31, 1
      %p154 = por %p152, %p153
      %p155 = scmp.ne.s32.totalorder %s146, %s147
      %p156 = scmp.eq.s32.totalorder %s31, 0
      %p157 = por %p155, %p156
      %p158 = scmp.ne.s32.totalorder %s146, %s147
      %p159 = scmp.eq.s32.totalorder %s32, 1
      %p160 = por %p158, %p159
      %p162 = scmp.ne.s32.totalorder %s147, %s161
      %p163 = scmp.eq.s32.totalorder %s32, 0
      %p164 = por %p162, %p163
      %s166 = sadd.s32 %s165, 1
      %p169 = scmp.eq.s32.totalorder %s26, 1
      %p170 = scmp.ne.s32.totalorder %s165, %s167
      %p171 = scmp.eq.s32.totalorder %s26, 0
      %p172 = por %p170, %p171
      %p173 = scmp.ne.s32.totalorder %s165, %s167
      %p174 = scmp.eq.s32.totalorder %s31, 1
      %p175 = por %p173, %p174
      %p176 = scmp.ne.s32.totalorder %s167, %s168
      %p177 = scmp.eq.s32.totalorder %s31, 0
      %p178 = por %p176, %p177
      %p179 = scmp.ne.s32.totalorder %s167, %s168
      %p180 = scmp.eq.s32.totalorder %s32, 1
      %p181 = por %p179, %p180
      %p183 = scmp.ne.s32.totalorder %s168, %s182
      %p184 = scmp.eq.s32.totalorder %s32, 0
      %p185 = por %p183, %p184
      %s187 = sadd.s32 %s186, 1
      %p190 = scmp.eq.s32.totalorder %s26, 1
      %p191 = scmp.ne.s32.totalorder %s186, %s188
      %p192 = scmp.eq.s32.totalorder %s26, 0
      %p193 = por %p191, %p192
      %p194 = scmp.ne.s32.totalorder %s186, %s188
      %p195 = scmp.eq.s32.totalorder %s31, 1
      %p196 = por %p194, %p195
      %p197 = scmp.ne.s32.totalorder %s188, %s189
      %p198 = scmp.eq.s32.totalorder %s31, 0
      %p199 = por %p197, %p198
      %p200 = scmp.ne.s32.totalorder %s188, %s189
      %p201 = scmp.eq.s32.totalorder %s32, 1
      %p202 = por %p200, %p201
      %p204 = scmp.ne.s32.totalorder %s189, %s203
      %p205 = scmp.eq.s32.totalorder %s32, 0
      %p206 = por %p204, %p205
      %s208 = sadd.s32 %s207, 1
      %p211 = scmp.eq.s32.totalorder %s26, 1
      %p212 = scmp.ne.s32.totalorder %s207, %s209
      %p213 = scmp.eq.s32.totalorder %s26, 0
      %p214 = por %p212, %p213
      %p215 = scmp.ne.s32.totalorder %s207, %s209
      %p216 = scmp.eq.s32.totalorder %s31, 1
      %p217 = por %p215, %p216
      %p218 = scmp.ne.s32.totalorder %s209, %s210
      %p219 = scmp.eq.s32.totalorder %s31, 0
      %p220 = por %p218, %p219
      %p221 = scmp.ne.s32.totalorder %s209, %s210
      %p222 = scmp.eq.s32.totalorder %s32, 1
      %p223 = por %p221, %p222
      %p225 = scmp.ne.s32.totalorder %s210, %s224
      %p226 = scmp.eq.s32.totalorder %s32, 0
      %p227 = por %p225, %p226
      %s229 = sadd.s32 %s228, 1
      %p232 = scmp.eq.s32.totalorder %s26, 1
      %p233 = scmp.ne.s32.totalorder %s228, %s230
      %p234 = scmp.eq.s32.totalorder %s26, 0
      %p235 = por %p233, %p234
      %p236 = scmp.ne.s32.totalorder %s228, %s230
      %p237 = scmp.eq.s32.totalorder %s31, 1
      %p238 = por %p236, %p237
      %p239 = scmp.ne.s32.totalorder %s230, %s231
      %p240 = scmp.eq.s32.totalorder %s31, 0
      %p241 = por %p239, %p240
      %p242 = scmp.ne.s32.totalorder %s230, %s231
      %p243 = scmp.eq.s32.totalorder %s32, 1
      %p244 = por %p242, %p243
      %p246 = scmp.ne.s32.totalorder %s231, %s245
      %p247 = scmp.eq.s32.totalorder %s32, 0
      %p248 = por %p246, %p247
      %s250 = sadd.s32 %s249, 1
      %p253 = scmp.eq.s32.totalorder %s26, 1
      %p254 = scmp.ne.s32.totalorder %s249, %s251
      %p255 = scmp.eq.s32.totalorder %s26, 0
      %p256 = por %p254, %p255
      %p257 = scmp.ne.s32.totalorder %s249, %s251
      %p258 = scmp.eq.s32.totalorder %s31, 1
      %p259 = por %p257, %p258
      %p260 = scmp.ne.s32.totalorder %s251, %s252
      %p261 = scmp.eq.s32.totalorder %s31, 0
      %p262 = por %p260, %p261
      %p263 = scmp.ne.s32.totalorder %s251, %s252
      %p264 = scmp.eq.s32.totalorder %s32, 1
      %p265 = por %p263, %p264
      %p267 = scmp.ne.s32.totalorder %s252, %s266
      %p268 = scmp.eq.s32.totalorder %s32, 0
      %p269 = por %p267, %p268
      %s271 = sadd.s32 %s270, 1
      %p274 = scmp.eq.s32.totalorder %s26, 1
      %p275 = scmp.ne.s32.totalorder %s270, %s272
      %p276 = scmp.eq.s32.totalorder %s26, 0
      %p277 = por %p275, %p276
      %p278 = scmp.ne.s32.totalorder %s270, %s272
      %p279 = scmp.eq.s32.totalorder %s31, 1
      %p280 = por %p278, %p279
      %p281 = scmp.ne.s32.totalorder %s272, %s273
      %p282 = scmp.eq.s32.totalorder %s31, 0
      %p283 = por %p281, %p282
      %p284 = scmp.ne.s32.totalorder %s272, %s273
      %p285 = scmp.eq.s32.totalorder %s32, 1
      %p286 = por %p284, %p285
      %p288 = scmp.ne.s32.totalorder %s273, %s287
      %p289 = scmp.eq.s32.totalorder %s32, 0
      %p290 = por %p288, %p289
      %s292 = sadd.s32 %s291, 1
      %p295 = scmp.eq.s32.totalorder %s26, 1
      %p296 = scmp.ne.s32.totalorder %s291, %s293
      %p297 = scmp.eq.s32.totalorder %s26, 0
      %p298 = por %p296, %p297
      %p299 = scmp.ne.s32.totalorder %s291, %s293
      %p300 = scmp.eq.s32.totalorder %s31, 1
      %p301 = por %p299, %p300
      %p302 = scmp.ne.s32.totalorder %s293, %s294
      %p303 = scmp.eq.s32.totalorder %s31, 0
      %p304 = por %p302, %p303
      %p305 = scmp.ne.s32.totalorder %s293, %s294
      %p306 = scmp.eq.s32.totalorder %s32, 1
      %p307 = por %p305, %p306
      %p309 = scmp.ne.s32.totalorder %s294, %s308
      %p310 = scmp.eq.s32.totalorder %s32, 0
      %p311 = por %p309, %p310
      %s313 = sadd.s32 %s312, 1
      %p316 = scmp.eq.s32.totalorder %s26, 1
      %p317 = scmp.ne.s32.totalorder %s312, %s314
      %p318 = scmp.eq.s32.totalorder %s26, 0
      %p319 = por %p317, %p318
      %p320 = scmp.ne.s32.totalorder %s312, %s314
      %p321 = scmp.eq.s32.totalorder %s31, 1
      %p322 = por %p320, %p321
      %p323 = scmp.ne.s32.totalorder %s314, %s315
      %p324 = scmp.eq.s32.totalorder %s31, 0
      %p325 = por %p323, %p324
      %p326 = scmp.ne.s32.totalorder %s314, %s315
      %p327 = scmp.eq.s32.totalorder %s32, 1
      %p328 = por %p326, %p327
      %p330 = scmp.ne.s32.totalorder %s315, %s329
      %p331 = scmp.eq.s32.totalorder %s32, 0
      %p332 = por %p330, %p331
      %s334 = sadd.s32 %s333, 1
      %p337 = scmp.eq.s32.totalorder %s26, 1
      %p338 = scmp.ne.s32.totalorder %s333, %s335
      %p339 = scmp.eq.s32.totalorder %s26, 0
      %p340 = por %p338, %p339
      %p341 = scmp.ne.s32.totalorder %s333, %s335
      %p342 = scmp.eq.s32.totalorder %s31, 1
      %p343 = por %p341, %p342
      %p344 = scmp.ne.s32.totalorder %s335, %s336
      %p345 = scmp.eq.s32.totalorder %s31, 0
      %p346 = por %p344, %p345
      %p347 = scmp.ne.s32.totalorder %s335, %s336
      %p348 = scmp.eq.s32.totalorder %s32, 1
      %p349 = por %p347, %p348
      %p351 = scmp.ne.s32.totalorder %s336, %s350
      %p352 = scmp.eq.s32.totalorder %s32, 0
      %p353 = por %p351, %p352
      %s355 = sadd.s32 %s354, 1
      %p358 = scmp.eq.s32.totalorder %s26, 1
      %p359 = scmp.ne.s32.totalorder %s354, %s356
      %p360 = scmp.eq.s32.totalorder %s26, 0
      %p361 = por %p359, %p360
      %p362 = scmp.ne.s32.totalorder %s354, %s356
      %p363 = scmp.eq.s32.totalorder %s31, 1
      %p364 = por %p362, %p363
      %p365 = scmp.ne.s32.totalorder %s356, %s357
      %p366 = scmp.eq.s32.totalorder %s31, 0
      %p367 = por %p365, %p366
      %p368 = scmp.ne.s32.totalorder %s356, %s357
      %p369 = scmp.eq.s32.totalorder %s32, 1
      %p370 = por %p368, %p369
      %p372 = scmp.ne.s32.totalorder %s357, %s371
      %p373 = scmp.eq.s32.totalorder %s32, 0
      %p374 = por %p372, %p373
      %s376 = sadd.s32 %s375, 1
      %p379 = scmp.eq.s32.totalorder %s26, 1
      %p380 = scmp.ne.s32.totalorder %s375, %s377
      %p381 = scmp.eq.s32.totalorder %s26, 0
      %p382 = por %p380, %p381
      %p383 = scmp.ne.s32.totalorder %s375, %s377
      %p384 = scmp.eq.s32.totalorder %s31, 1
      %p385 = por %p383, %p384
      %p386 = scmp.ne.s32.totalorder %s377, %s378
      %p387 = scmp.eq.s32.totalorder %s31, 0
      %p388 = por %p386, %p387
      %p389 = scmp.ne.s32.totalorder %s377, %s378
      %p390 = scmp.eq.s32.totalorder %s32, 1
      %p391 = por %p389, %p390
      %p393 = scmp.ne.s32.totalorder %s378, %s392
      %p394 = scmp.eq.s32.totalorder %s32, 0
      %p395 = por %p393, %p394
      %s396 = ssub.s32 %s26, %s33
      %p397 = scmp.eq.s32.totalorder %s396, 0
      %s399 = sadd.s32 %s398, 1
      %s400 = scalar_select %p397, %s398, %s399
      %p403 = pneg %p397
      %p404 = scmp.eq.s32.totalorder %s26, 1
      %p405 = por %p403, %p404
      %p406 = scmp.ne.s32.totalorder %s398, %s401
      %p407 = scmp.eq.s32.totalorder %s26, 0
      %p408 = por %p406, %p407
      %p409 = scmp.ne.s32.totalorder %s398, %s401
      %p410 = scmp.eq.s32.totalorder %s31, 1
      %p411 = por %p409, %p410
      %p412 = scmp.ne.s32.totalorder %s401, %s402
      %p413 = scmp.eq.s32.totalorder %s31, 0
      %p414 = por %p412, %p413
      %p415 = scmp.ne.s32.totalorder %s401, %s402
      %p416 = scmp.eq.s32.totalorder %s32, 1
      %p417 = por %p415, %p416
      %p419 = scmp.ne.s32.totalorder %s402, %s418
      %p420 = scmp.eq.s32.totalorder %s32, 0
      %p421 = por %p419, %p420
      %p422 = scmp.le.s32.totalorder 1, %s26
      %p423 = scmp.lt.s32.totalorder %s26, 3
      %p424 = pnand %p422, %p423
      %p425 = pneg %p424
      // Predicated region
      $region9: #{encoder_forward.1} parent=5 // pred_check
        _
      $region10: #{encoder_forward.1} parent=5 // pred_check_branch
        %427 = sbr.rel (%p424) target = $region12
      $region11: #{encoder_forward.1} parent=5 // pred_region
        %s428 = ssub.s32 %s26, 1
        // Predicated region
        $region13: #{encoder_forward.1} parent=11 // pred_check
          %p429 = pneg %p73
        $region14: #{encoder_forward.1} parent=11 // pred_check_branch
          %431 = sbr.rel (%p429) target = $region16
        $region15: #{encoder_forward.1} parent=11 // pred_region
          _
        $region16: #{encoder_forward.1} parent=11 // pred_fallthru
          _
        // Predicated region
        $region17: #{encoder_forward.1} parent=11 // pred_check
          %p432 = pneg %p94
        $region18: #{encoder_forward.1} parent=11 // pred_check_branch
          %434 = sbr.rel (%p432) target = $region20
        $region19: #{encoder_forward.1} parent=11 // pred_region
          _
        $region20: #{encoder_forward.1} parent=11 // pred_fallthru
          _
        // Predicated region
        $region21: #{encoder_forward.1} parent=11 // pred_check
          %p435 = pneg %p115
        $region22: #{encoder_forward.1} parent=11 // pred_check_branch
          %437 = sbr.rel (%p435) target = $region24
        $region23: #{encoder_forward.1} parent=11 // pred_region
          _
        $region24: #{encoder_forward.1} parent=11 // pred_fallthru
          _
        // Predicated region
        $region25: #{encoder_forward.1} parent=11 // pred_check
          %p438 = pneg %p136
        $region26: #{encoder_forward.1} parent=11 // pred_check_branch
          %440 = sbr.rel (%p438) target = $region28
        $region27: #{encoder_forward.1} parent=11 // pred_region
          _
        $region28: #{encoder_forward.1} parent=11 // pred_fallthru
          _
        // Predicated region
        $region29: #{encoder_forward.1} parent=11 // pred_check
          %p441 = pneg %p157
        $region30: #{encoder_forward.1} parent=11 // pred_check_branch
          %443 = sbr.rel (%p441) target = $region32
        $region31: #{encoder_forward.1} parent=11 // pred_region
          _
        $region32: #{encoder_forward.1} parent=11 // pred_fallthru
          _
        // Predicated region
        $region33: #{encoder_forward.1} parent=11 // pred_check
          %p444 = pneg %p178
        $region34: #{encoder_forward.1} parent=11 // pred_check_branch
          %446 = sbr.rel (%p444) target = $region36
        $region35: #{encoder_forward.1} parent=11 // pred_region
          _
        $region36: #{encoder_forward.1} parent=11 // pred_fallthru
          _
        // Predicated region
        $region37: #{encoder_forward.1} parent=11 // pred_check
          %p447 = pneg %p199
        $region38: #{encoder_forward.1} parent=11 // pred_check_branch
          %449 = sbr.rel (%p447) target = $region40
        $region39: #{encoder_forward.1} parent=11 // pred_region
          _
        $region40: #{encoder_forward.1} parent=11 // pred_fallthru
          _
        // Predicated region
        $region41: #{encoder_forward.1} parent=11 // pred_check
          %p450 = pneg %p220
        $region42: #{encoder_forward.1} parent=11 // pred_check_branch
          %452 = sbr.rel (%p450) target = $region44
        $region43: #{encoder_forward.1} parent=11 // pred_region
          _
        $region44: #{encoder_forward.1} parent=11 // pred_fallthru
          _
        // Predicated region
        $region45: #{encoder_forward.1} parent=11 // pred_check
          %p453 = pneg %p241
        $region46: #{encoder_forward.1} parent=11 // pred_check_branch
          %455 = sbr.rel (%p453) target = $region48
        $region47: #{encoder_forward.1} parent=11 // pred_region
          _
        $region48: #{encoder_forward.1} parent=11 // pred_fallthru
          _
        // Predicated region
        $region49: #{encoder_forward.1} parent=11 // pred_check
          %p456 = pneg %p262
        $region50: #{encoder_forward.1} parent=11 // pred_check_branch
          %458 = sbr.rel (%p456) target = $region52
        $region51: #{encoder_forward.1} parent=11 // pred_region
          _
        $region52: #{encoder_forward.1} parent=11 // pred_fallthru
          _
        // Predicated region
        $region53: #{encoder_forward.1} parent=11 // pred_check
          %p459 = pneg %p283
        $region54: #{encoder_forward.1} parent=11 // pred_check_branch
          %461 = sbr.rel (%p459) target = $region56
        $region55: #{encoder_forward.1} parent=11 // pred_region
          _
        $region56: #{encoder_forward.1} parent=11 // pred_fallthru
          _
        // Predicated region
        $region57: #{encoder_forward.1} parent=11 // pred_check
          %p462 = pneg %p304
        $region58: #{encoder_forward.1} parent=11 // pred_check_branch
          %464 = sbr.rel (%p462) target = $region60
        $region59: #{encoder_forward.1} parent=11 // pred_region
          _
        $region60: #{encoder_forward.1} parent=11 // pred_fallthru
          _
        // Predicated region
        $region61: #{encoder_forward.1} parent=11 // pred_check
          %p465 = pneg %p325
        $region62: #{encoder_forward.1} parent=11 // pred_check_branch
          %467 = sbr.rel (%p465) target = $region64
        $region63: #{encoder_forward.1} parent=11 // pred_region
          _
        $region64: #{encoder_forward.1} parent=11 // pred_fallthru
          _
        // Predicated region
        $region65: #{encoder_forward.1} parent=11 // pred_check
          %p468 = pneg %p346
        $region66: #{encoder_forward.1} parent=11 // pred_check_branch
          %470 = sbr.rel (%p468) target = $region68
        $region67: #{encoder_forward.1} parent=11 // pred_region
          _
        $region68: #{encoder_forward.1} parent=11 // pred_fallthru
          _
        // Predicated region
        $region69: #{encoder_forward.1} parent=11 // pred_check
          %p471 = pneg %p367
        $region70: #{encoder_forward.1} parent=11 // pred_check_branch
          %473 = sbr.rel (%p471) target = $region72
        $region71: #{encoder_forward.1} parent=11 // pred_region
          _
        $region72: #{encoder_forward.1} parent=11 // pred_fallthru
          _
        // Predicated region
        $region73: #{encoder_forward.1} parent=11 // pred_check
          %p474 = pneg %p388
        $region74: #{encoder_forward.1} parent=11 // pred_check_branch
          %476 = sbr.rel (%p474) target = $region76
        $region75: #{encoder_forward.1} parent=11 // pred_region
          _
        $region76: #{encoder_forward.1} parent=11 // pred_fallthru
          _
      $region12: #{encoder_forward.1} parent=5 // pred_fallthru
        _
      %p477 = scmp.lt.s32.totalorder %s26, 2
      // Predicated region
      $region77: #{encoder_forward.1} parent=5 // pred_check
        %p478 = pneg %p477
      $region78: #{encoder_forward.1} parent=5 // pred_check_branch
        %480 = sbr.rel (%p478) target = $region80
      $region79: #{encoder_forward.1} parent=5 // pred_region
        // Predicated region
        $region81: #{encoder_forward.1} parent=79 // pred_check
          %p481 = pneg %p46
        $region82: #{encoder_forward.1} parent=79 // pred_check_branch
          %483 = sbr.rel (%p481) target = $region84
        $region83: #{encoder_forward.1} parent=79 // pred_region
          %p484 = scmp.lt.s32.totalorder %s26, 1
          %s485 = scalar_select %p484, %s26, 1
          %s486 = smul.addr %s485, 11
          %s487 = smul.addr %s486, 4
          %s488 = scalar_lea.vmem %s0, %s487
        $region84: #{encoder_forward.1} parent=79 // pred_fallthru
          _
      $region80: #{encoder_forward.1} parent=5 // pred_fallthru
        _
      %p489 = scmp.le.s32.totalorder 1, %s26
      %p490 = scmp.lt.s32.totalorder %s26, 3
      %p491 = pnand %p489, %p490
      %p492 = pneg %p491
      // Predicated region
      $region85: #{encoder_forward.1} parent=5 // pred_check
        _
      $region86: #{encoder_forward.1} parent=5 // pred_check_branch
        %494 = sbr.rel (%p491) target = $region88
      $region87: #{encoder_forward.1} parent=5 // pred_region
        %s495 = ssub.s32 %s26, 1
        %p496 = scmp.lt.s32.totalorder %s31, 1
        %s497 = scalar_select %p496, %s31, 1
        %s498 = smul.addr %s497, 11
        %s499 = smul.addr %s498, 4
        %s500 = scalar_lea.vmem %s0, %s499
        %p501 = pneg %p52
        %p502 = pneg %p49
        %p503 = pneg %p73
        %p504 = pneg %p70
        %p505 = pneg %p94
        %p506 = pneg %p91
        %p507 = pneg %p115
        %p508 = pneg %p112
        %p509 = pneg %p136
        %p510 = pneg %p133
        %p511 = pneg %p157
        %p512 = pneg %p154
        %p513 = pneg %p178
        %p514 = pneg %p175
        %p515 = pneg %p199
        %p516 = pneg %p196
        %p517 = pneg %p220
        %p518 = pneg %p217
        %p519 = pneg %p241
        %p520 = pneg %p238
        %p521 = pneg %p262
        %p522 = pneg %p259
        %p523 = pneg %p283
        %p524 = pneg %p280
        %p525 = pneg %p304
        %p526 = pneg %p301
        %p527 = pneg %p325
        %p528 = pneg %p322
        %p529 = pneg %p346
        %p530 = pneg %p343
        %p531 = pneg %p367
        %p532 = pneg %p364
        %p533 = pneg %p388
        %p534 = pneg %p385
        %p535 = pneg %p414
        %p536 = pneg %p411
        %s537 = sand.u32 %s401, 1
        %s538 = scalar_lea.sflag [#allocation7], %s537
        %s539 = sand.u32 %s401, 1
        %s540 = scalar_lea.vmem [#allocation6], %s539
        %p541 = scmp.lt.s32.totalorder %s31, 1
        %s542 = scalar_select %p541, %s31, 1
        %s543 = smul.addr %s542, 11
        %s544 = smul.addr %s543, 4
        %s545 = scalar_lea.vmem %s0, %s544
        %v547 = vld [vmem:[%s1] sm:$0xf]
        %v548 = vld [vmem:[%s1 + $0x4] sm:$0xf]
        %v549 = vld [vmem:[%s1 + $0x8] sm:$0xf]
        %v550 = vld [vmem:[%s1 + $0xc] sm:$0xf]
        %v551 = vld [vmem:[%s1 + $0x10] sm:$0xf]
        %v552 = vld [vmem:[%s1 + $0x14] sm:$0xf]
        %v553 = vld [vmem:[%s1 + $0x18] sm:$0xf]
        %v554 = vld [vmem:[%s1 + $0x1c] sm:$0xf]
        %v555 = vld [vmem:[%s545] sm:$0xf]
        %v556 = vld [vmem:[%s545 + $0x4] sm:$0xf]
        %v557 = vld [vmem:[%s545 + $0x8] sm:$0xf]
        %v558 = vld [vmem:[%s545 + $0xc] sm:$0xf]
        %v559 = vld [vmem:[%s545 + $0x10] sm:$0xf]
        %v560 = vld [vmem:[%s545 + $0x14] sm:$0xf]
        %v561 = vld [vmem:[%s545 + $0x18] sm:$0xf]
        %v562 = vld [vmem:[%s545 + $0x1c] sm:$0xf]
        %v563 = vld [vmem:[%s545 + $0x20] sm:$0xf]
        %v564 = vld [vmem:[%s545 + $0x24] sm:$0x1]
        %v575 = vunpack.c.l.b16 %v555
        %v576 = vunpack.c.l.b16 %v556
        %v577 = vunpack.c.l.b16 %v557
        %v578 = vunpack.c.l.b16 %v558
        %v579 = vunpack.c.l.b16 %v559
        %v580 = vunpack.c.l.b16 %v560
        %v581 = vunpack.c.l.b16 %v561
        %v582 = vunpack.c.l.b16 %v562
        %v583 = vunpack.c.l.b16 %v563
        %v584 = vunpack.c.l.b16 %v564
        %v585 = vpack.c.b16 %v576, %v575
        %v586 = vpack.c.b16 %v578, %v577
        %v587 = vpack.c.b16 %v580, %v579
        %v588 = vpack.c.b16 %v582, %v581
        %v589 = vpack.c.b16 %v584, %v583
        %vm590 = vsmask.f32 7424
        %v592 = vshrl.u32 %v585, 16
        %v594 = vshll.u32 %v585, 16
        %v596 = vrot.slane %v594, 1
        %v597 = vor.u32 %v592, %v596
        %v599 = vshll.u32 %v586, 16
        %v601 = vrot.slane %v599, 1
        %v602 = vsel %vm590, %v597, %v601
        %v603 = vshrl.u32 %v586, 16
        %v605 = vor.u32 %v603, %v601
        %v607 = vshll.u32 %v587, 16
        %v609 = vrot.slane %v607, 1
        %v610 = vsel %vm590, %v605, %v609
        %v611 = vshrl.u32 %v587, 16
        %v613 = vor.u32 %v611, %v609
        %v615 = vshll.u32 %v588, 16
        %v617 = vrot.slane %v615, 1
        %v618 = vsel %vm590, %v613, %v617
        %v619 = vshrl.u32 %v588, 16
        %v621 = vor.u32 %v619, %v617
        %v623 = vshll.u32 %v589, 16
        %v625 = vrot.slane %v623, 1
        %v626 = vsel %vm590, %v621, %v625
        %v627 = vshrl.u32 %v589, 16
        %v629 = vor.u32 %v627, %v625
        %v632 = vunpack.c.l.b16 %v549
        %v633 = vunpack.c.l.b16 %v550
        %v634 = vpack.c.b16 %v633, %v632
        %vm636 = vcmask 130048
        %v638 = vsel %vm636, %v602, 0
        %v641 = vsel %vm636, %v610, 0
        %v644 = vsel %vm636, %v618, 0
        %v647 = vsel %vm636, %v626, 0
        %v650 = vsel %vm636, %v629, 0
        %652 = vmatprep.subr.bf16.mxu0 0
        %653 = vmatpush1.bf16.msra.mxu0 0
        %654 = vmatprep.subr.bf16.mxu0 0
        %655 = vmatpush1.bf16.msra.mxu0 0
        %656 = vmatprep.subr.bf16.mxu0 0
        %657 = vmatpush1.bf16.msra.mxu0 0
        %658 = vmatprep.subr.bf16.mxu0 0
        %659 = vmatpush1.bf16.msra.mxu0 0
        %660 = vmatprep.subr.bf16.mxu0 0
        %661 = vmatpush1.bf16.msra.mxu0 0
        %662 = vmatprep.subr.bf16.mxu0 0
        %663 = vmatpush1.bf16.msra.mxu0 0
        %664 = vmatprep.subr.bf16.mxu0 0
        %665 = vmatpush1.bf16.msra.mxu0 0
        %666 = vmatprep.subr.bf16.mxu0 0
        %667 = vmatpush1.bf16.msra.mxu0 %v634
        %668 = vmatprep.subr.bf16.mxu0 0
        %669 = vmatpush2.bf16.msra.mxu0 0
        %670 = vmatprep.subr.bf16.mxu0 0
        %671 = vmatpush2.bf16.msra.mxu0 0
        %672 = vmatprep.subr.bf16.mxu0 0
        %673 = vmatpush2.bf16.msra.mxu0 0
        %674 = vmatprep.subr.bf16.mxu0 0
        %675 = vmatpush2.bf16.msra.mxu0 0
        %676 = vmatprep.subr.bf16.mxu0 0
        %677 = vmatpush2.bf16.msra.mxu0 0
        %678 = vmatprep.subr.bf16.mxu0 0
        %679 = vmatpush2.bf16.msra.mxu0 0
        %680 = vmatprep.subr.bf16.mxu0 0
        %681 = vmatpush2.bf16.msra.mxu0 0
        %682 = vmatprep.subr.bf16.mxu0 0
        %683 = vmatpush2.bf16.msra.mxu0 0
        %684 = vmatprep.mubr.bf16.mxu0 0
        %685 = vmatmul.mubr.bf16.gmra.mxu0 %v638
        %v686 = vpop.f32.mrf.mxu0
        %v687 = vadd.f32 0.0, %v686
        %v688 = vpop.f32.mrf.mxu0
        %v689 = vpop.f32.mrf.mxu0
        %v690 = vadd.f32 0.0, %v689
        %v691 = vpop.f32.mrf.mxu0
        %692 = vmatprep.mubr.bf16.mxu0 0
        %693 = vmatmul.mubr.bf16.gmra.mxu0 %v641
        %v694 = vpop.f32.mrf.mxu0
        %v695 = vadd.f32 0.0, %v694
        %v696 = vpop.f32.mrf.mxu0
        %v697 = vpop.f32.mrf.mxu0
        %v698 = vadd.f32 0.0, %v697
        %v699 = vpop.f32.mrf.mxu0
        %700 = vmatprep.mubr.bf16.mxu0 0
        %701 = vmatmul.mubr.bf16.gmra.mxu0 %v644
        %v702 = vpop.f32.mrf.mxu0
        %v703 = vadd.f32 0.0, %v702
        %v704 = vpop.f32.mrf.mxu0
        %v705 = vpop.f32.mrf.mxu0
        %v706 = vadd.f32 0.0, %v705
        %v707 = vpop.f32.mrf.mxu0
        %708 = vmatprep.mubr.bf16.mxu0 0
        %709 = vmatmul.mubr.bf16.gmra.mxu0 %v647
        %v710 = vpop.f32.mrf.mxu0
        %v711 = vadd.f32 0.0, %v710
        %v712 = vpop.f32.mrf.mxu0
        %v713 = vpop.f32.mrf.mxu0
        %v714 = vadd.f32 0.0, %v713
        %v715 = vpop.f32.mrf.mxu0
        %716 = vmatprep.mubr.bf16.mxu0 0
        %717 = vmatmul.mubr.bf16.gmra.mxu0 %v650
        %v718 = vpop.f32.mrf.mxu0
        %v719 = vadd.f32 0.0, %v718
        %v720 = vpop.f32.mrf.mxu0
        %v721 = vpop.f32.mrf.mxu0
        %v722 = vpop.f32.mrf.mxu0
        %723 = vdwg.mxu0
        %v724 = vpack.c.b16 %v583, %v583
        %v727 = vunpack.c.l.b16 %v547
        %v728 = vunpack.c.l.b16 %v548
        %v729 = vpack.c.b16 %v728, %v727
        %v731 = vsel %vm636, %v585, 0
        %v733 = vsel %vm636, %v586, 0
        %v735 = vsel %vm636, %v587, 0
        %v737 = vsel %vm636, %v588, 0
        %v740 = vsel %vm636, %v724, 0
        %742 = vmatprep.subr.bf16.mxu0 0
        %743 = vmatpush1.bf16.msra.mxu0 0
        %744 = vmatprep.subr.bf16.mxu0 0
        %745 = vmatpush1.bf16.msra.mxu0 0
        %746 = vmatprep.subr.bf16.mxu0 0
        %747 = vmatpush1.bf16.msra.mxu0 0
        %748 = vmatprep.subr.bf16.mxu0 0
        %749 = vmatpush1.bf16.msra.mxu0 0
        %750 = vmatprep.subr.bf16.mxu0 0
        %751 = vmatpush1.bf16.msra.mxu0 0
        %752 = vmatprep.subr.bf16.mxu0 0
        %753 = vmatpush1.bf16.msra.mxu0 0
        %754 = vmatprep.subr.bf16.mxu0 0
        %755 = vmatpush1.bf16.msra.mxu0 0
        %756 = vmatprep.subr.bf16.mxu0 0
        %757 = vmatpush1.bf16.msra.mxu0 %v729
        %758 = vmatprep.subr.bf16.mxu0 0
        %759 = vmatpush2.bf16.msra.mxu0 0
        %760 = vmatprep.subr.bf16.mxu0 0
        %761 = vmatpush2.bf16.msra.mxu0 0
        %762 = vmatprep.subr.bf16.mxu0 0
        %763 = vmatpush2.bf16.msra.mxu0 0
        %764 = vmatprep.subr.bf16.mxu0 0
        %765 = vmatpush2.bf16.msra.mxu0 0
        %766 = vmatprep.subr.bf16.mxu0 0
        %767 = vmatpush2.bf16.msra.mxu0 0
        %768 = vmatprep.subr.bf16.mxu0 0
        %769 = vmatpush2.bf16.msra.mxu0 0
        %770 = vmatprep.subr.bf16.mxu0 0
        %771 = vmatpush2.bf16.msra.mxu0 0
        %772 = vmatprep.subr.bf16.mxu0 0
        %773 = vmatpush2.bf16.msra.mxu0 0
        %774 = vmatprep.mubr.bf16.mxu0 0
        %775 = vmatmul.mubr.bf16.gmra.mxu0 %v731
        %v776 = vpop.f32.mrf.mxu0
        %v777 = vadd.f32 %v687, %v776
        %v778 = vpop.f32.mrf.mxu0
        %v779 = vpop.f32.mrf.mxu0
        %v780 = vadd.f32 %v690, %v779
        %v781 = vpop.f32.mrf.mxu0
        %782 = vmatprep.mubr.bf16.mxu0 0
        %783 = vmatmul.mubr.bf16.gmra.mxu0 %v733
        %v784 = vpop.f32.mrf.mxu0
        %v785 = vadd.f32 %v695, %v784
        %v786 = vpop.f32.mrf.mxu0
        %v787 = vpop.f32.mrf.mxu0
        %v788 = vadd.f32 %v698, %v787
        %v789 = vpop.f32.mrf.mxu0
        %790 = vmatprep.mubr.bf16.mxu0 0
        %791 = vmatmul.mubr.bf16.gmra.mxu0 %v735
        %v792 = vpop.f32.mrf.mxu0
        %v793 = vadd.f32 %v703, %v792
        %v794 = vpop.f32.mrf.mxu0
        %v795 = vpop.f32.mrf.mxu0
        %v796 = vadd.f32 %v706, %v795
        %v797 = vpop.f32.mrf.mxu0
        %798 = vmatprep.mubr.bf16.mxu0 0
        %799 = vmatmul.mubr.bf16.gmra.mxu0 %v737
        %v800 = vpop.f32.mrf.mxu0
        %v801 = vadd.f32 %v711, %v800
        %v802 = vpop.f32.mrf.mxu0
        %v803 = vpop.f32.mrf.mxu0
        %v804 = vadd.f32 %v714, %v803
        %v805 = vpop.f32.mrf.mxu0
        %806 = vmatprep.mubr.bf16.mxu0 0
        %807 = vmatmul.mubr.bf16.gmra.mxu0 %v740
        %v808 = vpop.f32.mrf.mxu0
        %v809 = vadd.f32 %v719, %v808
        %v810 = vpop.f32.mrf.mxu0
        %v811 = vpop.f32.mrf.mxu0
        %v812 = vpop.f32.mrf.mxu0
        %813 = vdwg.mxu0
        %v814 = vld [vmem:[%s545 + $0x4] sm:$0xf]
        %v815 = vld [vmem:[%s545 + $0x8] sm:$0xf]
        %v816 = vld [vmem:[%s545 + $0xc] sm:$0xf]
        %v817 = vld [vmem:[%s545 + $0x10] sm:$0xf]
        %v818 = vld [vmem:[%s545 + $0x14] sm:$0xf]
        %v819 = vld [vmem:[%s545 + $0x18] sm:$0xf]
        %v820 = vld [vmem:[%s545 + $0x1c] sm:$0xf]
        %v821 = vld [vmem:[%s545 + $0x20] sm:$0xf]
        %v822 = vld [vmem:[%s545 + $0x24] sm:$0xf]
        %v823 = vld [vmem:[%s545 + $0x28] sm:$0x1]
        %v834 = vunpack.c.l.b16 %v814
        %v835 = vunpack.c.l.b16 %v815
        %v836 = vunpack.c.l.b16 %v816
        %v837 = vunpack.c.l.b16 %v817
        %v838 = vunpack.c.l.b16 %v818
        %v839 = vunpack.c.l.b16 %v819
        %v840 = vunpack.c.l.b16 %v820
        %v841 = vunpack.c.l.b16 %v821
        %v842 = vunpack.c.l.b16 %v822
        %v843 = vunpack.c.l.b16 %v823
        %v844 = vpack.c.b16 %v835, %v834
        %v845 = vpack.c.b16 %v837, %v836
        %v846 = vpack.c.b16 %v839, %v838
        %v847 = vpack.c.b16 %v841, %v840
        %v848 = vpack.c.b16 %v843, %v842
        %v850 = vshrl.u32 %v844, 16
        %v852 = vshll.u32 %v844, 16
        %v854 = vrot.slane %v852, 1
        %v855 = vor.u32 %v850, %v854
        %v857 = vshll.u32 %v845, 16
        %v859 = vrot.slane %v857, 1
        %v860 = vsel %vm590, %v855, %v859
        %v861 = vshrl.u32 %v845, 16
        %v863 = vor.u32 %v861, %v859
        %v865 = vshll.u32 %v846, 16
        %v867 = vrot.slane %v865, 1
        %v868 = vsel %vm590, %v863, %v867
        %v869 = vshrl.u32 %v846, 16
        %v871 = vor.u32 %v869, %v867
        %v873 = vshll.u32 %v847, 16
        %v875 = vrot.slane %v873, 1
        %v876 = vsel %vm590, %v871, %v875
        %v877 = vshrl.u32 %v847, 16
        %v879 = vor.u32 %v877, %v875
        %v881 = vshll.u32 %v848, 16
        %v883 = vrot.slane %v881, 1
        %v884 = vsel %vm590, %v879, %v883
        %v885 = vshrl.u32 %v848, 16
        %v887 = vor.u32 %v885, %v883
        %v890 = vunpack.c.l.b16 %v551
        %v891 = vunpack.c.l.b16 %v552
        %v892 = vpack.c.b16 %v891, %v890
        %v895 = vsel %vm636, %v860, 0
        %v898 = vsel %vm636, %v868, 0
        %v901 = vsel %vm636, %v876, 0
        %v904 = vsel %vm636, %v884, 0
        %v907 = vsel %vm636, %v887, 0
        %909 = vmatprep.subr.bf16.mxu0 0
        %910 = vmatpush1.bf16.msra.mxu0 0
        %911 = vmatprep.subr.bf16.mxu0 0
        %912 = vmatpush1.bf16.msra.mxu0 0
        %913 = vmatprep.subr.bf16.mxu0 0
        %914 = vmatpush1.bf16.msra.mxu0 0
        %915 = vmatprep.subr.bf16.mxu0 0
        %916 = vmatpush1.bf16.msra.mxu0 0
        %917 = vmatprep.subr.bf16.mxu0 0
        %918 = vmatpush1.bf16.msra.mxu0 0
        %919 = vmatprep.subr.bf16.mxu0 0
        %920 = vmatpush1.bf16.msra.mxu0 0
        %921 = vmatprep.subr.bf16.mxu0 0
        %922 = vmatpush1.bf16.msra.mxu0 0
        %923 = vmatprep.subr.bf16.mxu0 0
        %924 = vmatpush1.bf16.msra.mxu0 %v892
        %925 = vmatprep.subr.bf16.mxu0 0
        %926 = vmatpush2.bf16.msra.mxu0 0
        %927 = vmatprep.subr.bf16.mxu0 0
        %928 = vmatpush2.bf16.msra.mxu0 0
        %929 = vmatprep.subr.bf16.mxu0 0
        %930 = vmatpush2.bf16.msra.mxu0 0
        %931 = vmatprep.subr.bf16.mxu0 0
        %932 = vmatpush2.bf16.msra.mxu0 0
        %933 = vmatprep.subr.bf16.mxu0 0
        %934 = vmatpush2.bf16.msra.mxu0 0
        %935 = vmatprep.subr.bf16.mxu0 0
        %936 = vmatpush2.bf16.msra.mxu0 0
        %937 = vmatprep.subr.bf16.mxu0 0
        %938 = vmatpush2.bf16.msra.mxu0 0
        %939 = vmatprep.subr.bf16.mxu0 0
        %940 = vmatpush2.bf16.msra.mxu0 0
        %941 = vmatprep.mubr.bf16.mxu0 0
        %942 = vmatmul.mubr.bf16.gmra.mxu0 %v895
        %v943 = vpop.f32.mrf.mxu0
        %v944 = vadd.f32 0.0, %v943
        %v945 = vpop.f32.mrf.mxu0
        %v946 = vpop.f32.mrf.mxu0
        %v947 = vadd.f32 0.0, %v946
        %v948 = vpop.f32.mrf.mxu0
        %949 = vmatprep.mubr.bf16.mxu0 0
        %950 = vmatmul.mubr.bf16.gmra.mxu0 %v898
        %v951 = vpop.f32.mrf.mxu0
        %v952 = vadd.f32 0.0, %v951
        %v953 = vpop.f32.mrf.mxu0
        %v954 = vpop.f32.mrf.mxu0
        %v955 = vadd.f32 0.0, %v954
        %v956 = vpop.f32.mrf.mxu0
        %957 = vmatprep.mubr.bf16.mxu0 0
        %958 = vmatmul.mubr.bf16.gmra.mxu0 %v901
        %v959 = vpop.f32.mrf.mxu0
        %v960 = vadd.f32 0.0, %v959
        %v961 = vpop.f32.mrf.mxu0
        %v962 = vpop.f32.mrf.mxu0
        %v963 = vadd.f32 0.0, %v962
        %v964 = vpop.f32.mrf.mxu0
        %965 = vmatprep.mubr.bf16.mxu0 0
        %966 = vmatmul.mubr.bf16.gmra.mxu0 %v904
        %v967 = vpop.f32.mrf.mxu0
        %v968 = vadd.f32 0.0, %v967
        %v969 = vpop.f32.mrf.mxu0
        %v970 = vpop.f32.mrf.mxu0
        %v971 = vadd.f32 0.0, %v970
        %v972 = vpop.f32.mrf.mxu0
        %973 = vmatprep.mubr.bf16.mxu0 0
        %974 = vmatmul.mubr.bf16.gmra.mxu0 %v907
        %v975 = vpop.f32.mrf.mxu0
        %v976 = vadd.f32 0.0, %v975
        %v977 = vpop.f32.mrf.mxu0
        %v978 = vpop.f32.mrf.mxu0
        %v979 = vpop.f32.mrf.mxu0
        %980 = vdwg.mxu0
        %v981 = vadd.f32 %v777, %v944
        %v982 = vadd.f32 %v780, %v947
        %v983 = vadd.f32 %v785, %v952
        %v984 = vadd.f32 %v788, %v955
        %v985 = vadd.f32 %v793, %v960
        %v986 = vadd.f32 %v796, %v963
        %v987 = vadd.f32 %v801, %v968
        %v988 = vadd.f32 %v804, %v971
        %v989 = vadd.f32 %v809, %v976
        %v990 = vld [vmem:[%s545 + $0x4] sm:$0xe]
        %v992 = vunpack.c.l.b16 %v990
        %v993 = vpack.c.b16 %v835, %v992
        %vm994 = vcmask 1046528
        %v995 = vrot.slane %v993, 1
        %v996 = vrot.slane %v845, 1
        %v997 = vsel %vm994, %v995, %v996
        %v998 = vrot.slane %v846, 1
        %v999 = vsel %vm994, %v996, %v998
        %v1000 = vrot.slane %v847, 1
        %v1001 = vsel %vm994, %v998, %v1000
        %v1002 = vrot.slane %v848, 1
        %v1003 = vsel %vm994, %v1000, %v1002
        %v1006 = vunpack.c.l.b16 %v553
        %v1007 = vunpack.c.l.b16 %v554
        %v1008 = vpack.c.b16 %v1007, %v1006
        %v1011 = vsel %vm636, %v997, 0
        %v1014 = vsel %vm636, %v999, 0
        %v1017 = vsel %vm636, %v1001, 0
        %v1020 = vsel %vm636, %v1003, 0
        %v1023 = vsel %vm636, %v1002, 0
        %1025 = vmatprep.subr.bf16.mxu0 0
        %1026 = vmatpush1.bf16.msra.mxu0 0
        %1027 = vmatprep.subr.bf16.mxu0 0
        %1028 = vmatpush1.bf16.msra.mxu0 0
        %1029 = vmatprep.subr.bf16.mxu0 0
        %1030 = vmatpush1.bf16.msra.mxu0 0
        %1031 = vmatprep.subr.bf16.mxu0 0
        %1032 = vmatpush1.bf16.msra.mxu0 0
        %1033 = vmatprep.subr.bf16.mxu0 0
        %1034 = vmatpush1.bf16.msra.mxu0 0
        %1035 = vmatprep.subr.bf16.mxu0 0
        %1036 = vmatpush1.bf16.msra.mxu0 0
        %1037 = vmatprep.subr.bf16.mxu0 0
        %1038 = vmatpush1.bf16.msra.mxu0 0
        %1039 = vmatprep.subr.bf16.mxu0 0
        %1040 = vmatpush1.bf16.msra.mxu0 %v1008
        %1041 = vmatprep.subr.bf16.mxu0 0
        %1042 = vmatpush2.bf16.msra.mxu0 0
        %1043 = vmatprep.subr.bf16.mxu0 0
        %1044 = vmatpush2.bf16.msra.mxu0 0
        %1045 = vmatprep.subr.bf16.mxu0 0
        %1046 = vmatpush2.bf16.msra.mxu0 0
        %1047 = vmatprep.subr.bf16.mxu0 0
        %1048 = vmatpush2.bf16.msra.mxu0 0
        %1049 = vmatprep.subr.bf16.mxu0 0
        %1050 = vmatpush2.bf16.msra.mxu0 0
        %1051 = vmatprep.subr.bf16.mxu0 0
        %1052 = vmatpush2.bf16.msra.mxu0 0
        %1053 = vmatprep.subr.bf16.mxu0 0
        %1054 = vmatpush2.bf16.msra.mxu0 0
        %1055 = vmatprep.subr.bf16.mxu0 0
        %1056 = vmatpush2.bf16.msra.mxu0 0
        %1057 = vmatprep.mubr.bf16.mxu0 0
        %1058 = vmatmul.mubr.bf16.gmra.mxu0 %v1011
        %v1059 = vpop.f32.mrf.mxu0
        %v1060 = vadd.f32 0.0, %v1059
        %v1061 = vpop.f32.mrf.mxu0
        %v1062 = vpop.f32.mrf.mxu0
        %v1063 = vadd.f32 0.0, %v1062
        %v1064 = vpop.f32.mrf.mxu0
        %1065 = vmatprep.mubr.bf16.mxu0 0
        %1066 = vmatmul.mubr.bf16.gmra.mxu0 %v1014
        %v1067 = vpop.f32.mrf.mxu0
        %v1068 = vadd.f32 0.0, %v1067
        %v1069 = vpop.f32.mrf.mxu0
        %v1070 = vpop.f32.mrf.mxu0
        %v1071 = vadd.f32 0.0, %v1070
        %v1072 = vpop.f32.mrf.mxu0
        %1073 = vmatprep.mubr.bf16.mxu0 0
        %1074 = vmatmul.mubr.bf16.gmra.mxu0 %v1017
        %v1075 = vpop.f32.mrf.mxu0
        %v1076 = vadd.f32 0.0, %v1075
        %v1077 = vpop.f32.mrf.mxu0
        %v1078 = vpop.f32.mrf.mxu0
        %v1079 = vadd.f32 0.0, %v1078
        %v1080 = vpop.f32.mrf.mxu0
        %1081 = vmatprep.mubr.bf16.mxu0 0
        %1082 = vmatmul.mubr.bf16.gmra.mxu0 %v1020
        %v1083 = vpop.f32.mrf.mxu0
        %v1084 = vadd.f32 0.0, %v1083
        %v1085 = vpop.f32.mrf.mxu0
        %v1086 = vpop.f32.mrf.mxu0
        %v1087 = vadd.f32 0.0, %v1086
        %v1088 = vpop.f32.mrf.mxu0
        %1089 = vmatprep.mubr.bf16.mxu0 0
        %1090 = vmatmul.mubr.bf16.gmra.mxu0 %v1023
        %v1091 = vpop.f32.mrf.mxu0
        %v1092 = vadd.f32 0.0, %v1091
        %v1093 = vpop.f32.mrf.mxu0
        %v1094 = vpop.f32.mrf.mxu0
        %v1095 = vpop.f32.mrf.mxu0
        %1096 = vdwg.mxu0
        %v1097 = vadd.f32 %v981, %v1060
        %v1098 = vadd.f32 %v982, %v1063
        %v1099 = vadd.f32 %v983, %v1068
        %v1100 = vadd.f32 %v984, %v1071
        %v1101 = vadd.f32 %v985, %v1076
        %v1102 = vadd.f32 %v986, %v1079
        %v1103 = vadd.f32 %v987, %v1084
        %v1104 = vadd.f32 %v988, %v1087
        %v1105 = vadd.f32 %v989, %v1092
        %v1106 = vld [vmem:[%s2] sm:$0x1]
        %v1108 = vlaneseq
        %v1109 = vshrl.u32 %v1108, 7
        %v1110 = vsub.s32 0, %v1109
        %v1111 = vrot.slane %v1106, %v1110
        %v1113 = vadd.f32 %v1097, %v1111
        %v1114 = vadd.f32 %v1098, %v1111
        %v1115 = vadd.f32 %v1099, %v1111
        %v1116 = vadd.f32 %v1100, %v1111
        %v1117 = vadd.f32 %v1101, %v1111
        %v1118 = vadd.f32 %v1102, %v1111
        %v1119 = vadd.f32 %v1103, %v1111
        %v1120 = vadd.f32 %v1104, %v1111
        %v1121 = vadd.f32 %v1105, %v1111
        %vm1122 = vcmask 261120
        %v1123 = vsel %vm1122, %v1113, 0.0
        %1124 = vadd.xlane.f32.xlu0 %v1123
        %v1125 = vpop.xlane.xlu0 %1124
        %v1126 = vsel %vm1122, %v1114, 0.0
        %1127 = vadd.xlane.f32.xlu0 %v1126
        %v1128 = vpop.xlane.xlu0 %1127
        %v1129 = vsel %vm1122, %v1115, 0.0
        %1130 = vadd.xlane.f32.xlu0 %v1129
        %v1131 = vpop.xlane.xlu0 %1130
        %v1132 = vsel %vm1122, %v1116, 0.0
        %1133 = vadd.xlane.f32.xlu0 %v1132
        %v1134 = vpop.xlane.xlu0 %1133
        %v1135 = vsel %vm1122, %v1117, 0.0
        %1136 = vadd.xlane.f32.xlu0 %v1135
        %v1137 = vpop.xlane.xlu0 %1136
        %v1138 = vsel %vm1122, %v1118, 0.0
        %1139 = vadd.xlane.f32.xlu0 %v1138
        %v1140 = vpop.xlane.xlu0 %1139
        %v1141 = vsel %vm1122, %v1119, 0.0
        %1142 = vadd.xlane.f32.xlu0 %v1141
        %v1143 = vpop.xlane.xlu0 %1142
        %v1144 = vsel %vm1122, %v1120, 0.0
        %1145 = vadd.xlane.f32.xlu0 %v1144
        %v1146 = vpop.xlane.xlu0 %1145
        %v1147 = vsel %vm1122, %v1121, 0.0
        %1148 = vadd.xlane.f32.xlu0 %v1147
        %v1149 = vpop.xlane.xlu0 %1148
        %v1150 = vrcp.pop 32.0
        %v1151 = vmul.f32 %v1125, %v1150
        %v1152 = vmul.f32 %v1128, %v1150
        %v1153 = vmul.f32 %v1131, %v1150
        %v1154 = vmul.f32 %v1134, %v1150
        %v1155 = vmul.f32 %v1137, %v1150
        %v1156 = vmul.f32 %v1140, %v1150
        %v1157 = vmul.f32 %v1143, %v1150
        %v1158 = vmul.f32 %v1146, %v1150
        %v1159 = vmul.f32 %v1149, %v1150
        %v1160 = vsub.f32 %v1113, %v1151
        %v1161 = vsub.f32 %v1114, %v1152
        %v1162 = vsub.f32 %v1115, %v1153
        %v1163 = vsub.f32 %v1116, %v1154
        %v1164 = vsub.f32 %v1117, %v1155
        %v1165 = vsub.f32 %v1118, %v1156
        %v1166 = vsub.f32 %v1119, %v1157
        %v1167 = vsub.f32 %v1120, %v1158
        %v1168 = vsub.f32 %v1121, %v1159
        %v1169 = vmul.f32 %v1160, %v1160
        %v1170 = vmul.f32 %v1161, %v1161
        %v1171 = vmul.f32 %v1162, %v1162
        %v1172 = vmul.f32 %v1163, %v1163
        %v1173 = vmul.f32 %v1164, %v1164
        %v1174 = vmul.f32 %v1165, %v1165
        %v1175 = vmul.f32 %v1166, %v1166
        %v1176 = vmul.f32 %v1167, %v1167
        %v1177 = vmul.f32 %v1168, %v1168
        %v1178 = vsel %vm1122, %v1169, 0.0
        %1179 = vadd.xlane.f32.xlu0 %v1178
        %v1180 = vpop.xlane.xlu0 %1179
        %v1181 = vsel %vm1122, %v1170, 0.0
        %1182 = vadd.xlane.f32.xlu0 %v1181
        %v1183 = vpop.xlane.xlu0 %1182
        %v1184 = vsel %vm1122, %v1171, 0.0
        %1185 = vadd.xlane.f32.xlu0 %v1184
        %v1186 = vpop.xlane.xlu0 %1185
        %v1187 = vsel %vm1122, %v1172, 0.0
        %1188 = vadd.xlane.f32.xlu0 %v1187
        %v1189 = vpop.xlane.xlu0 %1188
        %v1190 = vsel %vm1122, %v1173, 0.0
        %1191 = vadd.xlane.f32.xlu0 %v1190
        %v1192 = vpop.xlane.xlu0 %1191
        %v1193 = vsel %vm1122, %v1174, 0.0
        %1194 = vadd.xlane.f32.xlu0 %v1193
        %v1195 = vpop.xlane.xlu0 %1194
        %v1196 = vsel %vm1122, %v1175, 0.0
        %1197 = vadd.xlane.f32.xlu0 %v1196
        %v1198 = vpop.xlane.xlu0 %1197
        %v1199 = vsel %vm1122, %v1176, 0.0
        %1200 = vadd.xlane.f32.xlu0 %v1199
        %v1201 = vpop.xlane.xlu0 %1200
        %v1202 = vsel %vm1122, %v1177, 0.0
        %1203 = vadd.xlane.f32.xlu0 %v1202
        %v1204 = vpop.xlane.xlu0 %1203
        %v1205 = vmul.f32 %v1180, %v1150
        %v1206 = vmul.f32 %v1183, %v1150
        %v1207 = vmul.f32 %v1186, %v1150
        %v1208 = vmul.f32 %v1189, %v1150
        %v1209 = vmul.f32 %v1192, %v1150
        %v1210 = vmul.f32 %v1195, %v1150
        %v1211 = vmul.f32 %v1198, %v1150
        %v1212 = vmul.f32 %v1201, %v1150
        %v1213 = vmul.f32 %v1204, %v1150
        %v1214 = vadd.f32 %v1205, 1e-05
        %v1215 = vadd.f32 %v1206, 1e-05
        %v1216 = vadd.f32 %v1207, 1e-05
        %v1217 = vadd.f32 %v1208, 1e-05
        %v1218 = vadd.f32 %v1209, 1e-05
        %v1219 = vadd.f32 %v1210, 1e-05
        %v1220 = vadd.f32 %v1211, 1e-05
        %v1221 = vadd.f32 %v1212, 1e-05
        %v1222 = vadd.f32 %v1213, 1e-05
        %v1223 = vrsqrt.pop %v1214
        %v1224 = vrsqrt.pop %v1215
        %v1225 = vrsqrt.pop %v1216
        %v1226 = vrsqrt.pop %v1217
        %v1227 = vrsqrt.pop %v1218
        %v1228 = vrsqrt.pop %v1219
        %v1229 = vrsqrt.pop %v1220
        %v1230 = vrsqrt.pop %v1221
        %v1231 = vrsqrt.pop %v1222
        %v1232 = vmul.f32 %v1160, %v1223
        %v1233 = vmul.f32 %v1161, %v1224
        %v1234 = vmul.f32 %v1162, %v1225
        %v1235 = vmul.f32 %v1163, %v1226
        %v1236 = vmul.f32 %v1164, %v1227
        %v1237 = vmul.f32 %v1165, %v1228
        %v1238 = vmul.f32 %v1166, %v1229
        %v1239 = vmul.f32 %v1167, %v1230
        %v1240 = vmul.f32 %v1168, %v1231
        %v1241 = vld [vmem:[%s3] sm:$0x1]
        %v1243 = vlaneseq
        %v1244 = vshrl.u32 %v1243, 7
        %v1245 = vsub.s32 0, %v1244
        %v1246 = vrot.slane %v1241, %v1245
        %v1248 = vmul.f32 %v1232, %v1246
        %v1249 = vmul.f32 %v1233, %v1246
        %v1250 = vmul.f32 %v1234, %v1246
        %v1251 = vmul.f32 %v1235, %v1246
        %v1252 = vmul.f32 %v1236, %v1246
        %v1253 = vmul.f32 %v1237, %v1246
        %v1254 = vmul.f32 %v1238, %v1246
        %v1255 = vmul.f32 %v1239, %v1246
        %v1256 = vmul.f32 %v1240, %v1246
        %v1257 = vld [vmem:[%s4] sm:$0x1]
        %v1259 = vlaneseq
        %v1260 = vshrl.u32 %v1259, 7
        %v1261 = vsub.s32 0, %v1260
        %v1262 = vrot.slane %v1257, %v1261
        %v1264 = vadd.f32 %v1248, %v1262
        %v1265 = vadd.f32 %v1249, %v1262
        %v1266 = vadd.f32 %v1250, %v1262
        %v1267 = vadd.f32 %v1251, %v1262
        %v1268 = vadd.f32 %v1252, %v1262
        %v1269 = vadd.f32 %v1253, %v1262
        %v1270 = vadd.f32 %v1254, %v1262
        %v1271 = vadd.f32 %v1255, %v1262
        %v1272 = vadd.f32 %v1256, %v1262
        %v1273 = vxor.u32 %v1264, 2147483648
        %v1274 = vxor.u32 %v1265, 2147483648
        %v1275 = vxor.u32 %v1266, 2147483648
        %v1276 = vxor.u32 %v1267, 2147483648
        %v1277 = vxor.u32 %v1268, 2147483648
        %v1278 = vxor.u32 %v1269, 2147483648
        %v1279 = vxor.u32 %v1270, 2147483648
        %v1280 = vxor.u32 %v1271, 2147483648
        %v1281 = vxor.u32 %v1272, 2147483648
        %v1282 = vmul.f32 %v1273, 1.442695
        %v1283 = vpow.pop %v1282
        %v1284 = vmul.f32 %v1274, 1.442695
        %v1285 = vpow.pop %v1284
        %v1286 = vmul.f32 %v1275, 1.442695
        %v1287 = vpow.pop %v1286
        %v1288 = vmul.f32 %v1276, 1.442695
        %v1289 = vpow.pop %v1288
        %v1290 = vmul.f32 %v1277, 1.442695
        %v1291 = vpow.pop %v1290
        %v1292 = vmul.f32 %v1278, 1.442695
        %v1293 = vpow.pop %v1292
        %v1294 = vmul.f32 %v1279, 1.442695
        %v1295 = vpow.pop %v1294
        %v1296 = vmul.f32 %v1280, 1.442695
        %v1297 = vpow.pop %v1296
        %v1298 = vmul.f32 %v1281, 1.442695
        %v1299 = vpow.pop %v1298
        %v1300 = vadd.f32 %v1283, 1.0
        %v1301 = vadd.f32 %v1285, 1.0
        %v1302 = vadd.f32 %v1287, 1.0
        %v1303 = vadd.f32 %v1289, 1.0
        %v1304 = vadd.f32 %v1291, 1.0
        %v1305 = vadd.f32 %v1293, 1.0
        %v1306 = vadd.f32 %v1295, 1.0
        %v1307 = vadd.f32 %v1297, 1.0
        %v1308 = vadd.f32 %v1299, 1.0
        %v1309 = vrcp.pop %v1300
        %v1310 = vmul.f32 1.0, %v1309
        %v1311 = vrcp.pop %v1301
        %v1312 = vmul.f32 1.0, %v1311
        %v1313 = vrcp.pop %v1302
        %v1314 = vmul.f32 1.0, %v1313
        %v1315 = vrcp.pop %v1303
        %v1316 = vmul.f32 1.0, %v1315
        %v1317 = vrcp.pop %v1304
        %v1318 = vmul.f32 1.0, %v1317
        %v1319 = vrcp.pop %v1305
        %v1320 = vmul.f32 1.0, %v1319
        %v1321 = vrcp.pop %v1306
        %v1322 = vmul.f32 1.0, %v1321
        %v1323 = vrcp.pop %v1307
        %v1324 = vmul.f32 1.0, %v1323
        %v1325 = vrcp.pop %v1308
        %v1326 = vmul.f32 1.0, %v1325
        %v1327 = vmul.f32 %v1264, %v1310
        %v1328 = vmul.f32 %v1265, %v1312
        %v1329 = vmul.f32 %v1266, %v1314
        %v1330 = vmul.f32 %v1267, %v1316
        %v1331 = vmul.f32 %v1268, %v1318
        %v1332 = vmul.f32 %v1269, %v1320
        %v1333 = vmul.f32 %v1270, %v1322
        %v1334 = vmul.f32 %v1271, %v1324
        %v1335 = vmul.f32 %v1272, %v1326
        %1336 = vst.msk [vmem:[#allocation2] sm:$0xff] %vm1122, %v1327
        %1337 = vst.msk [vmem:[#allocation2 + $0x8] sm:$0xff] %vm1122, %v1328
        %1338 = vst.msk [vmem:[#allocation2 + $0x10] sm:$0xff] %vm1122, %v1329
        %1339 = vst.msk [vmem:[#allocation2 + $0x18] sm:$0xff] %vm1122, %v1330
        %1340 = vst.msk [vmem:[#allocation2 + $0x20] sm:$0xff] %vm1122, %v1331
        %1341 = vst.msk [vmem:[#allocation2 + $0x28] sm:$0xff] %vm1122, %v1332
        %1342 = vst.msk [vmem:[#allocation2 + $0x30] sm:$0xff] %vm1122, %v1333
        %1343 = vst.msk [vmem:[#allocation2 + $0x38] sm:$0xff] %vm1122, %v1334
        %1344 = vst.msk [vmem:[#allocation2 + $0x40] sm:$0xff] %vm1122, %v1335
        %1345 = vst [vmem:[#allocation3] sm:$0xf] 0
        %1346 = vst [vmem:[#allocation3 + $0x4] sm:$0xf] 0
        %1347 = vst [vmem:[#allocation3 + $0x8] sm:$0xf] 0
        %1348 = vst [vmem:[#allocation3 + $0xc] sm:$0x1] 0
        %s1349 = scalar_lea.vmem [#allocation2], 10
        %v1350 = vld [vmem:[%s1349] ss:$2 sm:$0xf]
        %v1351 = vpack.c.bf16 %v1350, %v1350
        %v1353 = vunpack.c.l.b16 %v1351
        %v1354 = vpack.c.b16 %v1353, %v1353
        %v1355 = vrot.slane %v1354, 5
        %v1356 = vrot.slane %v1355, 4
        %vm1359 = vcmask 257027
        %1360 = vst.msk [vmem:[#allocation3] sm:$0x8] %vm1359, %v1355
        %vm1361 = vcmask 253952
        %1362 = vst.msk [vmem:[#allocation3 + $0x4] sm:$0x1] %vm1361, %v1356
        %s1363 = scalar_lea.vmem [#allocation2], 28
        %v1364 = vld [vmem:[%s1363] ss:$2 sm:$0xf]
        %v1365 = vpack.c.bf16 %v1364, %v1364
        %v1367 = vunpack.c.l.b16 %v1365
        %v1368 = vpack.c.b16 %v1367, %v1367
        %v1370 = vshrl.u32 %v1368, 16
        %v1372 = vrot.slane %v1370, 6
        %v1373 = vshll.u32 %v1368, 16
        %v1375 = vrot.slane %v1373, 7
        %v1376 = vor.u32 %v1372, %v1375
        %vm1378 = vcmask 257025
        %vm1379 = vsmask.f32 3334
        %vm1380 = vmand %vm1378, %vm1379
        %v1381 = vld [vmem:[#allocation3 + $0x4] sm:$0xe]
        %v1382 = vsel %vm1380, %v1376, %v1381
        %1383 = vst [vmem:[#allocation3 + $0x4] sm:$0xe] %v1382
        %s1384 = scalar_lea.vmem [#allocation2], 46
        %v1385 = vld [vmem:[%s1384] ss:$2 sm:$0xf]
        %v1386 = vpack.c.bf16 %v1385, %v1385
        %vm1387 = vcmask 254976
        %1388 = vst.msk [vmem:[#allocation3 + $0x8] sm:$0x3] %vm1387, %v1386
        %s1389 = scalar_lea.vmem [#allocation2], 64
        %v1390 = vld [vmem:[%s1389] ss:$2 sm:$0xf]
        %v1391 = vpack.c.bf16 %v1390, %v1390
        %v1393 = vunpack.c.l.b16 %v1391
        %v1394 = vpack.c.b16 %v1393, %v1393
        %v1396 = vshrl.u32 %v1394, 16
        %v1398 = vrot.slane %v1396, 5
        %v1399 = vshll.u32 %v1394, 16
        %v1401 = vrot.slane %v1399, 6
        %v1402 = vor.u32 %v1398, %v1401
        %v1403 = vrot.slane %v1398, 4
        %vm1406 = vcmask 257026
        %vm1407 = vsmask.f32 7946
        %vm1408 = vmand %vm1406, %vm1407
        %v1409 = vld [vmem:[#allocation3 + $0x8] sm:$0xc]
        %v1410 = vsel %vm1408, %v1402, %v1409
        %1411 = vst [vmem:[#allocation3 + $0x8] sm:$0xc] %v1410
        %vm1412 = vcmask 253952
        %vm1413 = vsmask.f32 256
        %vm1414 = vmand %vm1412, %vm1413
        %v1415 = vld [vmem:[#allocation3 + $0xc] sm:$0x1]
        %v1416 = vsel %vm1414, %v1403, %v1415
        %1417 = vst [vmem:[#allocation3 + $0xc] sm:$0x1] %v1416
        %s1418 = scalar_lea.vmem [#allocation2], 9
        %v1419 = vld [vmem:[%s1418] ss:$2 sm:$0xf]
        %v1420 = vpack.c.bf16 %v1419, %v1419
        %v1422 = vunpack.c.l.b16 %v1420
        %v1423 = vpack.c.b16 %v1422, %v1422
        %v1425 = vshrl.u32 %v1423, 16
        %v1427 = vrot.slane %v1425, 5
        %v1428 = vshll.u32 %v1423, 16
        %v1430 = vrot.slane %v1428, 6
        %v1431 = vor.u32 %v1427, %v1430
        %v1432 = vrot.slane %v1427, 4
        %1433 = vrot.lane.b32.xlu0 %v1431, 32
        %v1434 = vpop.permute.xlu0 %1433
        %1435 = vrot.lane.b32.xlu0 %v1432, 32
        %v1436 = vpop.permute.xlu0 %1435
        %vm1439 = vcmask 519426
        %vm1440 = vmand %vm1439, %vm1407
        %v1441 = vld [vmem:[#allocation3] sm:$0xc]
        %v1442 = vsel %vm1440, %v1434, %v1441
        %1443 = vst [vmem:[#allocation3] sm:$0xc] %v1442
        %vm1444 = vcmask 516352
        %vm1445 = vmand %vm1444, %vm1413
        %v1446 = vld [vmem:[#allocation3 + $0x4] sm:$0x1]
        %v1447 = vsel %vm1445, %v1436, %v1446
        %1448 = vst [vmem:[#allocation3 + $0x4] sm:$0x1] %v1447
        %s1449 = scalar_lea.vmem [#allocation2], 27
        %v1450 = vld [vmem:[%s1449] ss:$2 sm:$0xf]
        %v1451 = vpack.c.bf16 %v1450, %v1450
        %v1453 = vunpack.c.l.b16 %v1451
        %v1454 = vpack.c.b16 %v1453, %v1453
        %v1455 = vrot.slane %v1454, 7
        %1456 = vrot.lane.b32.xlu0 %v1455, 32
        %v1457 = vpop.permute.xlu0 %1456
        %vm1459 = vcmask 518401
        %1460 = vst.msk [vmem:[#allocation3 + $0x4] sm:$0x6] %vm1459, %v1457
        %s1461 = scalar_lea.vmem [#allocation2], 45
        %v1462 = vld [vmem:[%s1461] ss:$2 sm:$0xf]
        %v1463 = vpack.c.bf16 %v1462, %v1462
        %v1465 = vunpack.c.l.b16 %v1463
        %v1466 = vpack.c.b16 %v1465, %v1465
        %v1468 = vshll.u32 %v1466, 16
        %v1470 = vrot.slane %v1468, 5
        %v1471 = vshrl.u32 %v1466, 16
        %v1473 = vrot.slane %v1471, 4
        %v1474 = vor.u32 %v1473, %v1470
        %v1475 = vrot.slane %v1474, 4
        %1476 = vrot.lane.b32.xlu0 %v1470, 32
        %v1477 = vpop.permute.xlu0 %1476
        %1478 = vrot.lane.b32.xlu0 %v1475, 32
        %v1479 = vpop.permute.xlu0 %1478
        %vm1482 = vcmask 519427
        %vm1483 = vsmask.f32 7950
        %vm1484 = vmand %vm1482, %vm1483
        %v1485 = vld [vmem:[#allocation3 + $0x4] sm:$0x8]
        %v1486 = vsel %vm1484, %v1477, %v1485
        %1487 = vst [vmem:[#allocation3 + $0x4] sm:$0x8] %v1486
        %vm1488 = vcmask 517376
        %vm1489 = vsmask.f32 1280
        %vm1490 = vmand %vm1488, %vm1489
        %v1491 = vld [vmem:[#allocation3 + $0x8] sm:$0x3]
        %v1492 = vsel %vm1490, %v1479, %v1491
        %1493 = vst [vmem:[#allocation3 + $0x8] sm:$0x3] %v1492
        %s1494 = scalar_lea.vmem [#allocation2], 63
        %v1495 = vld [vmem:[%s1494] ss:$2 sm:$0xf]
        %v1496 = vpack.c.bf16 %v1495, %v1495
        %v1498 = vunpack.c.l.b16 %v1496
        %v1499 = vpack.c.b16 %v1498, %v1498
        %v1500 = vrot.slane %v1499, 6
        %1501 = vrot.lane.b32.xlu0 %v1500, 32
        %v1502 = vpop.permute.xlu0 %1501
        %vm1504 = vcmask 519426
        %1505 = vst.msk [vmem:[#allocation3 + $0x8] sm:$0xc] %vm1504, %v1502
        %s1506 = scalar_lea.vmem [#allocation2], 1
        %v1507 = vld [vmem:[%s1506] ss:$2 sm:$0xf]
        %v1508 = vpack.c.bf16 %v1507, %v1507
        %v1510 = vunpack.c.l.b16 %v1508
        %v1511 = vpack.c.b16 %v1510, %v1510
        %v1513 = vshrl.u32 %v1511, 16
        %v1515 = vrot.slane %v1513, 7
        %v1516 = vshll.u32 %v1511, 16
        %v1518 = vor.u32 %v1515, %v1516
        %1519 = vrot.lane.b32.xlu0 %v1518, 64
        %v1520 = vpop.permute.xlu0 %1519
        %vm1522 = vcmask 780800
        %vm1523 = vsmask.f32 2306
        %vm1524 = vmand %vm1522, %vm1523
        %v1525 = vld [vmem:[#allocation3] sm:$0x7]
        %v1526 = vsel %vm1524, %v1520, %v1525
        %1527 = vst [vmem:[#allocation3] sm:$0x7] %v1526
        %s1528 = scalar_lea.vmem [#allocation2], 19
        %v1529 = vld [vmem:[%s1528] ss:$2 sm:$0xf]
        %v1530 = vpack.c.bf16 %v1529, %v1529
        %v1532 = vunpack.c.l.b16 %v1530
        %v1533 = vpack.c.b16 %v1532, %v1532
        %v1534 = vrot.slane %v1533, 5
        %v1535 = vrot.slane %v1534, 4
        %1536 = vrot.lane.b32.xlu0 %v1534, 64
        %v1537 = vpop.permute.xlu0 %1536
        %1538 = vrot.lane.b32.xlu0 %v1535, 64
        %v1539 = vpop.permute.xlu0 %1538
        %vm1542 = vcmask 781827
        %1543 = vst.msk [vmem:[#allocation3] sm:$0x8] %vm1542, %v1537
        %vm1544 = vcmask 778752
        %1545 = vst.msk [vmem:[#allocation3 + $0x4] sm:$0x1] %vm1544, %v1539
        %s1546 = scalar_lea.vmem [#allocation2], 37
        %v1547 = vld [vmem:[%s1546] ss:$2 sm:$0xf]
        %v1548 = vpack.c.bf16 %v1547, %v1547
        %v1550 = vunpack.c.l.b16 %v1548
        %v1551 = vpack.c.b16 %v1550, %v1550
        %v1553 = vshrl.u32 %v1551, 16
        %v1555 = vrot.slane %v1553, 6
        %v1556 = vshll.u32 %v1551, 16
        %v1558 = vrot.slane %v1556, 7
        %v1559 = vor.u32 %v1555, %v1558
        %1560 = vrot.lane.b32.xlu0 %v1559, 64
        %v1561 = vpop.permute.xlu0 %1560
        %vm1563 = vcmask 781825
        %vm1564 = vmand %vm1563, %vm1379
        %v1565 = vld [vmem:[#allocation3 + $0x4] sm:$0xe]
        %v1566 = vsel %vm1564, %v1561, %v1565
        %1567 = vst [vmem:[#allocation3 + $0x4] sm:$0xe] %v1566
        %s1568 = scalar_lea.vmem [#allocation2], 55
        %v1569 = vld [vmem:[%s1568] ss:$2 sm:$0xf]
        %v1570 = vpack.c.bf16 %v1569, %v1569
        %v1572 = vunpack.c.l.b16 %v1570
        %v1573 = vpack.c.b16 %v1572, %v1572
        %1574 = vrot.lane.b32.xlu0 %v1573, 64
        %v1575 = vpop.permute.xlu0 %1574
        %vm1577 = vcmask 779776
        %1578 = vst.msk [vmem:[#allocation3 + $0x8] sm:$0x3] %vm1577, %v1575
        %v1579 = vld [vmem:[#allocation2] ss:$2 sm:$0xf]
        %v1580 = vpack.c.bf16 %v1579, %v1579
        %v1582 = vunpack.c.l.b16 %v1580
        %v1583 = vpack.c.b16 %v1582, %v1582
        %1584 = vrot.lane.b32.xlu0 %v1583, 96
        %v1585 = vpop.permute.xlu0 %1584
        %vm1587 = vcmask 1042176
        %1588 = vst.msk [vmem:[#allocation3] sm:$0x3] %vm1587, %v1585
        %s1589 = scalar_lea.vmem [#allocation2], 18
        %v1590 = vld [vmem:[%s1589] ss:$2 sm:$0xf]
        %v1591 = vpack.c.bf16 %v1590, %v1590
        %v1593 = vunpack.c.l.b16 %v1591
        %v1594 = vpack.c.b16 %v1593, %v1593
        %v1596 = vshrl.u32 %v1594, 16
        %v1598 = vrot.slane %v1596, 5
        %v1599 = vshll.u32 %v1594, 16
        %v1601 = vrot.slane %v1599, 6
        %v1602 = vor.u32 %v1598, %v1601
        %v1603 = vrot.slane %v1598, 4
        %1604 = vrot.lane.b32.xlu0 %v1602, 96
        %v1605 = vpop.permute.xlu0 %1604
        %1606 = vrot.lane.b32.xlu0 %v1603, 96
        %v1607 = vpop.permute.xlu0 %1606
        %vm1610 = vcmask 1044226
        %vm1611 = vmand %vm1610, %vm1407
        %v1612 = vld [vmem:[#allocation3] sm:$0xc]
        %v1613 = vsel %vm1611, %v1605, %v1612
        %1614 = vst [vmem:[#allocation3] sm:$0xc] %v1613
        %vm1615 = vcmask 1041152
        %vm1616 = vmand %vm1615, %vm1413
        %v1617 = vld [vmem:[#allocation3 + $0x4] sm:$0x1]
        %v1618 = vsel %vm1616, %v1607, %v1617
        %1619 = vst [vmem:[#allocation3 + $0x4] sm:$0x1] %v1618
        %s1620 = scalar_lea.vmem [#allocation2], 36
        %v1621 = vld [vmem:[%s1620] ss:$2 sm:$0xf]
        %v1622 = vpack.c.bf16 %v1621, %v1621
        %v1624 = vunpack.c.l.b16 %v1622
        %v1625 = vpack.c.b16 %v1624, %v1624
        %v1626 = vrot.slane %v1625, 7
        %1627 = vrot.lane.b32.xlu0 %v1626, 96
        %v1628 = vpop.permute.xlu0 %1627
        %vm1630 = vcmask 1043201
        %1631 = vst.msk [vmem:[#allocation3 + $0x4] sm:$0x6] %vm1630, %v1628
        %s1632 = scalar_lea.vmem [#allocation2], 54
        %v1633 = vld [vmem:[%s1632] ss:$2 sm:$0xf]
        %v1634 = vpack.c.bf16 %v1633, %v1633
        %v1636 = vunpack.c.l.b16 %v1634
        %v1637 = vpack.c.b16 %v1636, %v1636
        %v1639 = vshll.u32 %v1637, 16
        %v1641 = vrot.slane %v1639, 5
        %v1642 = vshrl.u32 %v1637, 16
        %v1644 = vrot.slane %v1642, 4
        %v1645 = vor.u32 %v1644, %v1641
        %v1646 = vrot.slane %v1645, 4
        %1647 = vrot.lane.b32.xlu0 %v1641, 96
        %v1648 = vpop.permute.xlu0 %1647
        %1649 = vrot.lane.b32.xlu0 %v1646, 96
        %v1650 = vpop.permute.xlu0 %1649
        %vm1653 = vcmask 1044227
        %vm1654 = vmand %vm1653, %vm1483
        %v1655 = vld [vmem:[#allocation3 + $0x4] sm:$0x8]
        %v1656 = vsel %vm1654, %v1648, %v1655
        %1657 = vst [vmem:[#allocation3 + $0x4] sm:$0x8] %v1656
        %vm1658 = vcmask 1042176
        %vm1659 = vmand %vm1658, %vm1489
        %v1660 = vld [vmem:[#allocation3 + $0x8] sm:$0x3]
        %v1661 = vsel %vm1659, %v1650, %v1660
        %1662 = vst [vmem:[#allocation3 + $0x8] sm:$0x3] %v1661
        %v1663 = vld [vmem:[%s5] sm:$0xf]
        %v1664 = vld [vmem:[%s5 + $0x4] sm:$0xf]
        %v1665 = vld [vmem:[%s5 + $0x8] sm:$0xf]
        %v1666 = vld [vmem:[%s5 + $0xc] sm:$0xf]
        %v1667 = vld [vmem:[%s5 + $0x10] sm:$0xf]
        %v1668 = vld [vmem:[%s5 + $0x14] sm:$0xf]
        %v1669 = vld [vmem:[%s5 + $0x18] sm:$0xf]
        %v1670 = vld [vmem:[%s5 + $0x1c] sm:$0xf]
        %v1671 = vld [vmem:[%s5 + $0x20] sm:$0xf]
        %v1672 = vld [vmem:[%s5 + $0x24] sm:$0xf]
        %v1673 = vld [vmem:[%s5 + $0x28] sm:$0xf]
        %v1674 = vld [vmem:[%s5 + $0x2c] sm:$0xf]
        %v1675 = vld [vmem:[%s5 + $0x30] sm:$0xf]
        %v1676 = vld [vmem:[%s5 + $0x34] sm:$0xf]
        %v1677 = vld [vmem:[%s5 + $0x38] sm:$0xf]
        %v1678 = vld [vmem:[%s5 + $0x3c] sm:$0xf]
        %v1679 = vld [vmem:[%s5 + $0x40] sm:$0xf]
        %v1680 = vld [vmem:[%s5 + $0x44] sm:$0xf]
        %v1681 = vld [vmem:[%s5 + $0x48] sm:$0xf]
        %v1682 = vld [vmem:[%s5 + $0x4c] sm:$0xf]
        %v1683 = vld [vmem:[%s5 + $0x50] sm:$0xf]
        %v1684 = vld [vmem:[%s5 + $0x54] sm:$0xf]
        %v1685 = vld [vmem:[%s5 + $0x58] sm:$0xf]
        %v1686 = vld [vmem:[%s5 + $0x5c] sm:$0xf]
        %v1687 = vld [vmem:[%s5 + $0x60] sm:$0xf]
        %v1688 = vld [vmem:[%s5 + $0x64] sm:$0xf]
        %v1689 = vld [vmem:[%s5 + $0x68] sm:$0xf]
        %v1690 = vld [vmem:[%s5 + $0x6c] sm:$0xf]
        %v1691 = vld [vmem:[%s5 + $0x70] sm:$0xf]
        %v1692 = vld [vmem:[%s5 + $0x74] sm:$0xf]
        %v1693 = vld [vmem:[%s5 + $0x78] sm:$0xf]
        %v1694 = vld [vmem:[%s5 + $0x7c] sm:$0xf]
        %v1695 = vld [vmem:[%s5 + $0x80] sm:$0xf]
        %v1696 = vld [vmem:[%s5 + $0x84] sm:$0xf]
        %v1697 = vld [vmem:[%s5 + $0x88] sm:$0xf]
        %v1698 = vld [vmem:[%s5 + $0x8c] sm:$0xf]
        %v1699 = vld [vmem:[%s5 + $0x90] sm:$0xf]
        %v1700 = vld [vmem:[%s5 + $0x94] sm:$0xf]
        %v1701 = vld [vmem:[%s5 + $0x98] sm:$0xf]
        %v1702 = vld [vmem:[%s5 + $0x9c] sm:$0xf]
        %v1703 = vld [vmem:[%s5 + $0xa0] sm:$0xf]
        %v1704 = vld [vmem:[%s5 + $0xa4] sm:$0xf]
        %v1705 = vld [vmem:[%s5 + $0xa8] sm:$0xf]
        %v1706 = vld [vmem:[%s5 + $0xac] sm:$0xf]
        %v1707 = vld [vmem:[%s5 + $0xb0] sm:$0xf]
        %v1708 = vld [vmem:[%s5 + $0xb4] sm:$0xf]
        %v1709 = vld [vmem:[%s5 + $0xb8] sm:$0xf]
        %v1710 = vld [vmem:[%s5 + $0xbc] sm:$0xf]
        %v1711 = vld [vmem:[%s5 + $0xc0] sm:$0xf]
        %v1712 = vld [vmem:[%s5 + $0xc4] sm:$0xf]
        %v1713 = vld [vmem:[%s5 + $0xc8] sm:$0xf]
        %v1714 = vld [vmem:[%s5 + $0xcc] sm:$0xf]
        %v1715 = vld [vmem:[%s5 + $0xd0] sm:$0xf]
        %v1716 = vld [vmem:[%s5 + $0xd4] sm:$0xf]
        %v1717 = vld [vmem:[%s5 + $0xd8] sm:$0xf]
        %v1718 = vld [vmem:[%s5 + $0xdc] sm:$0xf]
        %v1719 = vld [vmem:[%s5 + $0xe0] sm:$0xf]
        %v1720 = vld [vmem:[%s5 + $0xe4] sm:$0xf]
        %v1721 = vld [vmem:[%s5 + $0xe8] sm:$0xf]
        %v1722 = vld [vmem:[%s5 + $0xec] sm:$0xf]
        %v1723 = vld [vmem:[%s5 + $0xf0] sm:$0xf]
        %v1724 = vld [vmem:[%s5 + $0xf4] sm:$0xf]
        %v1725 = vld [vmem:[%s5 + $0xf8] sm:$0xf]
        %v1726 = vld [vmem:[%s5 + $0xfc] sm:$0xf]
        %v1727 = vld [vmem:[#allocation3] sm:$0xf]
        %v1728 = vld [vmem:[#allocation3 + $0x4] sm:$0xf]
        %v1729 = vld [vmem:[#allocation3 + $0x8] sm:$0x3]
        %v1730 = vld [vmem:[#allocation3 + $0x8] sm:$0x7]
        %v1734 = vunpack.c.l.b16 %v1727
        %v1735 = vunpack.c.l.b16 %v1728
        %v1736 = vunpack.c.l.b16 %v1730
        %v1737 = vpack.c.b16 %v1735, %v1734
        %v1738 = vpack.c.b16 %v1736, %v1736
        %v1740 = vshrl.u32 %v1737, 16
        %v1742 = vshll.u32 %v1737, 16
        %v1744 = vrot.slane %v1742, 1
        %v1745 = vor.u32 %v1740, %v1744
        %v1747 = vshll.u32 %v1738, 16
        %v1749 = vrot.slane %v1747, 1
        %v1750 = vsel %vm590, %v1745, %v1749
        %v1751 = vshrl.u32 %v1738, 16
        %v1753 = vor.u32 %v1751, %v1749
        %v1772 = vunpack.c.l.b16 %v1679
        %v1773 = vunpack.c.l.b16 %v1680
        %v1774 = vunpack.c.l.b16 %v1681
        %v1775 = vunpack.c.l.b16 %v1682
        %v1776 = vunpack.c.l.b16 %v1683
        %v1777 = vunpack.c.l.b16 %v1684
        %v1778 = vunpack.c.l.b16 %v1685
        %v1779 = vunpack.c.l.b16 %v1686
        %v1780 = vunpack.c.l.b16 %v1687
        %v1781 = vunpack.c.l.b16 %v1688
        %v1782 = vunpack.c.l.b16 %v1689
        %v1783 = vunpack.c.l.b16 %v1690
        %v1784 = vunpack.c.l.b16 %v1691
        %v1785 = vunpack.c.l.b16 %v1692
        %v1786 = vunpack.c.l.b16 %v1693
        %v1787 = vunpack.c.l.b16 %v1694
        %v1788 = vpack.c.b16 %v1773, %v1772
        %v1789 = vpack.c.b16 %v1775, %v1774
        %v1790 = vpack.c.b16 %v1777, %v1776
        %v1791 = vpack.c.b16 %v1779, %v1778
        %v1792 = vpack.c.b16 %v1781, %v1780
        %v1793 = vpack.c.b16 %v1783, %v1782
        %v1794 = vpack.c.b16 %v1785, %v1784
        %v1795 = vpack.c.b16 %v1787, %v1786
        %1804 = vmatprep.subr.bf16.mxu0 0
        %1805 = vmatpush1.bf16.msra.mxu0 %v1795
        %1806 = vmatprep.subr.bf16.mxu0 0
        %1807 = vmatpush1.bf16.msra.mxu0 %v1794
        %1808 = vmatprep.subr.bf16.mxu0 0
        %1809 = vmatpush1.bf16.msra.mxu0 %v1793
        %1810 = vmatprep.subr.bf16.mxu0 0
        %1811 = vmatpush1.bf16.msra.mxu0 %v1792
        %1812 = vmatprep.subr.bf16.mxu0 0
        %1813 = vmatpush1.bf16.msra.mxu0 %v1791
        %1814 = vmatprep.subr.bf16.mxu0 0
        %1815 = vmatpush1.bf16.msra.mxu0 %v1790
        %1816 = vmatprep.subr.bf16.mxu0 0
        %1817 = vmatpush1.bf16.msra.mxu0 %v1789
        %1818 = vmatprep.subr.bf16.mxu0 0
        %1819 = vmatpush1.bf16.msra.mxu0 %v1788
        %1820 = vmatprep.subr.bf16.mxu0 0
        %1821 = vmatpush2.bf16.msra.mxu0 0
        %1822 = vmatprep.subr.bf16.mxu0 0
        %1823 = vmatpush2.bf16.msra.mxu0 0
        %1824 = vmatprep.subr.bf16.mxu0 0
        %1825 = vmatpush2.bf16.msra.mxu0 0
        %1826 = vmatprep.subr.bf16.mxu0 0
        %1827 = vmatpush2.bf16.msra.mxu0 0
        %1828 = vmatprep.subr.bf16.mxu0 0
        %1829 = vmatpush2.bf16.msra.mxu0 0
        %1830 = vmatprep.subr.bf16.mxu0 0
        %1831 = vmatpush2.bf16.msra.mxu0 0
        %1832 = vmatprep.subr.bf16.mxu0 0
        %1833 = vmatpush2.bf16.msra.mxu0 0
        %1834 = vmatprep.subr.bf16.mxu0 0
        %1835 = vmatpush2.bf16.msra.mxu0 0
        %1836 = vmatprep.mubr.bf16.mxu0 0
        %1837 = vmatmul.mubr.bf16.gmra.mxu0 %v1750
        %v1838 = vpop.f32.mrf.mxu0
        %v1839 = vadd.f32 0.0, %v1838
        %v1840 = vpop.f32.mrf.mxu0
        %v1841 = vpop.f32.mrf.mxu0
        %v1842 = vadd.f32 0.0, %v1841
        %v1843 = vpop.f32.mrf.mxu0
        %1844 = vmatprep.mubr.bf16.mxu0 0
        %1845 = vmatmul.mubr.bf16.gmra.mxu0 %v1753
        %v1846 = vpop.f32.mrf.mxu0
        %v1847 = vadd.f32 0.0, %v1846
        %v1848 = vpop.f32.mrf.mxu0
        %v1849 = vpop.f32.mrf.mxu0
        %v1850 = vpop.f32.mrf.mxu0
        %1851 = vdwg.mxu0
        %v1853 = vunpack.c.l.b16 %v1729
        %v1854 = vpack.c.b16 %v1853, %v1853
        %v1873 = vunpack.c.l.b16 %v1663
        %v1874 = vunpack.c.l.b16 %v1664
        %v1875 = vunpack.c.l.b16 %v1665
        %v1876 = vunpack.c.l.b16 %v1666
        %v1877 = vunpack.c.l.b16 %v1667
        %v1878 = vunpack.c.l.b16 %v1668
        %v1879 = vunpack.c.l.b16 %v1669
        %v1880 = vunpack.c.l.b16 %v1670
        %v1881 = vunpack.c.l.b16 %v1671
        %v1882 = vunpack.c.l.b16 %v1672
        %v1883 = vunpack.c.l.b16 %v1673
        %v1884 = vunpack.c.l.b16 %v1674
        %v1885 = vunpack.c.l.b16 %v1675
        %v1886 = vunpack.c.l.b16 %v1676
        %v1887 = vunpack.c.l.b16 %v1677
        %v1888 = vunpack.c.l.b16 %v1678
        %v1889 = vpack.c.b16 %v1874, %v1873
        %v1890 = vpack.c.b16 %v1876, %v1875
        %v1891 = vpack.c.b16 %v1878, %v1877
        %v1892 = vpack.c.b16 %v1880, %v1879
        %v1893 = vpack.c.b16 %v1882, %v1881
        %v1894 = vpack.c.b16 %v1884, %v1883
        %v1895 = vpack.c.b16 %v1886, %v1885
        %v1896 = vpack.c.b16 %v1888, %v1887
        %1905 = vmatprep.subr.bf16.mxu0 0
        %1906 = vmatpush1.bf16.msra.mxu0 %v1896
        %1907 = vmatprep.subr.bf16.mxu0 0
        %1908 = vmatpush1.bf16.msra.mxu0 %v1895
        %1909 = vmatprep.subr.bf16.mxu0 0
        %1910 = vmatpush1.bf16.msra.mxu0 %v1894
        %1911 = vmatprep.subr.bf16.mxu0 0
        %1912 = vmatpush1.bf16.msra.mxu0 %v1893
        %1913 = vmatprep.subr.bf16.mxu0 0
        %1914 = vmatpush1.bf16.msra.mxu0 %v1892
        %1915 = vmatprep.subr.bf16.mxu0 0
        %1916 = vmatpush1.bf16.msra.mxu0 %v1891
        %1917 = vmatprep.subr.bf16.mxu0 0
        %1918 = vmatpush1.bf16.msra.mxu0 %v1890
        %1919 = vmatprep.subr.bf16.mxu0 0
        %1920 = vmatpush1.bf16.msra.mxu0 %v1889
        %1921 = vmatprep.subr.bf16.mxu0 0
        %1922 = vmatpush2.bf16.msra.mxu0 0
        %1923 = vmatprep.subr.bf16.mxu0 0
        %1924 = vmatpush2.bf16.msra.mxu0 0
        %1925 = vmatprep.subr.bf16.mxu0 0
        %1926 = vmatpush2.bf16.msra.mxu0 0
        %1927 = vmatprep.subr.bf16.mxu0 0
        %1928 = vmatpush2.bf16.msra.mxu0 0
        %1929 = vmatprep.subr.bf16.mxu0 0
        %1930 = vmatpush2.bf16.msra.mxu0 0
        %1931 = vmatprep.subr.bf16.mxu0 0
        %1932 = vmatpush2.bf16.msra.mxu0 0
        %1933 = vmatprep.subr.bf16.mxu0 0
        %1934 = vmatpush2.bf16.msra.mxu0 0
        %1935 = vmatprep.subr.bf16.mxu0 0
        %1936 = vmatpush2.bf16.msra.mxu0 0
        %1937 = vmatprep.mubr.bf16.mxu0 0
        %1938 = vmatmul.mubr.bf16.gmra.mxu0 %v1737
        %v1939 = vpop.f32.mrf.mxu0
        %v1940 = vadd.f32 %v1839, %v1939
        %v1941 = vpop.f32.mrf.mxu0
        %v1942 = vpop.f32.mrf.mxu0
        %v1943 = vadd.f32 %v1842, %v1942
        %v1944 = vpop.f32.mrf.mxu0
        %1945 = vmatprep.mubr.bf16.mxu0 0
        %1946 = vmatmul.mubr.bf16.gmra.mxu0 %v1854
        %v1947 = vpop.f32.mrf.mxu0
        %v1948 = vadd.f32 %v1847, %v1947
        %v1949 = vpop.f32.mrf.mxu0
        %v1950 = vpop.f32.mrf.mxu0
        %v1951 = vpop.f32.mrf.mxu0
        %1952 = vdwg.mxu0
        %v1953 = vld [vmem:[#allocation3] sm:$0xc]
        %v1954 = vld [vmem:[#allocation3 + $0x4] sm:$0xf]
        %v1955 = vld [vmem:[#allocation3 + $0x8] sm:$0xf]
        %v1956 = vld [vmem:[#allocation3 + $0xc] sm:$0x1]
        %v1961 = vunpack.c.l.b16 %v1953
        %v1962 = vunpack.c.l.b16 %v1954
        %v1963 = vunpack.c.l.b16 %v1955
        %v1964 = vunpack.c.l.b16 %v1956
        %v1965 = vpack.c.b16 %v1962, %v1961
        %v1966 = vpack.c.b16 %v1964, %v1963
        %vm1967 = vsmask.f32 5376
        %v1969 = vshrl.u32 %v1965, 16
        %v1971 = vrot.slane %v1969, 2
        %v1972 = vshll.u32 %v1965, 16
        %v1974 = vrot.slane %v1972, 3
        %v1975 = vor.u32 %v1971, %v1974
        %v1977 = vshrl.u32 %v1966, 16
        %v1979 = vrot.slane %v1977, 2
        %v1980 = vshll.u32 %v1966, 16
        %v1982 = vrot.slane %v1980, 3
        %v1983 = vor.u32 %v1979, %v1982
        %v1984 = vsel %vm1967, %v1975, %v1983
        %v2003 = vunpack.c.l.b16 %v1695
        %v2004 = vunpack.c.l.b16 %v1696
        %v2005 = vunpack.c.l.b16 %v1697
        %v2006 = vunpack.c.l.b16 %v1698
        %v2007 = vunpack.c.l.b16 %v1699
        %v2008 = vunpack.c.l.b16 %v1700
        %v2009 = vunpack.c.l.b16 %v1701
        %v2010 = vunpack.c.l.b16 %v1702
        %v2011 = vunpack.c.l.b16 %v1703
        %v2012 = vunpack.c.l.b16 %v1704
        %v2013 = vunpack.c.l.b16 %v1705
        %v2014 = vunpack.c.l.b16 %v1706
        %v2015 = vunpack.c.l.b16 %v1707
        %v2016 = vunpack.c.l.b16 %v1708
        %v2017 = vunpack.c.l.b16 %v1709
        %v2018 = vunpack.c.l.b16 %v1710
        %v2019 = vpack.c.b16 %v2004, %v2003
        %v2020 = vpack.c.b16 %v2006, %v2005
        %v2021 = vpack.c.b16 %v2008, %v2007
        %v2022 = vpack.c.b16 %v2010, %v2009
        %v2023 = vpack.c.b16 %v2012, %v2011
        %v2024 = vpack.c.b16 %v2014, %v2013
        %v2025 = vpack.c.b16 %v2016, %v2015
        %v2026 = vpack.c.b16 %v2018, %v2017
        %2035 = vmatprep.subr.bf16.mxu0 0
        %2036 = vmatpush1.bf16.msra.mxu0 %v2026
        %2037 = vmatprep.subr.bf16.mxu0 0
        %2038 = vmatpush1.bf16.msra.mxu0 %v2025
        %2039 = vmatprep.subr.bf16.mxu0 0
        %2040 = vmatpush1.bf16.msra.mxu0 %v2024
        %2041 = vmatprep.subr.bf16.mxu0 0
        %2042 = vmatpush1.bf16.msra.mxu0 %v2023
        %2043 = vmatprep.subr.bf16.mxu0 0
        %2044 = vmatpush1.bf16.msra.mxu0 %v2022
        %2045 = vmatprep.subr.bf16.mxu0 0
        %2046 = vmatpush1.bf16.msra.mxu0 %v2021
        %2047 = vmatprep.subr.bf16.mxu0 0
        %2048 = vmatpush1.bf16.msra.mxu0 %v2020
        %2049 = vmatprep.subr.bf16.mxu0 0
        %2050 = vmatpush1.bf16.msra.mxu0 %v2019
        %2051 = vmatprep.subr.bf16.mxu0 0
        %2052 = vmatpush2.bf16.msra.mxu0 0
        %2053 = vmatprep.subr.bf16.mxu0 0
        %2054 = vmatpush2.bf16.msra.mxu0 0
        %2055 = vmatprep.subr.bf16.mxu0 0
        %2056 = vmatpush2.bf16.msra.mxu0 0
        %2057 = vmatprep.subr.bf16.mxu0 0
        %2058 = vmatpush2.bf16.msra.mxu0 0
        %2059 = vmatprep.subr.bf16.mxu0 0
        %2060 = vmatpush2.bf16.msra.mxu0 0
        %2061 = vmatprep.subr.bf16.mxu0 0
        %2062 = vmatpush2.bf16.msra.mxu0 0
        %2063 = vmatprep.subr.bf16.mxu0 0
        %2064 = vmatpush2.bf16.msra.mxu0 0
        %2065 = vmatprep.subr.bf16.mxu0 0
        %2066 = vmatpush2.bf16.msra.mxu0 0
        %2067 = vmatprep.mubr.bf16.mxu0 0
        %2068 = vmatmul.mubr.bf16.gmra.mxu0 %v1984
        %v2069 = vpop.f32.mrf.mxu0
        %v2070 = vadd.f32 0.0, %v2069
        %v2071 = vpop.f32.mrf.mxu0
        %v2072 = vpop.f32.mrf.mxu0
        %v2073 = vadd.f32 0.0, %v2072
        %v2074 = vpop.f32.mrf.mxu0
        %2075 = vmatprep.mubr.bf16.mxu0 0
        %2076 = vmatmul.mubr.bf16.gmra.mxu0 %v1983
        %v2077 = vpop.f32.mrf.mxu0
        %v2078 = vadd.f32 0.0, %v2077
        %v2079 = vpop.f32.mrf.mxu0
        %v2080 = vpop.f32.mrf.mxu0
        %v2081 = vpop.f32.mrf.mxu0
        %2082 = vdwg.mxu0
        %v2083 = vadd.f32 %v1940, %v2070
        %v2084 = vadd.f32 %v1943, %v2073
        %v2085 = vadd.f32 %v1948, %v2078
        %v2086 = vld [vmem:[#allocation3] sm:$0x8]
        %v2088 = vunpack.c.l.b16 %v2086
        %v2089 = vpack.c.b16 %v1962, %v2088
        %vm2090 = vcmask 1044480
        %v2091 = vrot.slane %v2089, 3
        %v2092 = vrot.slane %v1966, 3
        %v2093 = vsel %vm2090, %v2091, %v2092
        %v2112 = vunpack.c.l.b16 %v1711
        %v2113 = vunpack.c.l.b16 %v1712
        %v2114 = vunpack.c.l.b16 %v1713
        %v2115 = vunpack.c.l.b16 %v1714
        %v2116 = vunpack.c.l.b16 %v1715
        %v2117 = vunpack.c.l.b16 %v1716
        %v2118 = vunpack.c.l.b16 %v1717
        %v2119 = vunpack.c.l.b16 %v1718
        %v2120 = vunpack.c.l.b16 %v1719
        %v2121 = vunpack.c.l.b16 %v1720
        %v2122 = vunpack.c.l.b16 %v1721
        %v2123 = vunpack.c.l.b16 %v1722
        %v2124 = vunpack.c.l.b16 %v1723
        %v2125 = vunpack.c.l.b16 %v1724
        %v2126 = vunpack.c.l.b16 %v1725
        %v2127 = vunpack.c.l.b16 %v1726
        %v2128 = vpack.c.b16 %v2113, %v2112
        %v2129 = vpack.c.b16 %v2115, %v2114
        %v2130 = vpack.c.b16 %v2117, %v2116
        %v2131 = vpack.c.b16 %v2119, %v2118
        %v2132 = vpack.c.b16 %v2121, %v2120
        %v2133 = vpack.c.b16 %v2123, %v2122
        %v2134 = vpack.c.b16 %v2125, %v2124
        %v2135 = vpack.c.b16 %v2127, %v2126
        %2144 = vmatprep.subr.bf16.mxu0 0
        %2145 = vmatpush1.bf16.msra.mxu0 %v2135
        %2146 = vmatprep.subr.bf16.mxu0 0
        %2147 = vmatpush1.bf16.msra.mxu0 %v2134
        %2148 = vmatprep.subr.bf16.mxu0 0
        %2149 = vmatpush1.bf16.msra.mxu0 %v2133
        %2150 = vmatprep.subr.bf16.mxu0 0
        %2151 = vmatpush1.bf16.msra.mxu0 %v2132
        %2152 = vmatprep.subr.bf16.mxu0 0
        %2153 = vmatpush1.bf16.msra.mxu0 %v2131
        %2154 = vmatprep.subr.bf16.mxu0 0
        %2155 = vmatpush1.bf16.msra.mxu0 %v2130
        %2156 = vmatprep.subr.bf16.mxu0 0
        %2157 = vmatpush1.bf16.msra.mxu0 %v2129
        %2158 = vmatprep.subr.bf16.mxu0 0
        %2159 = vmatpush1.bf16.msra.mxu0 %v2128
        %2160 = vmatprep.subr.bf16.mxu0 0
        %2161 = vmatpush2.bf16.msra.mxu0 0
        %2162 = vmatprep.subr.bf16.mxu0 0
        %2163 = vmatpush2.bf16.msra.mxu0 0
        %2164 = vmatprep.subr.bf16.mxu0 0
        %2165 = vmatpush2.bf16.msra.mxu0 0
        %2166 = vmatprep.subr.bf16.mxu0 0
        %2167 = vmatpush2.bf16.msra.mxu0 0
        %2168 = vmatprep.subr.bf16.mxu0 0
        %2169 = vmatpush2.bf16.msra.mxu0 0
        %2170 = vmatprep.subr.bf16.mxu0 0
        %2171 = vmatpush2.bf16.msra.mxu0 0
        %2172 = vmatprep.subr.bf16.mxu0 0
        %2173 = vmatpush2.bf16.msra.mxu0 0
        %2174 = vmatprep.subr.bf16.mxu0 0
        %2175 = vmatpush2.bf16.msra.mxu0 0
        %2176 = vmatprep.mubr.bf16.mxu0 0
        %2177 = vmatmul.mubr.bf16.gmra.mxu0 %v2093
        %v2178 = vpop.f32.mrf.mxu0
        %v2179 = vadd.f32 0.0, %v2178
        %v2180 = vpop.f32.mrf.mxu0
        %v2181 = vpop.f32.mrf.mxu0
        %v2182 = vadd.f32 0.0, %v2181
        %v2183 = vpop.f32.mrf.mxu0
        %2184 = vmatprep.mubr.bf16.mxu0 0
        %2185 = vmatmul.mubr.bf16.gmra.mxu0 %v2092
        %v2186 = vpop.f32.mrf.mxu0
        %v2187 = vadd.f32 0.0, %v2186
        %v2188 = vpop.f32.mrf.mxu0
        %v2189 = vpop.f32.mrf.mxu0
        %v2190 = vpop.f32.mrf.mxu0
        %2191 = vdwg.mxu0
        %v2192 = vadd.f32 %v2083, %v2179
        %v2193 = vadd.f32 %v2084, %v2182
        %v2194 = vadd.f32 %v2085, %v2187
        %v2195 = vld [vmem:[%s6] sm:$0x1]
        %v2197 = vlaneseq
        %v2198 = vshrl.u32 %v2197, 7
        %v2199 = vsub.s32 0, %v2198
        %v2200 = vrot.slane %v2195, %v2199
        %v2202 = vadd.f32 %v2192, %v2200
        %v2203 = vadd.f32 %v2193, %v2200
        %v2204 = vadd.f32 %v2194, %v2200
        %vm2205 = vcmask 523264
        %v2206 = vsel %vm2205, %v2202, 0.0
        %2207 = vadd.xlane.f32.xlu0 %v2206
        %v2208 = vpop.xlane.xlu0 %2207
        %v2209 = vsel %vm2205, %v2203, 0.0
        %2210 = vadd.xlane.f32.xlu0 %v2209
        %v2211 = vpop.xlane.xlu0 %2210
        %vm2212 = vcmask 519168
        %v2213 = vsel %vm2212, %v2204, 0.0
        %2214 = vadd.xlane.f32.xlu0 %v2213
        %v2215 = vpop.xlane.xlu0 %2214
        %v2216 = vrcp.pop 64.0
        %v2217 = vmul.f32 %v2208, %v2216
        %v2218 = vmul.f32 %v2211, %v2216
        %v2219 = vmul.f32 %v2215, %v2216
        %v2220 = vsub.f32 %v2202, %v2217
        %v2221 = vsub.f32 %v2203, %v2218
        %v2222 = vsub.f32 %v2204, %v2219
        %v2223 = vmul.f32 %v2220, %v2220
        %v2224 = vmul.f32 %v2221, %v2221
        %v2225 = vmul.f32 %v2222, %v2222
        %v2226 = vsel %vm2205, %v2223, 0.0
        %2227 = vadd.xlane.f32.xlu0 %v2226
        %v2228 = vpop.xlane.xlu0 %2227
        %v2229 = vsel %vm2205, %v2224, 0.0
        %2230 = vadd.xlane.f32.xlu0 %v2229
        %v2231 = vpop.xlane.xlu0 %2230
        %v2232 = vsel %vm2212, %v2225, 0.0
        %2233 = vadd.xlane.f32.xlu0 %v2232
        %v2234 = vpop.xlane.xlu0 %2233
        %v2235 = vmul.f32 %v2228, %v2216
        %v2236 = vmul.f32 %v2231, %v2216
        %v2237 = vmul.f32 %v2234, %v2216
        %v2238 = vadd.f32 %v2235, 1e-05
        %v2239 = vadd.f32 %v2236, 1e-05
        %v2240 = vadd.f32 %v2237, 1e-05
        %v2241 = vrsqrt.pop %v2238
        %v2242 = vrsqrt.pop %v2239
        %v2243 = vrsqrt.pop %v2240
        %v2244 = vmul.f32 %v2220, %v2241
        %v2245 = vmul.f32 %v2221, %v2242
        %v2246 = vmul.f32 %v2222, %v2243
        %v2247 = vld [vmem:[%s7] sm:$0x1]
        %v2249 = vlaneseq
        %v2250 = vshrl.u32 %v2249, 7
        %v2251 = vsub.s32 0, %v2250
        %v2252 = vrot.slane %v2247, %v2251
        %v2254 = vmul.f32 %v2244, %v2252
        %v2255 = vmul.f32 %v2245, %v2252
        %v2256 = vmul.f32 %v2246, %v2252
        %v2257 = vld [vmem:[%s8] sm:$0x1]
        %v2259 = vlaneseq
        %v2260 = vshrl.u32 %v2259, 7
        %v2261 = vsub.s32 0, %v2260
        %v2262 = vrot.slane %v2257, %v2261
        %v2264 = vadd.f32 %v2254, %v2262
        %v2265 = vadd.f32 %v2255, %v2262
        %v2266 = vadd.f32 %v2256, %v2262
        %v2267 = vxor.u32 %v2264, 2147483648
        %v2268 = vxor.u32 %v2265, 2147483648
        %v2269 = vxor.u32 %v2266, 2147483648
        %v2270 = vmul.f32 %v2267, 1.442695
        %v2271 = vpow.pop %v2270
        %v2272 = vmul.f32 %v2268, 1.442695
        %v2273 = vpow.pop %v2272
        %v2274 = vmul.f32 %v2269, 1.442695
        %v2275 = vpow.pop %v2274
        %v2276 = vadd.f32 %v2271, 1.0
        %v2277 = vadd.f32 %v2273, 1.0
        %v2278 = vadd.f32 %v2275, 1.0
        %v2279 = vrcp.pop %v2276
        %v2280 = vmul.f32 1.0, %v2279
        %v2281 = vrcp.pop %v2277
        %v2282 = vmul.f32 1.0, %v2281
        %v2283 = vrcp.pop %v2278
        %v2284 = vmul.f32 1.0, %v2283
        %v2285 = vmul.f32 %v2264, %v2280
        %v2286 = vmul.f32 %v2265, %v2282
        %v2287 = vmul.f32 %v2266, %v2284
        %2288 = vst.msk [vmem:[#allocation4] sm:$0xff] %vm2205, %v2285
        %2289 = vst.msk [vmem:[#allocation4 + $0x8] sm:$0xff] %vm2205, %v2286
        %2290 = vst.msk [vmem:[#allocation4 + $0x10] sm:$0xf] %vm2212, %v2287
        %2291 = vst [vmem:[#allocation5] sm:$0xff] 0
        %2292 = vst [vmem:[#allocation5 + $0x8] sm:$0x11] 0
        %s2293 = scalar_lea.vmem [#allocation4], 6
        %v2294 = vld [vmem:[%s2293] ss:$2 sm:$0x3]
        %v2295 = vpack.c.bf16 %v2294, %v2294
        %v2297 = vunpack.c.l.b16 %v2295
        %v2298 = vpack.c.b16 %v2297, %v2297
        %v2299 = vrot.slane %v2298, 6
        %vm2301 = vcmask 518146
        %2302 = vst.msk [vmem:[#allocation5] sm:$0x4] %vm2301, %v2299
        %s2303 = scalar_lea.vmem [#allocation4], 16
        %v2304 = vld [vmem:[%s2303] ss:$2 sm:$0x3]
        %v2305 = vpack.c.bf16 %v2304, %v2304
        %v2307 = vunpack.c.l.b16 %v2305
        %v2308 = vpack.c.b16 %v2307, %v2307
        %v2310 = vshll.u32 %v2308, 16
        %v2312 = vrot.slane %v2310, 5
        %v2313 = vshrl.u32 %v2308, 16
        %v2315 = vrot.slane %v2313, 4
        %v2316 = vrot.slane %v2315, 4
        %vm2319 = vcmask 519171
        %vm2320 = vmand %vm2319, %vm1483
        %v2321 = vld [vmem:[#allocation5] sm:$0x8]
        %v2322 = vsel %vm2320, %v2312, %v2321
        %2323 = vst [vmem:[#allocation5] sm:$0x8] %v2322
        %vm2324 = vcmask 516096
        %vm2325 = vmand %vm2324, %vm1413
        %v2326 = vld [vmem:[#allocation5 + $0x8] sm:$0x1]
        %v2327 = vsel %vm2325, %v2316, %v2326
        %2328 = vst [vmem:[#allocation5 + $0x8] sm:$0x1] %v2327
        %s2329 = scalar_lea.vmem [#allocation4], 5
        %v2330 = vld [vmem:[%s2329] ss:$2 sm:$0x3]
        %v2331 = vpack.c.bf16 %v2330, %v2330
        %v2333 = vunpack.c.l.b16 %v2331
        %v2334 = vpack.c.b16 %v2333, %v2333
        %v2336 = vshrl.u32 %v2334, 16
        %v2338 = vrot.slane %v2336, 6
        %v2339 = vshll.u32 %v2334, 16
        %v2341 = vrot.slane %v2339, 7
        %v2342 = vor.u32 %v2338, %v2341
        %2343 = vrot.lane.b32.xlu0 %v2342, 64
        %v2344 = vpop.permute.xlu0 %2343
        %vm2346 = vcmask 1042945
        %vm2347 = vsmask.f32 2310
        %vm2348 = vmand %vm2346, %vm2347
        %v2349 = vld [vmem:[#allocation5] sm:$0x6]
        %v2350 = vsel %vm2348, %v2344, %v2349
        %2351 = vst [vmem:[#allocation5] sm:$0x6] %v2350
        %s2352 = scalar_lea.vmem [#allocation4], 15
        %v2353 = vld [vmem:[%s2352] ss:$2 sm:$0x3]
        %v2354 = vpack.c.bf16 %v2353, %v2353
        %v2356 = vunpack.c.l.b16 %v2354
        %v2357 = vpack.c.b16 %v2356, %v2356
        %v2358 = vrot.slane %v2357, 5
        %2359 = vrot.lane.b32.xlu0 %v2358, 64
        %v2360 = vpop.permute.xlu0 %2359
        %vm2362 = vcmask 1043971
        %2363 = vst.msk [vmem:[#allocation5] sm:$0x8] %vm2362, %v2360
        %s2364 = scalar_lea.vmem [#allocation4], 1
        %v2365 = vld [vmem:[%s2364] ss:$2 sm:$0x3]
        %v2366 = vpack.c.bf16 %v2365, %v2365
        %v2368 = vunpack.c.l.b16 %v2366
        %v2369 = vpack.c.b16 %v2368, %v2368
        %v2371 = vshrl.u32 %v2369, 16
        %v2373 = vrot.slane %v2371, 7
        %v2374 = vshll.u32 %v2369, 16
        %v2376 = vor.u32 %v2373, %v2374
        %vm2378 = vcmask 517120
        %vm2379 = vsmask.f32 1282
        %vm2380 = vmand %vm2378, %vm2379
        %v2381 = vld [vmem:[#allocation5 + $0x4] sm:$0x3]
        %v2382 = vsel %vm2380, %v2376, %v2381
        %2383 = vst [vmem:[#allocation5 + $0x4] sm:$0x3] %v2382
        %s2384 = scalar_lea.vmem [#allocation4], 11
        %v2385 = vld [vmem:[%s2384] ss:$2 sm:$0x3]
        %v2386 = vpack.c.bf16 %v2385, %v2385
        %v2388 = vunpack.c.l.b16 %v2386
        %v2389 = vpack.c.b16 %v2388, %v2388
        %v2390 = vrot.slane %v2389, 6
        %2392 = vst.msk [vmem:[#allocation5 + $0x4] sm:$0x4] %vm2301, %v2390
        %v2393 = vld [vmem:[#allocation4] ss:$2 sm:$0x3]
        %v2394 = vpack.c.bf16 %v2393, %v2393
        %v2396 = vunpack.c.l.b16 %v2394
        %v2397 = vpack.c.b16 %v2396, %v2396
        %2398 = vrot.lane.b32.xlu0 %v2397, 64
        %v2399 = vpop.permute.xlu0 %2398
        %vm2401 = vcmask 1040896
        %2402 = vst.msk [vmem:[#allocation5 + $0x4] sm:$0x1] %vm2401, %v2399
        %s2403 = scalar_lea.vmem [#allocation4], 10
        %v2404 = vld [vmem:[%s2403] ss:$2 sm:$0x3]
        %v2405 = vpack.c.bf16 %v2404, %v2404
        %v2407 = vunpack.c.l.b16 %v2405
        %v2408 = vpack.c.b16 %v2407, %v2407
        %v2410 = vshrl.u32 %v2408, 16
        %v2412 = vrot.slane %v2410, 6
        %v2413 = vshll.u32 %v2408, 16
        %v2415 = vrot.slane %v2413, 7
        %v2416 = vor.u32 %v2412, %v2415
        %2417 = vrot.lane.b32.xlu0 %v2416, 64
        %v2418 = vpop.permute.xlu0 %2417
        %v2420 = vld [vmem:[#allocation5 + $0x4] sm:$0x6]
        %v2421 = vsel %vm2348, %v2418, %v2420
        %2422 = vst [vmem:[#allocation5 + $0x4] sm:$0x6] %v2421
        %v2423 = vld [vmem:[%s9] sm:$0xf]
        %v2424 = vld [vmem:[%s9 + $0x4] sm:$0xf]
        %v2425 = vld [vmem:[%s9 + $0x8] sm:$0xf]
        %v2426 = vld [vmem:[%s9 + $0xc] sm:$0xf]
        %v2427 = vld [vmem:[%s9 + $0x10] sm:$0xf]
        %v2428 = vld [vmem:[%s9 + $0x14] sm:$0xf]
        %v2429 = vld [vmem:[%s9 + $0x18] sm:$0xf]
        %v2430 = vld [vmem:[%s9 + $0x1c] sm:$0xf]
        %v2431 = vld [vmem:[%s9 + $0x20] sm:$0xf]
        %v2432 = vld [vmem:[%s9 + $0x24] sm:$0xf]
        %v2433 = vld [vmem:[%s9 + $0x28] sm:$0xf]
        %v2434 = vld [vmem:[%s9 + $0x2c] sm:$0xf]
        %v2435 = vld [vmem:[%s9 + $0x30] sm:$0xf]
        %v2436 = vld [vmem:[%s9 + $0x34] sm:$0xf]
        %v2437 = vld [vmem:[%s9 + $0x38] sm:$0xf]
        %v2438 = vld [vmem:[%s9 + $0x3c] sm:$0xf]
        %v2439 = vld [vmem:[%s9 + $0x40] sm:$0xf]
        %v2440 = vld [vmem:[%s9 + $0x44] sm:$0xf]
        %v2441 = vld [vmem:[%s9 + $0x48] sm:$0xf]
        %v2442 = vld [vmem:[%s9 + $0x4c] sm:$0xf]
        %v2443 = vld [vmem:[%s9 + $0x50] sm:$0xf]
        %v2444 = vld [vmem:[%s9 + $0x54] sm:$0xf]
        %v2445 = vld [vmem:[%s9 + $0x58] sm:$0xf]
        %v2446 = vld [vmem:[%s9 + $0x5c] sm:$0xf]
        %v2447 = vld [vmem:[%s9 + $0x60] sm:$0xf]
        %v2448 = vld [vmem:[%s9 + $0x64] sm:$0xf]
        %v2449 = vld [vmem:[%s9 + $0x68] sm:$0xf]
        %v2450 = vld [vmem:[%s9 + $0x6c] sm:$0xf]
        %v2451 = vld [vmem:[%s9 + $0x70] sm:$0xf]
        %v2452 = vld [vmem:[%s9 + $0x74] sm:$0xf]
        %v2453 = vld [vmem:[%s9 + $0x78] sm:$0xf]
        %v2454 = vld [vmem:[%s9 + $0x7c] sm:$0xf]
        %v2455 = vld [vmem:[%s9 + $0x80] sm:$0xf]
        %v2456 = vld [vmem:[%s9 + $0x84] sm:$0xf]
        %v2457 = vld [vmem:[%s9 + $0x88] sm:$0xf]
        %v2458 = vld [vmem:[%s9 + $0x8c] sm:$0xf]
        %v2459 = vld [vmem:[%s9 + $0x90] sm:$0xf]
        %v2460 = vld [vmem:[%s9 + $0x94] sm:$0xf]
        %v2461 = vld [vmem:[%s9 + $0x98] sm:$0xf]
        %v2462 = vld [vmem:[%s9 + $0x9c] sm:$0xf]
        %v2463 = vld [vmem:[%s9 + $0xa0] sm:$0xf]
        %v2464 = vld [vmem:[%s9 + $0xa4] sm:$0xf]
        %v2465 = vld [vmem:[%s9 + $0xa8] sm:$0xf]
        %v2466 = vld [vmem:[%s9 + $0xac] sm:$0xf]
        %v2467 = vld [vmem:[%s9 + $0xb0] sm:$0xf]
        %v2468 = vld [vmem:[%s9 + $0xb4] sm:$0xf]
        %v2469 = vld [vmem:[%s9 + $0xb8] sm:$0xf]
        %v2470 = vld [vmem:[%s9 + $0xbc] sm:$0xf]
        %v2471 = vld [vmem:[%s9 + $0xc0] sm:$0xf]
        %v2472 = vld [vmem:[%s9 + $0xc4] sm:$0xf]
        %v2473 = vld [vmem:[%s9 + $0xc8] sm:$0xf]
        %v2474 = vld [vmem:[%s9 + $0xcc] sm:$0xf]
        %v2475 = vld [vmem:[%s9 + $0xd0] sm:$0xf]
        %v2476 = vld [vmem:[%s9 + $0xd4] sm:$0xf]
        %v2477 = vld [vmem:[%s9 + $0xd8] sm:$0xf]
        %v2478 = vld [vmem:[%s9 + $0xdc] sm:$0xf]
        %v2479 = vld [vmem:[%s9 + $0xe0] sm:$0xf]
        %v2480 = vld [vmem:[%s9 + $0xe4] sm:$0xf]
        %v2481 = vld [vmem:[%s9 + $0xe8] sm:$0xf]
        %v2482 = vld [vmem:[%s9 + $0xec] sm:$0xf]
        %v2483 = vld [vmem:[%s9 + $0xf0] sm:$0xf]
        %v2484 = vld [vmem:[%s9 + $0xf4] sm:$0xf]
        %v2485 = vld [vmem:[%s9 + $0xf8] sm:$0xf]
        %v2486 = vld [vmem:[%s9 + $0xfc] sm:$0xf]
        %v2487 = vld [vmem:[%s9 + $0x100] sm:$0xf]
        %v2488 = vld [vmem:[%s9 + $0x104] sm:$0xf]
        %v2489 = vld [vmem:[%s9 + $0x108] sm:$0xf]
        %v2490 = vld [vmem:[%s9 + $0x10c] sm:$0xf]
        %v2491 = vld [vmem:[%s9 + $0x110] sm:$0xf]
        %v2492 = vld [vmem:[%s9 + $0x114] sm:$0xf]
        %v2493 = vld [vmem:[%s9 + $0x118] sm:$0xf]
        %v2494 = vld [vmem:[%s9 + $0x11c] sm:$0xf]
        %v2495 = vld [vmem:[%s9 + $0x120] sm:$0xf]
        %v2496 = vld [vmem:[%s9 + $0x124] sm:$0xf]
        %v2497 = vld [vmem:[%s9 + $0x128] sm:$0xf]
        %v2498 = vld [vmem:[%s9 + $0x12c] sm:$0xf]
        %v2499 = vld [vmem:[%s9 + $0x130] sm:$0xf]
        %v2500 = vld [vmem:[%s9 + $0x134] sm:$0xf]
        %v2501 = vld [vmem:[%s9 + $0x138] sm:$0xf]
        %v2502 = vld [vmem:[%s9 + $0x13c] sm:$0xf]
        %v2503 = vld [vmem:[%s9 + $0x140] sm:$0xf]
        %v2504 = vld [vmem:[%s9 + $0x144] sm:$0xf]
        %v2505 = vld [vmem:[%s9 + $0x148] sm:$0xf]
        %v2506 = vld [vmem:[%s9 + $0x14c] sm:$0xf]
        %v2507 = vld [vmem:[%s9 + $0x150] sm:$0xf]
        %v2508 = vld [vmem:[%s9 + $0x154] sm:$0xf]
        %v2509 = vld [vmem:[%s9 + $0x158] sm:$0xf]
        %v2510 = vld [vmem:[%s9 + $0x15c] sm:$0xf]
        %v2511 = vld [vmem:[%s9 + $0x160] sm:$0xf]
        %v2512 = vld [vmem:[%s9 + $0x164] sm:$0xf]
        %v2513 = vld [vmem:[%s9 + $0x168] sm:$0xf]
        %v2514 = vld [vmem:[%s9 + $0x16c] sm:$0xf]
        %v2515 = vld [vmem:[%s9 + $0x170] sm:$0xf]
        %v2516 = vld [vmem:[%s9 + $0x174] sm:$0xf]
        %v2517 = vld [vmem:[%s9 + $0x178] sm:$0xf]
        %v2518 = vld [vmem:[%s9 + $0x17c] sm:$0xf]
        %v2519 = vld [vmem:[%s9 + $0x180] sm:$0xf]
        %v2520 = vld [vmem:[%s9 + $0x184] sm:$0xf]
        %v2521 = vld [vmem:[%s9 + $0x188] sm:$0xf]
        %v2522 = vld [vmem:[%s9 + $0x18c] sm:$0xf]
        %v2523 = vld [vmem:[%s9 + $0x190] sm:$0xf]
        %v2524 = vld [vmem:[%s9 + $0x194] sm:$0xf]
        %v2525 = vld [vmem:[%s9 + $0x198] sm:$0xf]
        %v2526 = vld [vmem:[%s9 + $0x19c] sm:$0xf]
        %v2527 = vld [vmem:[%s9 + $0x1a0] sm:$0xf]
        %v2528 = vld [vmem:[%s9 + $0x1a4] sm:$0xf]
        %v2529 = vld [vmem:[%s9 + $0x1a8] sm:$0xf]
        %v2530 = vld [vmem:[%s9 + $0x1ac] sm:$0xf]
        %v2531 = vld [vmem:[%s9 + $0x1b0] sm:$0xf]
        %v2532 = vld [vmem:[%s9 + $0x1b4] sm:$0xf]
        %v2533 = vld [vmem:[%s9 + $0x1b8] sm:$0xf]
        %v2534 = vld [vmem:[%s9 + $0x1bc] sm:$0xf]
        %v2535 = vld [vmem:[%s9 + $0x1c0] sm:$0xf]
        %v2536 = vld [vmem:[%s9 + $0x1c4] sm:$0xf]
        %v2537 = vld [vmem:[%s9 + $0x1c8] sm:$0xf]
        %v2538 = vld [vmem:[%s9 + $0x1cc] sm:$0xf]
        %v2539 = vld [vmem:[%s9 + $0x1d0] sm:$0xf]
        %v2540 = vld [vmem:[%s9 + $0x1d4] sm:$0xf]
        %v2541 = vld [vmem:[%s9 + $0x1d8] sm:$0xf]
        %v2542 = vld [vmem:[%s9 + $0x1dc] sm:$0xf]
        %v2543 = vld [vmem:[%s9 + $0x1e0] sm:$0xf]
        %v2544 = vld [vmem:[%s9 + $0x1e4] sm:$0xf]
        %v2545 = vld [vmem:[%s9 + $0x1e8] sm:$0xf]
        %v2546 = vld [vmem:[%s9 + $0x1ec] sm:$0xf]
        %v2547 = vld [vmem:[%s9 + $0x1f0] sm:$0xf]
        %v2548 = vld [vmem:[%s9 + $0x1f4] sm:$0xf]
        %v2549 = vld [vmem:[%s9 + $0x1f8] sm:$0xf]
        %v2550 = vld [vmem:[%s9 + $0x1fc] sm:$0xf]
        %v2551 = vld [vmem:[#allocation5] sm:$0x77]
        %v2552 = vld [vmem:[#allocation5] sm:$0xff]
        %v2554 = vunpack.c.l.b16 %v2552
        %v2555 = vunpack.c.h.b16 %v2552
        %v2556 = vpack.c.b16 %v2554, %v2554
        %v2557 = vpack.c.b16 %v2555, %v2555
        %v2559 = vshrl.u32 %v2556, 16
        %v2561 = vshll.u32 %v2556, 16
        %v2563 = vrot.slane %v2561, 1
        %v2564 = vor.u32 %v2559, %v2563
        %v2566 = vshrl.u32 %v2557, 16
        %v2568 = vshll.u32 %v2557, 16
        %v2570 = vrot.slane %v2568, 1
        %v2571 = vor.u32 %v2566, %v2570
        %v2606 = vunpack.c.l.b16 %v2455
        %v2607 = vunpack.c.l.b16 %v2456
        %v2608 = vunpack.c.l.b16 %v2457
        %v2609 = vunpack.c.l.b16 %v2458
        %v2610 = vunpack.c.l.b16 %v2459
        %v2611 = vunpack.c.l.b16 %v2460
        %v2612 = vunpack.c.l.b16 %v2461
        %v2613 = vunpack.c.l.b16 %v2462
        %v2614 = vunpack.c.l.b16 %v2463
        %v2615 = vunpack.c.l.b16 %v2464
        %v2616 = vunpack.c.l.b16 %v2465
        %v2617 = vunpack.c.l.b16 %v2466
        %v2618 = vunpack.c.l.b16 %v2467
        %v2619 = vunpack.c.l.b16 %v2468
        %v2620 = vunpack.c.l.b16 %v2469
        %v2621 = vunpack.c.l.b16 %v2470
        %v2622 = vunpack.c.l.b16 %v2471
        %v2623 = vunpack.c.l.b16 %v2472
        %v2624 = vunpack.c.l.b16 %v2473
        %v2625 = vunpack.c.l.b16 %v2474
        %v2626 = vunpack.c.l.b16 %v2475
        %v2627 = vunpack.c.l.b16 %v2476
        %v2628 = vunpack.c.l.b16 %v2477
        %v2629 = vunpack.c.l.b16 %v2478
        %v2630 = vunpack.c.l.b16 %v2479
        %v2631 = vunpack.c.l.b16 %v2480
        %v2632 = vunpack.c.l.b16 %v2481
        %v2633 = vunpack.c.l.b16 %v2482
        %v2634 = vunpack.c.l.b16 %v2483
        %v2635 = vunpack.c.l.b16 %v2484
        %v2636 = vunpack.c.l.b16 %v2485
        %v2637 = vunpack.c.l.b16 %v2486
        %v2638 = vpack.c.b16 %v2607, %v2606
        %v2639 = vpack.c.b16 %v2609, %v2608
        %v2640 = vpack.c.b16 %v2611, %v2610
        %v2641 = vpack.c.b16 %v2613, %v2612
        %v2642 = vpack.c.b16 %v2615, %v2614
        %v2643 = vpack.c.b16 %v2617, %v2616
        %v2644 = vpack.c.b16 %v2619, %v2618
        %v2645 = vpack.c.b16 %v2621, %v2620
        %v2646 = vpack.c.b16 %v2623, %v2622
        %v2647 = vpack.c.b16 %v2625, %v2624
        %v2648 = vpack.c.b16 %v2627, %v2626
        %v2649 = vpack.c.b16 %v2629, %v2628
        %v2650 = vpack.c.b16 %v2631, %v2630
        %v2651 = vpack.c.b16 %v2633, %v2632
        %v2652 = vpack.c.b16 %v2635, %v2634
        %v2653 = vpack.c.b16 %v2637, %v2636
        %2670 = vmatprep.subr.bf16.mxu0 0
        %2671 = vmatpush1.bf16.msra.mxu0 %v2645
        %2672 = vmatprep.subr.bf16.mxu0 0
        %2673 = vmatpush1.bf16.msra.mxu0 %v2644
        %2674 = vmatprep.subr.bf16.mxu0 0
        %2675 = vmatpush1.bf16.msra.mxu0 %v2643
        %2676 = vmatprep.subr.bf16.mxu0 0
        %2677 = vmatpush1.bf16.msra.mxu0 %v2642
        %2678 = vmatprep.subr.bf16.mxu0 0
        %2679 = vmatpush1.bf16.msra.mxu0 %v2641
        %2680 = vmatprep.subr.bf16.mxu0 0
        %2681 = vmatpush1.bf16.msra.mxu0 %v2640
        %2682 = vmatprep.subr.bf16.mxu0 0
        %2683 = vmatpush1.bf16.msra.mxu0 %v2639
        %2684 = vmatprep.subr.bf16.mxu0 0
        %2685 = vmatpush1.bf16.msra.mxu0 %v2638
        %2686 = vmatprep.subr.bf16.mxu0 0
        %2687 = vmatpush2.bf16.msra.mxu0 %v2653
        %2688 = vmatprep.subr.bf16.mxu0 0
        %2689 = vmatpush2.bf16.msra.mxu0 %v2652
        %2690 = vmatprep.subr.bf16.mxu0 0
        %2691 = vmatpush2.bf16.msra.mxu0 %v2651
        %2692 = vmatprep.subr.bf16.mxu0 0
        %2693 = vmatpush2.bf16.msra.mxu0 %v2650
        %2694 = vmatprep.subr.bf16.mxu0 0
        %2695 = vmatpush2.bf16.msra.mxu0 %v2649
        %2696 = vmatprep.subr.bf16.mxu0 0
        %2697 = vmatpush2.bf16.msra.mxu0 %v2648
        %2698 = vmatprep.subr.bf16.mxu0 0
        %2699 = vmatpush2.bf16.msra.mxu0 %v2647
        %2700 = vmatprep.subr.bf16.mxu0 0
        %2701 = vmatpush2.bf16.msra.mxu0 %v2646
        %2702 = vmatprep.mubr.bf16.mxu0 %v2571
        %2703 = vmatmul.mubr.bf16.gmra.mxu0 %v2564
        %v2704 = vpop.f32.mrf.mxu0
        %v2705 = vadd.f32 0.0, %v2704
        %v2706 = vpop.f32.mrf.mxu0
        %v2707 = vpop.f32.mrf.mxu0
        %v2708 = vpop.f32.mrf.mxu0
        %2709 = vdwg.mxu0
        %v2711 = vunpack.c.l.b16 %v2551
        %v2712 = vunpack.c.h.b16 %v2551
        %v2713 = vpack.c.b16 %v2711, %v2711
        %v2714 = vpack.c.b16 %v2712, %v2712
        %v2749 = vunpack.c.l.b16 %v2423
        %v2750 = vunpack.c.l.b16 %v2424
        %v2751 = vunpack.c.l.b16 %v2425
        %v2752 = vunpack.c.l.b16 %v2426
        %v2753 = vunpack.c.l.b16 %v2427
        %v2754 = vunpack.c.l.b16 %v2428
        %v2755 = vunpack.c.l.b16 %v2429
        %v2756 = vunpack.c.l.b16 %v2430
        %v2757 = vunpack.c.l.b16 %v2431
        %v2758 = vunpack.c.l.b16 %v2432
        %v2759 = vunpack.c.l.b16 %v2433
        %v2760 = vunpack.c.l.b16 %v2434
        %v2761 = vunpack.c.l.b16 %v2435
        %v2762 = vunpack.c.l.b16 %v2436
        %v2763 = vunpack.c.l.b16 %v2437
        %v2764 = vunpack.c.l.b16 %v2438
        %v2765 = vunpack.c.l.b16 %v2439
        %v2766 = vunpack.c.l.b16 %v2440
        %v2767 = vunpack.c.l.b16 %v2441
        %v2768 = vunpack.c.l.b16 %v2442
        %v2769 = vunpack.c.l.b16 %v2443
        %v2770 = vunpack.c.l.b16 %v2444
        %v2771 = vunpack.c.l.b16 %v2445
        %v2772 = vunpack.c.l.b16 %v2446
        %v2773 = vunpack.c.l.b16 %v2447
        %v2774 = vunpack.c.l.b16 %v2448
        %v2775 = vunpack.c.l.b16 %v2449
        %v2776 = vunpack.c.l.b16 %v2450
        %v2777 = vunpack.c.l.b16 %v2451
        %v2778 = vunpack.c.l.b16 %v2452
        %v2779 = vunpack.c.l.b16 %v2453
        %v2780 = vunpack.c.l.b16 %v2454
        %v2781 = vpack.c.b16 %v2750, %v2749
        %v2782 = vpack.c.b16 %v2752, %v2751
        %v2783 = vpack.c.b16 %v2754, %v2753
        %v2784 = vpack.c.b16 %v2756, %v2755
        %v2785 = vpack.c.b16 %v2758, %v2757
        %v2786 = vpack.c.b16 %v2760, %v2759
        %v2787 = vpack.c.b16 %v2762, %v2761
        %v2788 = vpack.c.b16 %v2764, %v2763
        %v2789 = vpack.c.b16 %v2766, %v2765
        %v2790 = vpack.c.b16 %v2768, %v2767
        %v2791 = vpack.c.b16 %v2770, %v2769
        %v2792 = vpack.c.b16 %v2772, %v2771
        %v2793 = vpack.c.b16 %v2774, %v2773
        %v2794 = vpack.c.b16 %v2776, %v2775
        %v2795 = vpack.c.b16 %v2778, %v2777
        %v2796 = vpack.c.b16 %v2780, %v2779
        %2813 = vmatprep.subr.bf16.mxu0 0
        %2814 = vmatpush1.bf16.msra.mxu0 %v2788
        %2815 = vmatprep.subr.bf16.mxu0 0
        %2816 = vmatpush1.bf16.msra.mxu0 %v2787
        %2817 = vmatprep.subr.bf16.mxu0 0
        %2818 = vmatpush1.bf16.msra.mxu0 %v2786
        %2819 = vmatprep.subr.bf16.mxu0 0
        %2820 = vmatpush1.bf16.msra.mxu0 %v2785
        %2821 = vmatprep.subr.bf16.mxu0 0
        %2822 = vmatpush1.bf16.msra.mxu0 %v2784
        %2823 = vmatprep.subr.bf16.mxu0 0
        %2824 = vmatpush1.bf16.msra.mxu0 %v2783
        %2825 = vmatprep.subr.bf16.mxu0 0
        %2826 = vmatpush1.bf16.msra.mxu0 %v2782
        %2827 = vmatprep.subr.bf16.mxu0 0
        %2828 = vmatpush1.bf16.msra.mxu0 %v2781
        %2829 = vmatprep.subr.bf16.mxu0 0
        %2830 = vmatpush2.bf16.msra.mxu0 %v2796
        %2831 = vmatprep.subr.bf16.mxu0 0
        %2832 = vmatpush2.bf16.msra.mxu0 %v2795
        %2833 = vmatprep.subr.bf16.mxu0 0
        %2834 = vmatpush2.bf16.msra.mxu0 %v2794
        %2835 = vmatprep.subr.bf16.mxu0 0
        %2836 = vmatpush2.bf16.msra.mxu0 %v2793
        %2837 = vmatprep.subr.bf16.mxu0 0
        %2838 = vmatpush2.bf16.msra.mxu0 %v2792
        %2839 = vmatprep.subr.bf16.mxu0 0
        %2840 = vmatpush2.bf16.msra.mxu0 %v2791
        %2841 = vmatprep.subr.bf16.mxu0 0
        %2842 = vmatpush2.bf16.msra.mxu0 %v2790
        %2843 = vmatprep.subr.bf16.mxu0 0
        %2844 = vmatpush2.bf16.msra.mxu0 %v2789
        %2845 = vmatprep.mubr.bf16.mxu0 %v2714
        %2846 = vmatmul.mubr.bf16.gmra.mxu0 %v2713
        %v2847 = vpop.f32.mrf.mxu0
        %v2848 = vadd.f32 %v2705, %v2847
        %v2849 = vpop.f32.mrf.mxu0
        %v2850 = vpop.f32.mrf.mxu0
        %v2851 = vpop.f32.mrf.mxu0
        %2852 = vdwg.mxu0
        %v2853 = vld [vmem:[#allocation5] sm:$0xee]
        %v2854 = vld [vmem:[#allocation5 + $0x8] sm:$0x11]
        %v2857 = vunpack.c.l.b16 %v2853
        %v2858 = vunpack.c.h.b16 %v2853
        %v2859 = vunpack.c.l.b16 %v2854
        %v2860 = vunpack.c.h.b16 %v2854
        %v2861 = vpack.c.b16 %v2859, %v2857
        %v2862 = vpack.c.b16 %v2860, %v2858
        %v2864 = vshrl.u32 %v2861, 16
        %v2866 = vrot.slane %v2864, 1
        %v2867 = vshll.u32 %v2861, 16
        %v2869 = vrot.slane %v2867, 2
        %v2870 = vor.u32 %v2866, %v2869
        %v2872 = vshrl.u32 %v2862, 16
        %v2874 = vrot.slane %v2872, 1
        %v2875 = vshll.u32 %v2862, 16
        %v2877 = vrot.slane %v2875, 2
        %v2878 = vor.u32 %v2874, %v2877
        %v2913 = vunpack.c.l.b16 %v2487
        %v2914 = vunpack.c.l.b16 %v2488
        %v2915 = vunpack.c.l.b16 %v2489
        %v2916 = vunpack.c.l.b16 %v2490
        %v2917 = vunpack.c.l.b16 %v2491
        %v2918 = vunpack.c.l.b16 %v2492
        %v2919 = vunpack.c.l.b16 %v2493
        %v2920 = vunpack.c.l.b16 %v2494
        %v2921 = vunpack.c.l.b16 %v2495
        %v2922 = vunpack.c.l.b16 %v2496
        %v2923 = vunpack.c.l.b16 %v2497
        %v2924 = vunpack.c.l.b16 %v2498
        %v2925 = vunpack.c.l.b16 %v2499
        %v2926 = vunpack.c.l.b16 %v2500
        %v2927 = vunpack.c.l.b16 %v2501
        %v2928 = vunpack.c.l.b16 %v2502
        %v2929 = vunpack.c.l.b16 %v2503
        %v2930 = vunpack.c.l.b16 %v2504
        %v2931 = vunpack.c.l.b16 %v2505
        %v2932 = vunpack.c.l.b16 %v2506
        %v2933 = vunpack.c.l.b16 %v2507
        %v2934 = vunpack.c.l.b16 %v2508
        %v2935 = vunpack.c.l.b16 %v2509
        %v2936 = vunpack.c.l.b16 %v2510
        %v2937 = vunpack.c.l.b16 %v2511
        %v2938 = vunpack.c.l.b16 %v2512
        %v2939 = vunpack.c.l.b16 %v2513
        %v2940 = vunpack.c.l.b16 %v2514
        %v2941 = vunpack.c.l.b16 %v2515
        %v2942 = vunpack.c.l.b16 %v2516
        %v2943 = vunpack.c.l.b16 %v2517
        %v2944 = vunpack.c.l.b16 %v2518
        %v2945 = vpack.c.b16 %v2914, %v2913
        %v2946 = vpack.c.b16 %v2916, %v2915
        %v2947 = vpack.c.b16 %v2918, %v2917
        %v2948 = vpack.c.b16 %v2920, %v2919
        %v2949 = vpack.c.b16 %v2922, %v2921
        %v2950 = vpack.c.b16 %v2924, %v2923
        %v2951 = vpack.c.b16 %v2926, %v2925
        %v2952 = vpack.c.b16 %v2928, %v2927
        %v2953 = vpack.c.b16 %v2930, %v2929
        %v2954 = vpack.c.b16 %v2932, %v2931
        %v2955 = vpack.c.b16 %v2934, %v2933
        %v2956 = vpack.c.b16 %v2936, %v2935
        %v2957 = vpack.c.b16 %v2938, %v2937
        %v2958 = vpack.c.b16 %v2940, %v2939
        %v2959 = vpack.c.b16 %v2942, %v2941
        %v2960 = vpack.c.b16 %v2944, %v2943
        %2977 = vmatprep.subr.bf16.mxu0 0
        %2978 = vmatpush1.bf16.msra.mxu0 %v2952
        %2979 = vmatprep.subr.bf16.mxu0 0
        %2980 = vmatpush1.bf16.msra.mxu0 %v2951
        %2981 = vmatprep.subr.bf16.mxu0 0
        %2982 = vmatpush1.bf16.msra.mxu0 %v2950
        %2983 = vmatprep.subr.bf16.mxu0 0
        %2984 = vmatpush1.bf16.msra.mxu0 %v2949
        %2985 = vmatprep.subr.bf16.mxu0 0
        %2986 = vmatpush1.bf16.msra.mxu0 %v2948
        %2987 = vmatprep.subr.bf16.mxu0 0
        %2988 = vmatpush1.bf16.msra.mxu0 %v2947
        %2989 = vmatprep.subr.bf16.mxu0 0
        %2990 = vmatpush1.bf16.msra.mxu0 %v2946
        %2991 = vmatprep.subr.bf16.mxu0 0
        %2992 = vmatpush1.bf16.msra.mxu0 %v2945
        %2993 = vmatprep.subr.bf16.mxu0 0
        %2994 = vmatpush2.bf16.msra.mxu0 %v2960
        %2995 = vmatprep.subr.bf16.mxu0 0
        %2996 = vmatpush2.bf16.msra.mxu0 %v2959
        %2997 = vmatprep.subr.bf16.mxu0 0
        %2998 = vmatpush2.bf16.msra.mxu0 %v2958
        %2999 = vmatprep.subr.bf16.mxu0 0
        %3000 = vmatpush2.bf16.msra.mxu0 %v2957
        %3001 = vmatprep.subr.bf16.mxu0 0
        %3002 = vmatpush2.bf16.msra.mxu0 %v2956
        %3003 = vmatprep.subr.bf16.mxu0 0
        %3004 = vmatpush2.bf16.msra.mxu0 %v2955
        %3005 = vmatprep.subr.bf16.mxu0 0
        %3006 = vmatpush2.bf16.msra.mxu0 %v2954
        %3007 = vmatprep.subr.bf16.mxu0 0
        %3008 = vmatpush2.bf16.msra.mxu0 %v2953
        %3009 = vmatprep.mubr.bf16.mxu0 %v2878
        %3010 = vmatmul.mubr.bf16.gmra.mxu0 %v2870
        %v3011 = vpop.f32.mrf.mxu0
        %v3012 = vadd.f32 0.0, %v3011
        %v3013 = vpop.f32.mrf.mxu0
        %v3014 = vpop.f32.mrf.mxu0
        %v3015 = vpop.f32.mrf.mxu0
        %3016 = vdwg.mxu0
        %v3017 = vadd.f32 %v2848, %v3012
        %v3018 = vld [vmem:[#allocation5] sm:$0xcc]
        %v3020 = vunpack.c.l.b16 %v3018
        %v3021 = vunpack.c.h.b16 %v3018
        %v3022 = vpack.c.b16 %v2859, %v3020
        %v3023 = vpack.c.b16 %v2860, %v3021
        %v3024 = vrot.slane %v3022, 2
        %v3025 = vrot.slane %v3023, 2
        %v3060 = vunpack.c.l.b16 %v2519
        %v3061 = vunpack.c.l.b16 %v2520
        %v3062 = vunpack.c.l.b16 %v2521
        %v3063 = vunpack.c.l.b16 %v2522
        %v3064 = vunpack.c.l.b16 %v2523
        %v3065 = vunpack.c.l.b16 %v2524
        %v3066 = vunpack.c.l.b16 %v2525
        %v3067 = vunpack.c.l.b16 %v2526
        %v3068 = vunpack.c.l.b16 %v2527
        %v3069 = vunpack.c.l.b16 %v2528
        %v3070 = vunpack.c.l.b16 %v2529
        %v3071 = vunpack.c.l.b16 %v2530
        %v3072 = vunpack.c.l.b16 %v2531
        %v3073 = vunpack.c.l.b16 %v2532
        %v3074 = vunpack.c.l.b16 %v2533
        %v3075 = vunpack.c.l.b16 %v2534
        %v3076 = vunpack.c.l.b16 %v2535
        %v3077 = vunpack.c.l.b16 %v2536
        %v3078 = vunpack.c.l.b16 %v2537
        %v3079 = vunpack.c.l.b16 %v2538
        %v3080 = vunpack.c.l.b16 %v2539
        %v3081 = vunpack.c.l.b16 %v2540
        %v3082 = vunpack.c.l.b16 %v2541
        %v3083 = vunpack.c.l.b16 %v2542
        %v3084 = vunpack.c.l.b16 %v2543
        %v3085 = vunpack.c.l.b16 %v2544
        %v3086 = vunpack.c.l.b16 %v2545
        %v3087 = vunpack.c.l.b16 %v2546
        %v3088 = vunpack.c.l.b16 %v2547
        %v3089 = vunpack.c.l.b16 %v2548
        %v3090 = vunpack.c.l.b16 %v2549
        %v3091 = vunpack.c.l.b16 %v2550
        %v3092 = vpack.c.b16 %v3061, %v3060
        %v3093 = vpack.c.b16 %v3063, %v3062
        %v3094 = vpack.c.b16 %v3065, %v3064
        %v3095 = vpack.c.b16 %v3067, %v3066
        %v3096 = vpack.c.b16 %v3069, %v3068
        %v3097 = vpack.c.b16 %v3071, %v3070
        %v3098 = vpack.c.b16 %v3073, %v3072
        %v3099 = vpack.c.b16 %v3075, %v3074
        %v3100 = vpack.c.b16 %v3077, %v3076
        %v3101 = vpack.c.b16 %v3079, %v3078
        %v3102 = vpack.c.b16 %v3081, %v3080
        %v3103 = vpack.c.b16 %v3083, %v3082
        %v3104 = vpack.c.b16 %v3085, %v3084
        %v3105 = vpack.c.b16 %v3087, %v3086
        %v3106 = vpack.c.b16 %v3089, %v3088
        %v3107 = vpack.c.b16 %v3091, %v3090
        %3124 = vmatprep.subr.bf16.mxu0 0
        %3125 = vmatpush1.bf16.msra.mxu0 %v3099
        %3126 = vmatprep.subr.bf16.mxu0 0
        %3127 = vmatpush1.bf16.msra.mxu0 %v3098
        %3128 = vmatprep.subr.bf16.mxu0 0
        %3129 = vmatpush1.bf16.msra.mxu0 %v3097
        %3130 = vmatprep.subr.bf16.mxu0 0
        %3131 = vmatpush1.bf16.msra.mxu0 %v3096
        %3132 = vmatprep.subr.bf16.mxu0 0
        %3133 = vmatpush1.bf16.msra.mxu0 %v3095
        %3134 = vmatprep.subr.bf16.mxu0 0
        %3135 = vmatpush1.bf16.msra.mxu0 %v3094
        %3136 = vmatprep.subr.bf16.mxu0 0
        %3137 = vmatpush1.bf16.msra.mxu0 %v3093
        %3138 = vmatprep.subr.bf16.mxu0 0
        %3139 = vmatpush1.bf16.msra.mxu0 %v3092
        %3140 = vmatprep.subr.bf16.mxu0 0
        %3141 = vmatpush2.bf16.msra.mxu0 %v3107
        %3142 = vmatprep.subr.bf16.mxu0 0
        %3143 = vmatpush2.bf16.msra.mxu0 %v3106
        %3144 = vmatprep.subr.bf16.mxu0 0
        %3145 = vmatpush2.bf16.msra.mxu0 %v3105
        %3146 = vmatprep.subr.bf16.mxu0 0
        %3147 = vmatpush2.bf16.msra.mxu0 %v3104
        %3148 = vmatprep.subr.bf16.mxu0 0
        %3149 = vmatpush2.bf16.msra.mxu0 %v3103
        %3150 = vmatprep.subr.bf16.mxu0 0
        %3151 = vmatpush2.bf16.msra.mxu0 %v3102
        %3152 = vmatprep.subr.bf16.mxu0 0
        %3153 = vmatpush2.bf16.msra.mxu0 %v3101
        %3154 = vmatprep.subr.bf16.mxu0 0
        %3155 = vmatpush2.bf16.msra.mxu0 %v3100
        %3156 = vmatprep.mubr.bf16.mxu0 %v3025
        %3157 = vmatmul.mubr.bf16.gmra.mxu0 %v3024
        %v3158 = vpop.f32.mrf.mxu0
        %v3159 = vadd.f32 0.0, %v3158
        %v3160 = vpop.f32.mrf.mxu0
        %v3161 = vpop.f32.mrf.mxu0
        %v3162 = vpop.f32.mrf.mxu0
        %3163 = vdwg.mxu0
        %v3164 = vadd.f32 %v3017, %v3159
        %v3165 = vld [vmem:[%s10] sm:$0x1]
        %v3167 = vlaneseq
        %v3168 = vshrl.u32 %v3167, 7
        %v3169 = vsub.s32 0, %v3168
        %v3170 = vrot.slane %v3165, %v3169
        %v3172 = vadd.f32 %v3164, %v3170
        %vm3173 = vcmask 128000
        %v3174 = vsel %vm3173, %v3172, 0.0
        %3175 = vadd.xlane.f32.xlu0 %v3174
        %v3176 = vpop.xlane.xlu0 %3175
        %v3177 = vrcp.pop 16.0
        %v3178 = vmul.f32 %v3176, %v3177
        %v3179 = vsub.f32 %v3172, %v3178
        %v3180 = vmul.f32 %v3179, %v3179
        %v3181 = vsel %vm3173, %v3180, 0.0
        %3182 = vadd.xlane.f32.xlu0 %v3181
        %v3183 = vpop.xlane.xlu0 %3182
        %v3184 = vmul.f32 %v3183, %v3177
        %v3185 = vadd.f32 %v3184, 1e-05
        %v3186 = vrsqrt.pop %v3185
        %v3187 = vmul.f32 %v3179, %v3186
        %v3188 = vld [vmem:[%s11] sm:$0x1]
        %v3190 = vlaneseq
        %v3191 = vshrl.u32 %v3190, 7
        %v3192 = vsub.s32 0, %v3191
        %v3193 = vrot.slane %v3188, %v3192
        %v3195 = vmul.f32 %v3187, %v3193
        %v3196 = vld [vmem:[%s12] sm:$0x1]
        %v3198 = vlaneseq
        %v3199 = vshrl.u32 %v3198, 7
        %v3200 = vsub.s32 0, %v3199
        %v3201 = vrot.slane %v3196, %v3200
        %v3203 = vadd.f32 %v3195, %v3201
        %v3204 = vxor.u32 %v3203, 2147483648
        %v3205 = vmul.f32 %v3204, 1.442695
        %v3206 = vpow.pop %v3205
        %v3207 = vadd.f32 %v3206, 1.0
        %v3208 = vrcp.pop %v3207
        %v3209 = vmul.f32 1.0, %v3208
        %v3210 = vmul.f32 %v3203, %v3209
        %v3212 = vrot.slane %v3210, 1
        %3213 = vrot.lane.b32.xlu0 %v3212, 16
        %v3214 = vpop.permute.xlu0 %3213
        %v3216 = vrot.slane %v3210, 3
        %3217 = vrot.lane.b32.xlu0 %v3216, 32
        %v3218 = vpop.permute.xlu0 %3217
        %v3220 = vrot.slane %v3210, 4
        %3221 = vrot.lane.b32.xlu0 %v3220, 48
        %v3222 = vpop.permute.xlu0 %3221
        %v3224 = vsel %vm636, %v3210, %v3214
        %v3225 = vsel %vm1122, %v3224, %v3218
        %vm3226 = vcmask 392192
        %v3227 = vsel %vm3226, %v3225, %v3222
        %v3228 = vpack.c.bf16 %v3227, %v3227
        %v3229 = vld [vmem:[%s13] sm:$0xff]
        %v3230 = vld [vmem:[%s13 + $0x8] sm:$0xff]
        %v3231 = vld [vmem:[%s13 + $0x10] sm:$0xff]
        %v3232 = vld [vmem:[%s13 + $0x18] sm:$0xff]
        %v3233 = vld [vmem:[%s13 + $0x20] sm:$0xff]
        %v3234 = vld [vmem:[%s13 + $0x28] sm:$0xff]
        %v3235 = vld [vmem:[%s13 + $0x30] sm:$0xff]
        %v3236 = vld [vmem:[%s13 + $0x38] sm:$0xff]
        %v3237 = vld [vmem:[%s14] sm:$0x3]
        %v3246 = vunpack.c.l.b16 %v3229
        %v3247 = vunpack.c.h.b16 %v3229
        %v3248 = vunpack.c.l.b16 %v3230
        %v3249 = vunpack.c.h.b16 %v3230
        %v3250 = vunpack.c.l.b16 %v3231
        %v3251 = vunpack.c.h.b16 %v3231
        %v3252 = vunpack.c.l.b16 %v3232
        %v3253 = vunpack.c.h.b16 %v3232
        %v3254 = vunpack.c.l.b16 %v3233
        %v3255 = vunpack.c.h.b16 %v3233
        %v3256 = vunpack.c.l.b16 %v3234
        %v3257 = vunpack.c.h.b16 %v3234
        %v3258 = vunpack.c.l.b16 %v3235
        %v3259 = vunpack.c.h.b16 %v3235
        %v3260 = vunpack.c.l.b16 %v3236
        %v3261 = vunpack.c.h.b16 %v3236
        %v3262 = vpack.c.b16 %v3248, %v3246
        %v3263 = vpack.c.b16 %v3249, %v3247
        %v3264 = vpack.c.b16 %v3252, %v3250
        %v3265 = vpack.c.b16 %v3253, %v3251
        %v3266 = vpack.c.b16 %v3256, %v3254
        %v3267 = vpack.c.b16 %v3257, %v3255
        %v3268 = vpack.c.b16 %v3260, %v3258
        %v3269 = vpack.c.b16 %v3261, %v3259
        %v3279 = vlaneseq
        %v3280 = vshrl.u32 %v3279, 7
        %v3281 = vsub.s32 0, %v3280
        %v3282 = vrot.slane %v3237, %v3281
        %v3283 = vlaneseq
        %v3284 = vshrl.u32 %v3283, 7
        %v3285 = vsub.s32 1, %v3284
        %v3286 = vrot.slane %v3237, %v3285
        %v3290 = vsel %vm2205, %v3228, 0
        %3292 = vmatprep.subr.bf16.mxu0 0
        %3293 = vmatpush1.bf16.msra.mxu0 0
        %3294 = vmatprep.subr.bf16.mxu0 0
        %3295 = vmatpush1.bf16.msra.mxu0 0
        %3296 = vmatprep.subr.bf16.mxu0 0
        %3297 = vmatpush1.bf16.msra.mxu0 0
        %3298 = vmatprep.subr.bf16.mxu0 0
        %3299 = vmatpush1.bf16.msra.mxu0 0
        %3300 = vmatprep.subr.bf16.mxu0 %v3269
        %3301 = vmatpush1.bf16.msra.mxu0 %v3268
        %3302 = vmatprep.subr.bf16.mxu0 %v3267
        %3303 = vmatpush1.bf16.msra.mxu0 %v3266
        %3304 = vmatprep.subr.bf16.mxu0 %v3265
        %3305 = vmatpush1.bf16.msra.mxu0 %v3264
        %3306 = vmatprep.subr.bf16.mxu0 %v3263
        %3307 = vmatpush1.bf16.msra.mxu0 %v3262
        %3308 = vmatprep.subr.bf16.mxu0 0
        %3309 = vmatpush2.bf16.msra.mxu0 0
        %3310 = vmatprep.subr.bf16.mxu0 0
        %3311 = vmatpush2.bf16.msra.mxu0 0
        %3312 = vmatprep.subr.bf16.mxu0 0
        %3313 = vmatpush2.bf16.msra.mxu0 0
        %3314 = vmatprep.subr.bf16.mxu0 0
        %3315 = vmatpush2.bf16.msra.mxu0 0
        %3316 = vmatprep.subr.bf16.mxu0 0
        %3317 = vmatpush2.bf16.msra.mxu0 0
        %3318 = vmatprep.subr.bf16.mxu0 0
        %3319 = vmatpush2.bf16.msra.mxu0 0
        %3320 = vmatprep.subr.bf16.mxu0 0
        %3321 = vmatpush2.bf16.msra.mxu0 0
        %3322 = vmatprep.subr.bf16.mxu0 0
        %3323 = vmatpush2.bf16.msra.mxu0 0
        %3324 = vmatprep.mubr.bf16.mxu0 0
        %3325 = vmatmul.mubr.bf16.gmra.mxu0 %v3290
        %v3326 = vpop.f32.mrf.mxu0
        %v3327 = vadd.f32 %v3282, %v3326
        %v3328 = vpop.f32.mrf.mxu0
        %v3329 = vadd.f32 %v3286, %v3328
        %v3330 = vpop.f32.mrf.mxu0
        %v3331 = vpop.f32.mrf.mxu0
        %3332 = vdwg.mxu0
        %v3333 = vxor.u32 %v3327, 2147483648
        %v3334 = vxor.u32 %v3329, 2147483648
        %v3335 = vmul.f32 %v3333, 1.442695
        %v3336 = vpow.pop %v3335
        %v3337 = vmul.f32 %v3334, 1.442695
        %v3338 = vpow.pop %v3337
        %v3339 = vadd.f32 %v3336, 1.0
        %v3340 = vadd.f32 %v3338, 1.0
        %v3341 = vrcp.pop %v3339
        %v3342 = vmul.f32 1.0, %v3341
        %v3343 = vrcp.pop %v3340
        %v3344 = vmul.f32 1.0, %v3343
        %v3345 = vmul.f32 %v3327, %v3342
        %v3346 = vmul.f32 %v3329, %v3344
        %v3347 = vpack.c.bf16 %v3345, %v3345
        %v3348 = vpack.c.bf16 %v3346, %v3346
        %v3349 = vld [vmem:[%s15] sm:$0xf]
        %v3350 = vld [vmem:[%s15 + $0x4] sm:$0xf]
        %v3351 = vld [vmem:[%s15 + $0x8] sm:$0xf]
        %v3352 = vld [vmem:[%s15 + $0xc] sm:$0xf]
        %v3353 = vld [vmem:[%s15 + $0x10] sm:$0xf]
        %v3354 = vld [vmem:[%s15 + $0x14] sm:$0xf]
        %v3355 = vld [vmem:[%s15 + $0x18] sm:$0xf]
        %v3356 = vld [vmem:[%s15 + $0x1c] sm:$0xf]
        %v3357 = vld [vmem:[%s15 + $0x20] sm:$0xf]
        %v3358 = vld [vmem:[%s15 + $0x24] sm:$0xf]
        %v3359 = vld [vmem:[%s15 + $0x28] sm:$0xf]
        %v3360 = vld [vmem:[%s15 + $0x2c] sm:$0xf]
        %v3361 = vld [vmem:[%s15 + $0x30] sm:$0xf]
        %v3362 = vld [vmem:[%s15 + $0x34] sm:$0xf]
        %v3363 = vld [vmem:[%s15 + $0x38] sm:$0xf]
        %v3364 = vld [vmem:[%s15 + $0x3c] sm:$0xf]
        %v3365 = vld [vmem:[%s15 + $0x40] sm:$0xf]
        %v3366 = vld [vmem:[%s15 + $0x44] sm:$0xf]
        %v3367 = vld [vmem:[%s15 + $0x48] sm:$0xf]
        %v3368 = vld [vmem:[%s15 + $0x4c] sm:$0xf]
        %v3369 = vld [vmem:[%s15 + $0x50] sm:$0xf]
        %v3370 = vld [vmem:[%s15 + $0x54] sm:$0xf]
        %v3371 = vld [vmem:[%s15 + $0x58] sm:$0xf]
        %v3372 = vld [vmem:[%s15 + $0x5c] sm:$0xf]
        %v3373 = vld [vmem:[%s15 + $0x60] sm:$0xf]
        %v3374 = vld [vmem:[%s15 + $0x64] sm:$0xf]
        %v3375 = vld [vmem:[%s15 + $0x68] sm:$0xf]
        %v3376 = vld [vmem:[%s15 + $0x6c] sm:$0xf]
        %v3377 = vld [vmem:[%s15 + $0x70] sm:$0xf]
        %v3378 = vld [vmem:[%s15 + $0x74] sm:$0xf]
        %v3379 = vld [vmem:[%s15 + $0x78] sm:$0xf]
        %v3380 = vld [vmem:[%s15 + $0x7c] sm:$0xf]
        %v3381 = vld [vmem:[%s16] sm:$0x1]
        %v3414 = vunpack.c.l.b16 %v3349
        %v3415 = vunpack.c.l.b16 %v3350
        %v3416 = vunpack.c.l.b16 %v3351
        %v3417 = vunpack.c.l.b16 %v3352
        %v3418 = vunpack.c.l.b16 %v3353
        %v3419 = vunpack.c.l.b16 %v3354
        %v3420 = vunpack.c.l.b16 %v3355
        %v3421 = vunpack.c.l.b16 %v3356
        %v3422 = vunpack.c.l.b16 %v3357
        %v3423 = vunpack.c.l.b16 %v3358
        %v3424 = vunpack.c.l.b16 %v3359
        %v3425 = vunpack.c.l.b16 %v3360
        %v3426 = vunpack.c.l.b16 %v3361
        %v3427 = vunpack.c.l.b16 %v3362
        %v3428 = vunpack.c.l.b16 %v3363
        %v3429 = vunpack.c.l.b16 %v3364
        %v3430 = vunpack.c.l.b16 %v3365
        %v3431 = vunpack.c.l.b16 %v3366
        %v3432 = vunpack.c.l.b16 %v3367
        %v3433 = vunpack.c.l.b16 %v3368
        %v3434 = vunpack.c.l.b16 %v3369
        %v3435 = vunpack.c.l.b16 %v3370
        %v3436 = vunpack.c.l.b16 %v3371
        %v3437 = vunpack.c.l.b16 %v3372
        %v3438 = vunpack.c.l.b16 %v3373
        %v3439 = vunpack.c.l.b16 %v3374
        %v3440 = vunpack.c.l.b16 %v3375
        %v3441 = vunpack.c.l.b16 %v3376
        %v3442 = vunpack.c.l.b16 %v3377
        %v3443 = vunpack.c.l.b16 %v3378
        %v3444 = vunpack.c.l.b16 %v3379
        %v3445 = vunpack.c.l.b16 %v3380
        %v3446 = vpack.c.b16 %v3415, %v3414
        %v3447 = vpack.c.b16 %v3417, %v3416
        %v3448 = vpack.c.b16 %v3419, %v3418
        %v3449 = vpack.c.b16 %v3421, %v3420
        %v3450 = vpack.c.b16 %v3423, %v3422
        %v3451 = vpack.c.b16 %v3425, %v3424
        %v3452 = vpack.c.b16 %v3427, %v3426
        %v3453 = vpack.c.b16 %v3429, %v3428
        %v3454 = vpack.c.b16 %v3431, %v3430
        %v3455 = vpack.c.b16 %v3433, %v3432
        %v3456 = vpack.c.b16 %v3435, %v3434
        %v3457 = vpack.c.b16 %v3437, %v3436
        %v3458 = vpack.c.b16 %v3439, %v3438
        %v3459 = vpack.c.b16 %v3441, %v3440
        %v3460 = vpack.c.b16 %v3443, %v3442
        %v3461 = vpack.c.b16 %v3445, %v3444
        %3478 = vmatprep.subr.bf16.mxu0 0
        %3479 = vmatpush1.bf16.msra.mxu0 %v3453
        %3480 = vmatprep.subr.bf16.mxu0 0
        %3481 = vmatpush1.bf16.msra.mxu0 %v3452
        %3482 = vmatprep.subr.bf16.mxu0 0
        %3483 = vmatpush1.bf16.msra.mxu0 %v3451
        %3484 = vmatprep.subr.bf16.mxu0 0
        %3485 = vmatpush1.bf16.msra.mxu0 %v3450
        %3486 = vmatprep.subr.bf16.mxu0 0
        %3487 = vmatpush1.bf16.msra.mxu0 %v3449
        %3488 = vmatprep.subr.bf16.mxu0 0
        %3489 = vmatpush1.bf16.msra.mxu0 %v3448
        %3490 = vmatprep.subr.bf16.mxu0 0
        %3491 = vmatpush1.bf16.msra.mxu0 %v3447
        %3492 = vmatprep.subr.bf16.mxu0 0
        %3493 = vmatpush1.bf16.msra.mxu0 %v3446
        %3494 = vmatprep.subr.bf16.mxu0 0
        %3495 = vmatpush2.bf16.msra.mxu0 %v3461
        %3496 = vmatprep.subr.bf16.mxu0 0
        %3497 = vmatpush2.bf16.msra.mxu0 %v3460
        %3498 = vmatprep.subr.bf16.mxu0 0
        %3499 = vmatpush2.bf16.msra.mxu0 %v3459
        %3500 = vmatprep.subr.bf16.mxu0 0
        %3501 = vmatpush2.bf16.msra.mxu0 %v3458
        %3502 = vmatprep.subr.bf16.mxu0 0
        %3503 = vmatpush2.bf16.msra.mxu0 %v3457
        %3504 = vmatprep.subr.bf16.mxu0 0
        %3505 = vmatpush2.bf16.msra.mxu0 %v3456
        %3506 = vmatprep.subr.bf16.mxu0 0
        %3507 = vmatpush2.bf16.msra.mxu0 %v3455
        %3508 = vmatprep.subr.bf16.mxu0 0
        %3509 = vmatpush2.bf16.msra.mxu0 %v3454
        %3510 = vmatprep.mubr.bf16.mxu0 %v3348
        %3511 = vmatmul.mubr.bf16.gmra.mxu0 %v3347
        %v3512 = vpop.f32.mrf.mxu0
        %v3513 = vadd.f32 %v3381, %v3512
        %v3514 = vpop.f32.mrf.mxu0
        %v3515 = vpop.f32.mrf.mxu0
        %v3516 = vpop.f32.mrf.mxu0
        %3517 = vdwg.mxu0
        %v3518 = vsel %vm636, %v3513, 0.0
        %3519 = vst [vmem:[%s540] sm:$0x1] %v3518
        %s3520 = sand.u32 %s401, 1
        %s3521 = scalar_lea.sflag [#allocation7], %s3520
        %s3522 = sand.u32 %s401, 1
        %s3523 = scalar_lea.vmem [#allocation6], %s3522
        // Predicated region
        $region89: #{encoder_forward.1} parent=87 // pred_check
          %p3524 = pneg %p411
        $region90: #{encoder_forward.1} parent=87 // pred_check_branch
          %3526 = sbr.rel (%p3524) target = $region92
        $region91: #{encoder_forward.1} parent=87 // pred_region
          %s3528 = ssub.s32 16, 16
          %3529 = vsyncadd %s3521, %s3528
          %s3530 = smul.addr %s31, 16
          %s3531 = scalar_lea.hbm %s17, %s3530
          %s3533 = sshll.u32 %s3523, 4
          %s3534 = int_to_ptr.vmem [resolvable:$true] %s3533
          %3536 = dma.vmem_to_hbm [thread:$0]  %s3534, 16, %s3531, %s3521
        $region92: #{encoder_forward.1} parent=87 // pred_fallthru
          _
      $region88: #{encoder_forward.1} parent=5 // pred_fallthru
        _
      %p3537 = scmp.le.s32.totalorder 2, %s26
      // Predicated region
      $region93: #{encoder_forward.1} parent=5 // pred_check
        %p3538 = pneg %p3537
      $region94: #{encoder_forward.1} parent=5 // pred_check_branch
        %3540 = sbr.rel (%p3538) target = $region96
      $region95: #{encoder_forward.1} parent=5 // pred_region
        %s3541 = ssub.s32 %s26, 2
        // Predicated region
        $region97: #{encoder_forward.1} parent=95 // pred_check
          %p3542 = pneg %p417
        $region98: #{encoder_forward.1} parent=95 // pred_check_branch
          %3544 = sbr.rel (%p3542) target = $region100
        $region99: #{encoder_forward.1} parent=95 // pred_region
          %s3545 = sand.u32 %s402, 1
          %s3546 = scalar_lea.sflag [#allocation7], %s3545
          %s3547 = sand.u32 %s402, 1
          %s3548 = scalar_lea.vmem [#allocation6], %s3547
          %3549 = dma.done %s3546, 16
        $region100: #{encoder_forward.1} parent=95 // pred_fallthru
          _
      $region96: #{encoder_forward.1} parent=5 // pred_fallthru
        _
    $region6: #{encoder_forward.1} parent=1 // loop_footer
      %s30 = sadd.s32 1, %s26
    $region7: #{encoder_forward.1} parent=1 // loop_footer_branch
      %25 = sbr.rel target = $region3
    $region8: #{encoder_forward.1} parent=1 // loop_exit
      _
    %3550 = vsyncpa [#allocation7], 1
    %s3551 = scalar_lea.sflag [#allocation7], 1
    %3552 = vsyncpa %s3551, 1

</llo_original>
